<compile_context>
chip_gen: v6e
topology: v6e:2x2x1
jax: 0.10.0
libtpu: 0.0.40
codegen_flags: <defaults>
</compile_context>

<pallas_src>
import functools

import jax
import jax.numpy as jnp
from jax.experimental import pallas as pl
from jax.experimental.pallas import tpu as pltpu  # noqa: F401  (per template)

LANE = 128


def _round_up(x, m):
    return (x + m - 1) // m * m


# ----------------------------------------------------------------------------
# Pallas kernels (each is one pallas_call, no grid: whole arrays in VMEM)
# ----------------------------------------------------------------------------
def _conv_bias_relu_kernel(x_ref, w_ref, b_ref, o_ref):
    # (M, Kp)bf16 @ (Kp, 128)bf16 on the MXU, f32 accumulate, +bias, ReLU.
    acc = jnp.dot(x_ref[...], w_ref[...], preferred_element_type=jnp.float32)
    o_ref[...] = jnp.maximum(acc + b_ref[...], 0.0)


def _conv_pool_bias_relu_kernel(a_ref, b_ref, c_ref, d_ref, w_ref, bias_ref,
                                o_ref):
    # Fused Conv + folded-BN + ReLU + 2x2 MaxPool: a/b/c/d are the im2col patch
    # matrices of the 4 positions of each pooling window.
    w = w_ref[...]
    pa = jnp.dot(a_ref[...], w, preferred_element_type=jnp.float32)
    pb = jnp.dot(b_ref[...], w, preferred_element_type=jnp.float32)
    pc = jnp.dot(c_ref[...], w, preferred_element_type=jnp.float32)
    pd = jnp.dot(d_ref[...], w, preferred_element_type=jnp.float32)
    m = jnp.maximum(jnp.maximum(pa, pb), jnp.maximum(pc, pd))
    o_ref[...] = jnp.maximum(m + bias_ref[...], 0.0)


def _fc_stack_kernel(x_ref, w1_ref, b1_ref, w2_ref, b2_ref, w3_ref, b3_ref,
                     o_ref):
    # fc1+ReLU (Dropout=id) -> fc2 (Dropout=id)+ReLU -> fc3, all weights resident.
    h1 = jnp.dot(x_ref[...], w1_ref[...], preferred_element_type=jnp.float32)
    h1 = jnp.maximum(h1 + b1_ref[...], 0.0)
    h2 = jnp.dot(h1.astype(jnp.bfloat16), w2_ref[...],
                 preferred_element_type=jnp.float32)
    h2 = jnp.maximum(h2 + b2_ref[...], 0.0)
    o = jnp.dot(h2.astype(jnp.bfloat16), w3_ref[...],
                preferred_element_type=jnp.float32)
    o_ref[...] = o + b3_ref[...]


# ----------------------------------------------------------------------------
# Wrappers (all called inside jax.jit)
# ----------------------------------------------------------------------------
def _im2col(x, padding=0):
    """x: (N, H, W, C) -> (N, OH, OW, 9*C) patches, taps in (kh, kw, C) order."""
    if padding:
        x = jnp.pad(x, ((0, 0), (padding, padding), (padding, padding), (0, 0)))
    N, H, W, C = x.shape
    OH, OW = H - 2, W - 2
    cols = [x[:, i:i + OH, j:j + OW, :] for i in range(3) for j in range(3)]
    return jnp.concatenate(cols, axis=-1), OH, OW


def _pad_rows_bf16(x2d, Mp, Kp):
    M, K = x2d.shape
    return jnp.zeros((Mp, Kp), jnp.bfloat16).at[:M, :K].set(
        x2d.astype(jnp.bfloat16))


def conv_bn_relu(x, wp, bp, oc, padding=0):
    """Fused Conv3x3 + folded-BN + ReLU as a single-step Pallas matmul."""
    patches, OH, OW = _im2col(x, padding)
    N = x.shape[0]
    K = patches.shape[-1]
    M = N * OH * OW
    Mp = _round_up(M, 8)
    Kp = wp.shape[0]
    xp = _pad_rows_bf16(patches.reshape(M, K), Mp, Kp)
    out = pl.pallas_call(
        _conv_bias_relu_kernel,
        out_shape=jax.ShapeDtypeStruct((Mp, LANE), jnp.float32),
    )(xp, wp, bp)
    return out[:M, :oc].reshape(N, OH, OW, oc)


def conv_bn_relu_pool(x, wp, bp, oc, padding=0):
    """Fused Conv3x3 + folded-BN + ReLU + 2x2/stride-2 MaxPool (one pallas_call)."""
    patches, OH, OW = _im2col(x, padding)
    N = x.shape[0]
    K = patches.shape[-1]
    POH, POW = OH // 2, OW // 2
    M = N * POH * POW
    Mp = _round_up(M, 8)
    Kp = wp.shape[0]

    def grab(di, dj):
        return _pad_rows_bf16(patches[:, di::2, dj::2, :].reshape(M, K), Mp, Kp)

    out = pl.pallas_call(
        _conv_pool_bias_relu_kernel,
        out_shape=jax.ShapeDtypeStruct((Mp, LANE), jnp.float32),
    )(grab(0, 0), grab(0, 1), grab(1, 0), grab(1, 1), wp, bp)
    return out[:M, :oc].reshape(N, POH, POW, oc)


def fc_stack(x_flat, prep, num_classes):
    N, K = x_flat.shape
    Mp = 8  # f32/bf16 sublane minimum; avoids 128-row padding of a batch-2 GEMM
    xp = _pad_rows_bf16(x_flat, Mp, K)
    out = pl.pallas_call(
        _fc_stack_kernel,
        out_shape=jax.ShapeDtypeStruct((Mp, LANE), jnp.float32),
    )(xp, prep["fc1_w"], prep["fc1_b"], prep["fc2_w"], prep["fc2_b"],
      prep["fc3_w"], prep["fc3_b"])
    return out[:N, :num_classes]


# ----------------------------------------------------------------------------
# Parameters (deterministic, in-script)
# ----------------------------------------------------------------------------
def _conv_cfg(in_channels):
    return [
        ("conv1", in_channels, 8),
        ("conv2", 8, 16),
        ("conv3", 16, 32),
        ("conv4", 32, 32),
        ("conv5", 32, 32),
    ]


def init_params(key, in_channels, num_classes):
    params = {}
    keys = jax.random.split(key, 40)
    ki = 0
    for name, ic, oc in _conv_cfg(in_channels):
        params[name + "_w"] = 0.1 * jax.random.normal(
            keys[ki], (3 * 3 * ic, oc), jnp.float32); ki += 1
        params[name + "_b"] = 0.05 * jax.random.normal(
            keys[ki], (oc,), jnp.float32); ki += 1
        params[name + "_gamma"] = 1.0 + 0.1 * jax.random.normal(
            keys[ki], (oc,), jnp.float32); ki += 1
        params[name + "_beta"] = 0.05 * jax.random.normal(
            keys[ki], (oc,), jnp.float32); ki += 1
        params[name + "_mean"] = 0.02 * jax.random.normal(
            keys[ki], (oc,), jnp.float32); ki += 1
        params[name + "_var"] = jax.random.uniform(
            keys[ki], (oc,), jnp.float32, 0.5, 1.5); ki += 1

    fc_cfg = [("fc1", 32 * 4 * 4, 64), ("fc2", 64, 64), ("fc3", 64, num_classes)]
    for name, din, dout in fc_cfg:
        params[name + "_w"] = 0.05 * jax.random.normal(
            keys[ki], (din, dout), jnp.float32); ki += 1
        params[name + "_b"] = 0.02 * jax.random.normal(
            keys[ki], (dout,), jnp.float32); ki += 1
    return params


def prepare_params(params, in_channels, eps=1e-5):
    """One-time prep (outside jit): fold the BN scale into the conv weights,
    pad every weight to a (Kp, 128) tile, cast MXU operands to bf16, keep the
    biases in f32, and bake the PyTorch NCHW-flatten order into fc1_w."""
    prep = {}
    for name, ic, oc in _conv_cfg(in_channels):
        scale = params[name + "_gamma"] / jnp.sqrt(params[name + "_var"] + eps)
        bias = (params[name + "_b"] - params[name + "_mean"]) * scale \
            + params[name + "_beta"]
        wf = params[name + "_w"] * scale[None, :]  # BN scale folded into weights
        K = wf.shape[0]
        Kp = _round_up(K, LANE)
        prep[name + "_w"] = jnp.zeros((Kp, LANE), jnp.bfloat16).at[:K, :oc].set(
            wf.astype(jnp.bfloat16))
        prep[name + "_b"] = jnp.zeros((1, LANE), jnp.float32).at[0, :oc].set(bias)

    # fc1 rows are in NCHW-flatten order (c*16 + h*4 + w); permute so the kernel
    # consumes the NHWC-flattened activation directly (h*128 + w*32 + c).
    C, H, W = 32, 4, 4
    w1 = params["fc1_w"].reshape(C, H, W, 64).transpose(1, 2, 0, 3)
    w1 = w1.reshape(H * W * C, 64)
    prep["fc1_w"] = jnp.zeros((H * W * C, LANE), jnp.bfloat16).at[:, :64].set(
        w1.astype(jnp.bfloat16))
    prep["fc1_b"] = jnp.zeros((1, LANE), jnp.float32).at[0, :64].set(
        params["fc1_b"])
    prep["fc2_w"] = jnp.zeros((LANE, LANE), jnp.bfloat16).at[:64, :64].set(
        params["fc2_w"].astype(jnp.bfloat16))
    prep["fc2_b"] = jnp.zeros((1, LANE), jnp.float32).at[0, :64].set(
        params["fc2_b"])
    nc = params["fc3_w"].shape[1]
    prep["fc3_w"] = jnp.zeros((LANE, LANE), jnp.bfloat16).at[:64, :nc].set(
        params["fc3_w"].astype(jnp.bfloat16))
    prep["fc3_b"] = jnp.zeros((1, LANE), jnp.float32).at[0, :nc].set(
        params["fc3_b"])
    return prep


# ----------------------------------------------------------------------------
# Forward pass (matches Net.forward, inference semantics), fully jitted
# ----------------------------------------------------------------------------
@functools.partial(jax.jit, static_argnames=("num_classes",))
def net_forward(prep, x_nchw, *, num_classes):
    x = jnp.transpose(x_nchw, (0, 2, 3, 1))                             # NCHW -> NHWC
    x = conv_bn_relu(x, prep["conv1_w"], prep["conv1_b"], 8)            # layer1
    x = conv_bn_relu_pool(x, prep["conv2_w"], prep["conv2_b"], 16)      # layer2
    x = conv_bn_relu(x, prep["conv3_w"], prep["conv3_b"], 32)           # layer3
    x = conv_bn_relu(x, prep["conv4_w"], prep["conv4_b"], 32)           # layer4
    x = conv_bn_relu_pool(x, prep["conv5_w"], prep["conv5_b"], 32,
                          padding=1)                                    # layer5
    n = x.shape[0]
    # NHWC flatten; NCHW (x.view(N,-1)) semantics are preserved because fc1_w's
    # rows were pre-permuted at prepare time.
    x_flat = x.reshape(n, -1)                                           # (N, 512)
    return fc_stack(x_flat, prep, num_classes)


if __name__ == "__main__":
    in_channels = 1
    num_classes = 10
    batch = 2
    # Spatial size 28 is required so layer5's output is 4x4 (fc expects 32*4*4).
    key = jax.random.PRNGKey(0)
    k_params, k_x = jax.random.split(key)
    raw_params = init_params(k_params, in_channels, num_classes)
    prep = prepare_params(raw_params, in_channels)
    x = jax.random.normal(k_x, (batch, in_channels, 28, 28), jnp.float32)

    out = net_forward(prep, x, num_classes=num_classes)
    out = jax.block_until_ready(out)
    assert out.shape == (batch, num_classes), out.shape
    print("KERNEL_OK")
</pallas_src>

<mosaic_0001>
module attributes {stable_mosaic.version = 11 : i64} {
  func.func @_conv_bias_relu_kernel(%arg0: memref<1352x128xbf16, #tpu.memory_space<vmem>>, %arg1: memref<128x128xbf16, #tpu.memory_space<vmem>>, %arg2: memref<1x128xf32, #tpu.memory_space<vmem>>, %arg3: memref<1352x128xf32, #tpu.memory_space<vmem>>) attributes {dimension_semantics = [], scalar_prefetch = 0 : i64, scratch_operands = 0 : i64, tpu.core_type = #tpu.core_type<tc>} {
    %c0 = arith.constant 0 : index
    %c0_0 = arith.constant 0 : index
    %0 = vector.load %arg0[%c0, %c0_0] : memref<1352x128xbf16, #tpu.memory_space<vmem>>, vector<1352x128xbf16>
    %c0_1 = arith.constant 0 : index
    %c0_2 = arith.constant 0 : index
    %1 = vector.load %arg1[%c0_1, %c0_2] : memref<128x128xbf16, #tpu.memory_space<vmem>>, vector<128x128xbf16>
    %cst = arith.constant dense<0.000000e+00> : vector<1352x128xf32>
    %2 = tpu.matmul %0, %1, %cst {dimension_numbers = #tpu.dot_dimension_numbers<[1], [0], [0], [1], [0, 0, 1, 1], [], []>} : vector<1352x128xbf16>, vector<128x128xbf16>, vector<1352x128xf32> -> vector<1352x128xf32>
    %c0_3 = arith.constant 0 : index
    %c0_4 = arith.constant 0 : index
    %3 = vector.load %arg2[%c0_3, %c0_4] : memref<1x128xf32, #tpu.memory_space<vmem>>, vector<1x128xf32>
    %4 = vector.broadcast %3 : vector<1x128xf32> to vector<1352x128xf32>
    %5 = arith.addf %2, %4 : vector<1352x128xf32>
    %cst_5 = arith.constant 0.000000e+00 : f32
    %6 = vector.broadcast %cst_5 : f32 to vector<1352x128xf32>
    %7 = arith.maximumf %5, %6 : vector<1352x128xf32>
    %c0_6 = arith.constant 0 : index
    %c0_7 = arith.constant 0 : index
    %8 = vector.load %arg3[%c0_6, %c0_7] : memref<1352x128xf32, #tpu.memory_space<vmem>>, vector<1352x128xf32>
    tpu.vector_store %arg3[%c0_6, %c0_7], %7 {strides = array<i32>} : memref<1352x128xf32, #tpu.memory_space<vmem>>, vector<1352x128xf32>,
    return
  }
}

module attributes {stable_mosaic.version = 11 : i64} {
  func.func @_conv_pool_bias_relu_kernel(%arg0: memref<288x128xbf16, #tpu.memory_space<vmem>>, %arg1: memref<288x128xbf16, #tpu.memory_space<vmem>>, %arg2: memref<288x128xbf16, #tpu.memory_space<vmem>>, %arg3: memref<288x128xbf16, #tpu.memory_space<vmem>>, %arg4: memref<128x128xbf16, #tpu.memory_space<vmem>>, %arg5: memref<1x128xf32, #tpu.memory_space<vmem>>, %arg6: memref<288x128xf32, #tpu.memory_space<vmem>>) attributes {dimension_semantics = [], scalar_prefetch = 0 : i64, scratch_operands = 0 : i64, tpu.core_type = #tpu.core_type<tc>} {
    %c0 = arith.constant 0 : index
    %c0_0 = arith.constant 0 : index
    %0 = vector.load %arg4[%c0, %c0_0] : memref<128x128xbf16, #tpu.memory_space<vmem>>, vector<128x128xbf16>
    %c0_1 = arith.constant 0 : index
    %c0_2 = arith.constant 0 : index
    %1 = vector.load %arg0[%c0_1, %c0_2] : memref<288x128xbf16, #tpu.memory_space<vmem>>, vector<288x128xbf16>
    %cst = arith.constant dense<0.000000e+00> : vector<288x128xf32>
    %2 = tpu.matmul %1, %0, %cst {dimension_numbers = #tpu.dot_dimension_numbers<[1], [0], [0], [1], [0, 0, 1, 1], [], []>} : vector<288x128xbf16>, vector<128x128xbf16>, vector<288x128xf32> -> vector<288x128xf32>
    %c0_3 = arith.constant 0 : index
    %c0_4 = arith.constant 0 : index
    %3 = vector.load %arg1[%c0_3, %c0_4] : memref<288x128xbf16, #tpu.memory_space<vmem>>, vector<288x128xbf16>
    %cst_5 = arith.constant dense<0.000000e+00> : vector<288x128xf32>
    %4 = tpu.matmul %3, %0, %cst_5 {dimension_numbers = #tpu.dot_dimension_numbers<[1], [0], [0], [1], [0, 0, 1, 1], [], []>} : vector<288x128xbf16>, vector<128x128xbf16>, vector<288x128xf32> -> vector<288x128xf32>
    %c0_6 = arith.constant 0 : index
    %c0_7 = arith.constant 0 : index
    %5 = vector.load %arg2[%c0_6, %c0_7] : memref<288x128xbf16, #tpu.memory_space<vmem>>, vector<288x128xbf16>
    %cst_8 = arith.constant dense<0.000000e+00> : vector<288x128xf32>
    %6 = tpu.matmul %5, %0, %cst_8 {dimension_numbers = #tpu.dot_dimension_numbers<[1], [0], [0], [1], [0, 0, 1, 1], [], []>} : vector<288x128xbf16>, vector<128x128xbf16>, vector<288x128xf32> -> vector<288x128xf32>
    %c0_9 = arith.constant 0 : index
    %c0_10 = arith.constant 0 : index
    %7 = vector.load %arg3[%c0_9, %c0_10] : memref<288x128xbf16, #tpu.memory_space<vmem>>, vector<288x128xbf16>
    %cst_11 = arith.constant dense<0.000000e+00> : vector<288x128xf32>
    %8 = tpu.matmul %7, %0, %cst_11 {dimension_numbers = #tpu.dot_dimension_numbers<[1], [0], [0], [1], [0, 0, 1, 1], [], []>} : vector<288x128xbf16>, vector<128x128xbf16>, vector<288x128xf32> -> vector<288x128xf32>
    %9 = arith.maximumf %2, %4 : vector<288x128xf32>
    %10 = arith.maximumf %6, %8 : vector<288x128xf32>
    %11 = arith.maximumf %9, %10 : vector<288x128xf32>
    %c0_12 = arith.constant 0 : index
    %c0_13 = arith.constant 0 : index
    %12 = vector.load %arg5[%c0_12, %c0_13] : memref<1x128xf32, #tpu.memory_space<vmem>>, vector<1x128xf32>
    %13 = vector.broadcast %12 : vector<1x128xf32> to vector<288x128xf32>
    %14 = arith.addf %11, %13 : vector<288x128xf32>
    %cst_14 = arith.constant 0.000000e+00 : f32
    %15 = vector.broadcast %cst_14 : f32 to vector<288x128xf32>
    %16 = arith.maximumf %14, %15 : vector<288x128xf32>
    %c0_15 = arith.constant 0 : index
    %c0_16 = arith.constant 0 : index
    %17 = vector.load %arg6[%c0_15, %c0_16] : memref<288x128xf32, #tpu.memory_space<vmem>>, vector<288x128xf32>
    tpu.vector_store %arg6[%c0_15, %c0_16], %16 {strides = array<i32>} : memref<288x128xf32, #tpu.memory_space<vmem>>, vector<288x128xf32>,
    return
  }
}

module attributes {stable_mosaic.version = 11 : i64} {
  func.func @_conv_bias_relu_kernel(%arg0: memref<200x256xbf16, #tpu.memory_space<vmem>>, %arg1: memref<256x128xbf16, #tpu.memory_space<vmem>>, %arg2: memref<1x128xf32, #tpu.memory_space<vmem>>, %arg3: memref<200x128xf32, #tpu.memory_space<vmem>>) attributes {dimension_semantics = [], scalar_prefetch = 0 : i64, scratch_operands = 0 : i64, tpu.core_type = #tpu.core_type<tc>} {
    %c0 = arith.constant 0 : index
    %c0_0 = arith.constant 0 : index
    %0 = vector.load %arg0[%c0, %c0_0] : memref<200x256xbf16, #tpu.memory_space<vmem>>, vector<200x256xbf16>
    %c0_1 = arith.constant 0 : index
    %c0_2 = arith.constant 0 : index
    %1 = vector.load %arg1[%c0_1, %c0_2] : memref<256x128xbf16, #tpu.memory_space<vmem>>, vector<256x128xbf16>
    %cst = arith.constant dense<0.000000e+00> : vector<200x128xf32>
    %2 = tpu.matmul %0, %1, %cst {dimension_numbers = #tpu.dot_dimension_numbers<[1], [0], [0], [1], [0, 0, 1, 1], [], []>} : vector<200x256xbf16>, vector<256x128xbf16>, vector<200x128xf32> -> vector<200x128xf32>
    %c0_3 = arith.constant 0 : index
    %c0_4 = arith.constant 0 : index
    %3 = vector.load %arg2[%c0_3, %c0_4] : memref<1x128xf32, #tpu.memory_space<vmem>>, vector<1x128xf32>
    %4 = vector.broadcast %3 : vector<1x128xf32> to vector<200x128xf32>
    %5 = arith.addf %2, %4 : vector<200x128xf32>
    %cst_5 = arith.constant 0.000000e+00 : f32
    %6 = vector.broadcast %cst_5 : f32 to vector<200x128xf32>
    %7 = arith.maximumf %5, %6 : vector<200x128xf32>
    %c0_6 = arith.constant 0 : index
    %c0_7 = arith.constant 0 : index
    %8 = vector.load %arg3[%c0_6, %c0_7] : memref<200x128xf32, #tpu.memory_space<vmem>>, vector<200x128xf32>
    tpu.vector_store %arg3[%c0_6, %c0_7], %7 {strides = array<i32>} : memref<200x128xf32, #tpu.memory_space<vmem>>, vector<200x128xf32>,
    return
  }
}

module attributes {stable_mosaic.version = 11 : i64} {
  func.func @_conv_bias_relu_kernel(%arg0: memref<128x384xbf16, #tpu.memory_space<vmem>>, %arg1: memref<384x128xbf16, #tpu.memory_space<vmem>>, %arg2: memref<1x128xf32, #tpu.memory_space<vmem>>, %arg3: memref<128x128xf32, #tpu.memory_space<vmem>>) attributes {dimension_semantics = [], scalar_prefetch = 0 : i64, scratch_operands = 0 : i64, tpu.core_type = #tpu.core_type<tc>} {
    %c0 = arith.constant 0 : index
    %c0_0 = arith.constant 0 : index
    %0 = vector.load %arg0[%c0, %c0_0] : memref<128x384xbf16, #tpu.memory_space<vmem>>, vector<128x384xbf16>
    %c0_1 = arith.constant 0 : index
    %c0_2 = arith.constant 0 : index
    %1 = vector.load %arg1[%c0_1, %c0_2] : memref<384x128xbf16, #tpu.memory_space<vmem>>, vector<384x128xbf16>
    %cst = arith.constant dense<0.000000e+00> : vector<128x128xf32>
    %2 = tpu.matmul %0, %1, %cst {dimension_numbers = #tpu.dot_dimension_numbers<[1], [0], [0], [1], [0, 0, 1, 1], [], []>} : vector<128x384xbf16>, vector<384x128xbf16>, vector<128x128xf32> -> vector<128x128xf32>
    %c0_3 = arith.constant 0 : index
    %c0_4 = arith.constant 0 : index
    %3 = vector.load %arg2[%c0_3, %c0_4] : memref<1x128xf32, #tpu.memory_space<vmem>>, vector<1x128xf32>
    %4 = vector.broadcast %3 : vector<1x128xf32> to vector<128x128xf32>
    %5 = arith.addf %2, %4 : vector<128x128xf32>
    %cst_5 = arith.constant 0.000000e+00 : f32
    %6 = vector.broadcast %cst_5 : f32 to vector<128x128xf32>
    %7 = arith.maximumf %5, %6 : vector<128x128xf32>
    %c0_6 = arith.constant 0 : index
    %c0_7 = arith.constant 0 : index
    %8 = vector.load %arg3[%c0_6, %c0_7] : memref<128x128xf32, #tpu.memory_space<vmem>>, vector<128x128xf32>
    tpu.vector_store %arg3[%c0_6, %c0_7], %7 {strides = array<i32>} : memref<128x128xf32, #tpu.memory_space<vmem>>, vector<128x128xf32>,
    return
  }
}

module attributes {stable_mosaic.version = 11 : i64} {
  func.func @_conv_pool_bias_relu_kernel(%arg0: memref<32x384xbf16, #tpu.memory_space<vmem>>, %arg1: memref<32x384xbf16, #tpu.memory_space<vmem>>, %arg2: memref<32x384xbf16, #tpu.memory_space<vmem>>, %arg3: memref<32x384xbf16, #tpu.memory_space<vmem>>, %arg4: memref<384x128xbf16, #tpu.memory_space<vmem>>, %arg5: memref<1x128xf32, #tpu.memory_space<vmem>>, %arg6: memref<32x128xf32, #tpu.memory_space<vmem>>) attributes {dimension_semantics = [], scalar_prefetch = 0 : i64, scratch_operands = 0 : i64, tpu.core_type = #tpu.core_type<tc>} {
    %c0 = arith.constant 0 : index
    %c0_0 = arith.constant 0 : index
    %0 = vector.load %arg4[%c0, %c0_0] : memref<384x128xbf16, #tpu.memory_space<vmem>>, vector<384x128xbf16>
    %c0_1 = arith.constant 0 : index
    %c0_2 = arith.constant 0 : index
    %1 = vector.load %arg0[%c0_1, %c0_2] : memref<32x384xbf16, #tpu.memory_space<vmem>>, vector<32x384xbf16>
    %cst = arith.constant dense<0.000000e+00> : vector<32x128xf32>
    %2 = tpu.matmul %1, %0, %cst {dimension_numbers = #tpu.dot_dimension_numbers<[1], [0], [0], [1], [0, 0, 1, 1], [], []>} : vector<32x384xbf16>, vector<384x128xbf16>, vector<32x128xf32> -> vector<32x128xf32>
    %c0_3 = arith.constant 0 : index
    %c0_4 = arith.constant 0 : index
    %3 = vector.load %arg1[%c0_3, %c0_4] : memref<32x384xbf16, #tpu.memory_space<vmem>>, vector<32x384xbf16>
    %cst_5 = arith.constant dense<0.000000e+00> : vector<32x128xf32>
    %4 = tpu.matmul %3, %0, %cst_5 {dimension_numbers = #tpu.dot_dimension_numbers<[1], [0], [0], [1], [0, 0, 1, 1], [], []>} : vector<32x384xbf16>, vector<384x128xbf16>, vector<32x128xf32> -> vector<32x128xf32>
    %c0_6 = arith.constant 0 : index
    %c0_7 = arith.constant 0 : index
    %5 = vector.load %arg2[%c0_6, %c0_7] : memref<32x384xbf16, #tpu.memory_space<vmem>>, vector<32x384xbf16>
    %cst_8 = arith.constant dense<0.000000e+00> : vector<32x128xf32>
    %6 = tpu.matmul %5, %0, %cst_8 {dimension_numbers = #tpu.dot_dimension_numbers<[1], [0], [0], [1], [0, 0, 1, 1], [], []>} : vector<32x384xbf16>, vector<384x128xbf16>, vector<32x128xf32> -> vector<32x128xf32>
    %c0_9 = arith.constant 0 : index
    %c0_10 = arith.constant 0 : index
    %7 = vector.load %arg3[%c0_9, %c0_10] : memref<32x384xbf16, #tpu.memory_space<vmem>>, vector<32x384xbf16>
    %cst_11 = arith.constant dense<0.000000e+00> : vector<32x128xf32>
    %8 = tpu.matmul %7, %0, %cst_11 {dimension_numbers = #tpu.dot_dimension_numbers<[1], [0], [0], [1], [0, 0, 1, 1], [], []>} : vector<32x384xbf16>, vector<384x128xbf16>, vector<32x128xf32> -> vector<32x128xf32>
    %9 = arith.maximumf %2, %4 : vector<32x128xf32>
    %10 = arith.maximumf %6, %8 : vector<32x128xf32>
    %11 = arith.maximumf %9, %10 : vector<32x128xf32>
    %c0_12 = arith.constant 0 : index
    %c0_13 = arith.constant 0 : index
    %12 = vector.load %arg5[%c0_12, %c0_13] : memref<1x128xf32, #tpu.memory_space<vmem>>, vector<1x128xf32>
    %13 = vector.broadcast %12 : vector<1x128xf32> to vector<32x128xf32>
    %14 = arith.addf %11, %13 : vector<32x128xf32>
    %cst_14 = arith.constant 0.000000e+00 : f32
    %15 = vector.broadcast %cst_14 : f32 to vector<32x128xf32>
    %16 = arith.maximumf %14, %15 : vector<32x128xf32>
    %c0_15 = arith.constant 0 : index
    %c0_16 = arith.constant 0 : index
    %17 = vector.load %arg6[%c0_15, %c0_16] : memref<32x128xf32, #tpu.memory_space<vmem>>, vector<32x128xf32>
    tpu.vector_store %arg6[%c0_15, %c0_16], %16 {strides = array<i32>} : memref<32x128xf32, #tpu.memory_space<vmem>>, vector<32x128xf32>,
    return
  }
}

module attributes {stable_mosaic.version = 11 : i64} {
  func.func @_fc_stack_kernel(%arg0: memref<8x512xbf16, #tpu.memory_space<vmem>>, %arg1: memref<512x128xbf16, #tpu.memory_space<vmem>>, %arg2: memref<1x128xf32, #tpu.memory_space<vmem>>, %arg3: memref<128x128xbf16, #tpu.memory_space<vmem>>, %arg4: memref<1x128xf32, #tpu.memory_space<vmem>>, %arg5: memref<128x128xbf16, #tpu.memory_space<vmem>>, %arg6: memref<1x128xf32, #tpu.memory_space<vmem>>, %arg7: memref<8x128xf32, #tpu.memory_space<vmem>>) attributes {dimension_semantics = [], scalar_prefetch = 0 : i64, scratch_operands = 0 : i64, tpu.core_type = #tpu.core_type<tc>} {
    %c0 = arith.constant 0 : index
    %c0_0 = arith.constant 0 : index
    %0 = vector.load %arg0[%c0, %c0_0] : memref<8x512xbf16, #tpu.memory_space<vmem>>, vector<8x512xbf16>
    %c0_1 = arith.constant 0 : index
    %c0_2 = arith.constant 0 : index
    %1 = vector.load %arg1[%c0_1, %c0_2] : memref<512x128xbf16, #tpu.memory_space<vmem>>, vector<512x128xbf16>
    %cst = arith.constant dense<0.000000e+00> : vector<8x128xf32>
    %2 = tpu.matmul %0, %1, %cst {dimension_numbers = #tpu.dot_dimension_numbers<[1], [0], [0], [1], [0, 0, 1, 1], [], []>} : vector<8x512xbf16>, vector<512x128xbf16>, vector<8x128xf32> -> vector<8x128xf32>
    %c0_3 = arith.constant 0 : index
    %c0_4 = arith.constant 0 : index
    %3 = vector.load %arg2[%c0_3, %c0_4] : memref<1x128xf32, #tpu.memory_space<vmem>>, vector<1x128xf32>
    %4 = vector.broadcast %3 : vector<1x128xf32> to vector<8x128xf32>
    %5 = arith.addf %2, %4 : vector<8x128xf32>
    %cst_5 = arith.constant 0.000000e+00 : f32
    %6 = vector.broadcast %cst_5 : f32 to vector<8x128xf32>
    %7 = arith.maximumf %5, %6 : vector<8x128xf32>
    %8 = arith.truncf %7 : vector<8x128xf32> to vector<8x128xbf16>
    %c0_6 = arith.constant 0 : index
    %c0_7 = arith.constant 0 : index
    %9 = vector.load %arg3[%c0_6, %c0_7] : memref<128x128xbf16, #tpu.memory_space<vmem>>, vector<128x128xbf16>
    %cst_8 = arith.constant dense<0.000000e+00> : vector<8x128xf32>
    %10 = tpu.matmul %8, %9, %cst_8 {dimension_numbers = #tpu.dot_dimension_numbers<[1], [0], [0], [1], [0, 0, 1, 1], [], []>} : vector<8x128xbf16>, vector<128x128xbf16>, vector<8x128xf32> -> vector<8x128xf32>
    %c0_9 = arith.constant 0 : index
    %c0_10 = arith.constant 0 : index
    %11 = vector.load %arg4[%c0_9, %c0_10] : memref<1x128xf32, #tpu.memory_space<vmem>>, vector<1x128xf32>
    %12 = vector.broadcast %11 : vector<1x128xf32> to vector<8x128xf32>
    %13 = arith.addf %10, %12 : vector<8x128xf32>
    %cst_11 = arith.constant 0.000000e+00 : f32
    %14 = vector.broadcast %cst_11 : f32 to vector<8x128xf32>
    %15 = arith.maximumf %13, %14 : vector<8x128xf32>
    %16 = arith.truncf %15 : vector<8x128xf32> to vector<8x128xbf16>
    %c0_12 = arith.constant 0 : index
    %c0_13 = arith.constant 0 : index
    %17 = vector.load %arg5[%c0_12, %c0_13] : memref<128x128xbf16, #tpu.memory_space<vmem>>, vector<128x128xbf16>
    %cst_14 = arith.constant dense<0.000000e+00> : vector<8x128xf32>
    %18 = tpu.matmul %16, %17, %cst_14 {dimension_numbers = #tpu.dot_dimension_numbers<[1], [0], [0], [1], [0, 0, 1, 1], [], []>} : vector<8x128xbf16>, vector<128x128xbf16>, vector<8x128xf32> -> vector<8x128xf32>
    %c0_15 = arith.constant 0 : index
    %c0_16 = arith.constant 0 : index
    %19 = vector.load %arg6[%c0_15, %c0_16] : memref<1x128xf32, #tpu.memory_space<vmem>>, vector<1x128xf32>
    %20 = vector.broadcast %19 : vector<1x128xf32> to vector<8x128xf32>
    %21 = arith.addf %18, %20 : vector<8x128xf32>
    %c0_17 = arith.constant 0 : index
    %c0_18 = arith.constant 0 : index
    %22 = vector.load %arg7[%c0_17, %c0_18] : memref<8x128xf32, #tpu.memory_space<vmem>>, vector<8x128xf32>
    tpu.vector_store %arg7[%c0_17, %c0_18], %21 {strides = array<i32>} : memref<8x128xf32, #tpu.memory_space<vmem>>, vector<8x128xf32>,
    return
  }
}

</mosaic_0001>

<llo_original>
// kernel: net_forward.6
$region0: #{net_forward.6}
  #allocation0 [shape = 'u32[]', space=smem, size = 0x4, offset = 0x4, fixed_abs, tag = 'smem constant byte address 0x4 - core index']
  #allocation1 [shape = 'u32[144,128]{1,0:T(1,128)}', space=vmem, size = 0x12000, scoped, tag = 'internal scratch']
  %s0 = inlined_call_operand.vmem [shape: bf16[1352,128], index: 0, kind: input, shape index: {}]
  %s1 = inlined_call_operand.vmem [shape: bf16[128,128], index: 1, kind: input, shape index: {}]
  %s2 = inlined_call_operand.vmem [shape: f32[1,128], index: 2, kind: input, shape index: {}]
  %s3 = inlined_call_operand.vmem [shape: f32[1352,128], index: 3, kind: output, shape index: {}]
  %s4 = sld [smem:[#allocation0]]
  $region22: #{net_forward.6} parent=0
    _
  %s6 = ssub.s32 1, %s4
  %s7 = scalar_select 0, %s6, %s4
  // Predicated region
  $region2: #{net_forward.6} parent=0 // pred_check
    _
  $region3: #{net_forward.6} parent=0 // pred_check_branch
    %9 = sbr.rel (0) target = $region5
  $region4: #{net_forward.6} parent=0 // pred_region
    _
  $region5: #{net_forward.6} parent=0 // pred_fallthru
    _
  // Predicated region
  $region6: #{net_forward.6} parent=0 // pred_check
    _
  $region7: #{net_forward.6} parent=0 // pred_check_branch
    %11 = sbr.rel (0) target = $region9
  $region8: #{net_forward.6} parent=0 // pred_region
    _
  $region9: #{net_forward.6} parent=0 // pred_fallthru
    _
  // Predicated region
  $region10: #{net_forward.6} parent=0 // pred_check
    _
  $region11: #{net_forward.6} parent=0 // pred_check_branch
    %13 = sbr.rel (0) target = $region13
  $region12: #{net_forward.6} parent=0 // pred_region
    _
  $region13: #{net_forward.6} parent=0 // pred_fallthru
    _
  %v15 = vld [vmem:[%s0] sm:$0xf]
  %v16 = vld [vmem:[%s0 + $0x4] sm:$0xf]
  %v17 = vld [vmem:[%s0 + $0x8] sm:$0xf]
  %v18 = vld [vmem:[%s0 + $0xc] sm:$0xf]
  %v19 = vld [vmem:[%s0 + $0x10] sm:$0xf]
  %v20 = vld [vmem:[%s0 + $0x14] sm:$0xf]
  %v21 = vld [vmem:[%s0 + $0x18] sm:$0xf]
  %v22 = vld [vmem:[%s0 + $0x1c] sm:$0xf]
  %v23 = vld [vmem:[%s0 + $0x20] sm:$0xf]
  %v24 = vld [vmem:[%s0 + $0x24] sm:$0xf]
  %v25 = vld [vmem:[%s0 + $0x28] sm:$0xf]
  %v26 = vld [vmem:[%s0 + $0x2c] sm:$0xf]
  %v27 = vld [vmem:[%s0 + $0x30] sm:$0xf]
  %v28 = vld [vmem:[%s0 + $0x34] sm:$0xf]
  %v29 = vld [vmem:[%s0 + $0x38] sm:$0xf]
  %v30 = vld [vmem:[%s0 + $0x3c] sm:$0xf]
  %v31 = vld [vmem:[%s0 + $0x40] sm:$0xf]
  %v32 = vld [vmem:[%s0 + $0x44] sm:$0xf]
  %v33 = vld [vmem:[%s0 + $0x48] sm:$0xf]
  %v34 = vld [vmem:[%s0 + $0x4c] sm:$0xf]
  %v35 = vld [vmem:[%s0 + $0x50] sm:$0xf]
  %v36 = vld [vmem:[%s0 + $0x54] sm:$0xf]
  %v37 = vld [vmem:[%s0 + $0x58] sm:$0xf]
  %v38 = vld [vmem:[%s0 + $0x5c] sm:$0xf]
  %v39 = vld [vmem:[%s0 + $0x60] sm:$0xf]
  %v40 = vld [vmem:[%s0 + $0x64] sm:$0xf]
  %v41 = vld [vmem:[%s0 + $0x68] sm:$0xf]
  %v42 = vld [vmem:[%s0 + $0x6c] sm:$0xf]
  %v43 = vld [vmem:[%s0 + $0x70] sm:$0xf]
  %v44 = vld [vmem:[%s0 + $0x74] sm:$0xf]
  %v45 = vld [vmem:[%s0 + $0x78] sm:$0xf]
  %v46 = vld [vmem:[%s0 + $0x7c] sm:$0xf]
  %v47 = vld [vmem:[%s0 + $0x80] sm:$0xf]
  %v48 = vld [vmem:[%s0 + $0x84] sm:$0xf]
  %v49 = vld [vmem:[%s0 + $0x88] sm:$0xf]
  %v50 = vld [vmem:[%s0 + $0x8c] sm:$0xf]
  %v51 = vld [vmem:[%s0 + $0x90] sm:$0xf]
  %v52 = vld [vmem:[%s0 + $0x94] sm:$0xf]
  %v53 = vld [vmem:[%s0 + $0x98] sm:$0xf]
  %v54 = vld [vmem:[%s0 + $0x9c] sm:$0xf]
  %v55 = vld [vmem:[%s0 + $0xa0] sm:$0xf]
  %v56 = vld [vmem:[%s0 + $0xa4] sm:$0xf]
  %v57 = vld [vmem:[%s0 + $0xa8] sm:$0xf]
  %v58 = vld [vmem:[%s0 + $0xac] sm:$0xf]
  %v59 = vld [vmem:[%s0 + $0xb0] sm:$0xf]
  %v60 = vld [vmem:[%s0 + $0xb4] sm:$0xf]
  %v61 = vld [vmem:[%s0 + $0xb8] sm:$0xf]
  %v62 = vld [vmem:[%s0 + $0xbc] sm:$0xf]
  %v63 = vld [vmem:[%s0 + $0xc0] sm:$0xf]
  %v64 = vld [vmem:[%s0 + $0xc4] sm:$0xf]
  %v65 = vld [vmem:[%s0 + $0xc8] sm:$0xf]
  %v66 = vld [vmem:[%s0 + $0xcc] sm:$0xf]
  %v67 = vld [vmem:[%s0 + $0xd0] sm:$0xf]
  %v68 = vld [vmem:[%s0 + $0xd4] sm:$0xf]
  %v69 = vld [vmem:[%s0 + $0xd8] sm:$0xf]
  %v70 = vld [vmem:[%s0 + $0xdc] sm:$0xf]
  %v71 = vld [vmem:[%s0 + $0xe0] sm:$0xf]
  %v72 = vld [vmem:[%s0 + $0xe4] sm:$0xf]
  %v73 = vld [vmem:[%s0 + $0xe8] sm:$0xf]
  %v74 = vld [vmem:[%s0 + $0xec] sm:$0xf]
  %v75 = vld [vmem:[%s0 + $0xf0] sm:$0xf]
  %v76 = vld [vmem:[%s0 + $0xf4] sm:$0xf]
  %v77 = vld [vmem:[%s0 + $0xf8] sm:$0xf]
  %v78 = vld [vmem:[%s0 + $0xfc] sm:$0xf]
  %v79 = vld [vmem:[%s0 + $0x100] sm:$0xf]
  %v80 = vld [vmem:[%s0 + $0x104] sm:$0xf]
  %v81 = vld [vmem:[%s0 + $0x108] sm:$0xf]
  %v82 = vld [vmem:[%s0 + $0x10c] sm:$0xf]
  %v83 = vld [vmem:[%s0 + $0x110] sm:$0xf]
  %v84 = vld [vmem:[%s0 + $0x114] sm:$0xf]
  %v85 = vld [vmem:[%s0 + $0x118] sm:$0xf]
  %v86 = vld [vmem:[%s0 + $0x11c] sm:$0xf]
  %v87 = vld [vmem:[%s0 + $0x120] sm:$0xf]
  %v88 = vld [vmem:[%s0 + $0x124] sm:$0xf]
  %v89 = vld [vmem:[%s0 + $0x128] sm:$0xf]
  %v90 = vld [vmem:[%s0 + $0x12c] sm:$0xf]
  %v91 = vld [vmem:[%s0 + $0x130] sm:$0xf]
  %v92 = vld [vmem:[%s0 + $0x134] sm:$0xf]
  %v93 = vld [vmem:[%s0 + $0x138] sm:$0xf]
  %v94 = vld [vmem:[%s0 + $0x13c] sm:$0xf]
  %v95 = vld [vmem:[%s0 + $0x140] sm:$0xf]
  %v96 = vld [vmem:[%s0 + $0x144] sm:$0xf]
  %v97 = vld [vmem:[%s0 + $0x148] sm:$0xf]
  %v98 = vld [vmem:[%s0 + $0x14c] sm:$0xf]
  %v99 = vld [vmem:[%s0 + $0x150] sm:$0xf]
  %v100 = vld [vmem:[%s0 + $0x154] sm:$0xf]
  %v101 = vld [vmem:[%s0 + $0x158] sm:$0xf]
  %v102 = vld [vmem:[%s0 + $0x15c] sm:$0xf]
  %v103 = vld [vmem:[%s0 + $0x160] sm:$0xf]
  %v104 = vld [vmem:[%s0 + $0x164] sm:$0xf]
  %v105 = vld [vmem:[%s0 + $0x168] sm:$0xf]
  %v106 = vld [vmem:[%s0 + $0x16c] sm:$0xf]
  %v107 = vld [vmem:[%s0 + $0x170] sm:$0xf]
  %v108 = vld [vmem:[%s0 + $0x174] sm:$0xf]
  %v109 = vld [vmem:[%s0 + $0x178] sm:$0xf]
  %v110 = vld [vmem:[%s0 + $0x17c] sm:$0xf]
  %v111 = vld [vmem:[%s0 + $0x180] sm:$0xf]
  %v112 = vld [vmem:[%s0 + $0x184] sm:$0xf]
  %v113 = vld [vmem:[%s0 + $0x188] sm:$0xf]
  %v114 = vld [vmem:[%s0 + $0x18c] sm:$0xf]
  %v115 = vld [vmem:[%s0 + $0x190] sm:$0xf]
  %v116 = vld [vmem:[%s0 + $0x194] sm:$0xf]
  %v117 = vld [vmem:[%s0 + $0x198] sm:$0xf]
  %v118 = vld [vmem:[%s0 + $0x19c] sm:$0xf]
  %v119 = vld [vmem:[%s0 + $0x1a0] sm:$0xf]
  %v120 = vld [vmem:[%s0 + $0x1a4] sm:$0xf]
  %v121 = vld [vmem:[%s0 + $0x1a8] sm:$0xf]
  %v122 = vld [vmem:[%s0 + $0x1ac] sm:$0xf]
  %v123 = vld [vmem:[%s0 + $0x1b0] sm:$0xf]
  %v124 = vld [vmem:[%s0 + $0x1b4] sm:$0xf]
  %v125 = vld [vmem:[%s0 + $0x1b8] sm:$0xf]
  %v126 = vld [vmem:[%s0 + $0x1bc] sm:$0xf]
  %v127 = vld [vmem:[%s0 + $0x1c0] sm:$0xf]
  %v128 = vld [vmem:[%s0 + $0x1c4] sm:$0xf]
  %v129 = vld [vmem:[%s0 + $0x1c8] sm:$0xf]
  %v130 = vld [vmem:[%s0 + $0x1cc] sm:$0xf]
  %v131 = vld [vmem:[%s0 + $0x1d0] sm:$0xf]
  %v132 = vld [vmem:[%s0 + $0x1d4] sm:$0xf]
  %v133 = vld [vmem:[%s0 + $0x1d8] sm:$0xf]
  %v134 = vld [vmem:[%s0 + $0x1dc] sm:$0xf]
  %v135 = vld [vmem:[%s0 + $0x1e0] sm:$0xf]
  %v136 = vld [vmem:[%s0 + $0x1e4] sm:$0xf]
  %v137 = vld [vmem:[%s0 + $0x1e8] sm:$0xf]
  %v138 = vld [vmem:[%s0 + $0x1ec] sm:$0xf]
  %v139 = vld [vmem:[%s0 + $0x1f0] sm:$0xf]
  %v140 = vld [vmem:[%s0 + $0x1f4] sm:$0xf]
  %v141 = vld [vmem:[%s0 + $0x1f8] sm:$0xf]
  %v142 = vld [vmem:[%s0 + $0x1fc] sm:$0xf]
  %v143 = vld [vmem:[%s0 + $0x200] sm:$0xf]
  %v144 = vld [vmem:[%s0 + $0x204] sm:$0xf]
  %v145 = vld [vmem:[%s0 + $0x208] sm:$0xf]
  %v146 = vld [vmem:[%s0 + $0x20c] sm:$0xf]
  %v147 = vld [vmem:[%s0 + $0x210] sm:$0xf]
  %v148 = vld [vmem:[%s0 + $0x214] sm:$0xf]
  %v149 = vld [vmem:[%s0 + $0x218] sm:$0xf]
  %v150 = vld [vmem:[%s0 + $0x21c] sm:$0xf]
  %v151 = vld [vmem:[%s0 + $0x220] sm:$0xf]
  %v152 = vld [vmem:[%s0 + $0x224] sm:$0xf]
  %v153 = vld [vmem:[%s0 + $0x228] sm:$0xf]
  %v154 = vld [vmem:[%s0 + $0x22c] sm:$0xf]
  %v155 = vld [vmem:[%s0 + $0x230] sm:$0xf]
  %v156 = vld [vmem:[%s0 + $0x234] sm:$0xf]
  %v157 = vld [vmem:[%s0 + $0x238] sm:$0xf]
  %v158 = vld [vmem:[%s0 + $0x23c] sm:$0xf]
  %v159 = vld [vmem:[%s0 + $0x240] sm:$0xf]
  %v160 = vld [vmem:[%s0 + $0x244] sm:$0xf]
  %v161 = vld [vmem:[%s0 + $0x248] sm:$0xf]
  %v162 = vld [vmem:[%s0 + $0x24c] sm:$0xf]
  %v163 = vld [vmem:[%s0 + $0x250] sm:$0xf]
  %v164 = vld [vmem:[%s0 + $0x254] sm:$0xf]
  %v165 = vld [vmem:[%s0 + $0x258] sm:$0xf]
  %v166 = vld [vmem:[%s0 + $0x25c] sm:$0xf]
  %v167 = vld [vmem:[%s0 + $0x260] sm:$0xf]
  %v168 = vld [vmem:[%s0 + $0x264] sm:$0xf]
  %v169 = vld [vmem:[%s0 + $0x268] sm:$0xf]
  %v170 = vld [vmem:[%s0 + $0x26c] sm:$0xf]
  %v171 = vld [vmem:[%s0 + $0x270] sm:$0xf]
  %v172 = vld [vmem:[%s0 + $0x274] sm:$0xf]
  %v173 = vld [vmem:[%s0 + $0x278] sm:$0xf]
  %v174 = vld [vmem:[%s0 + $0x27c] sm:$0xf]
  %v175 = vld [vmem:[%s0 + $0x280] sm:$0xf]
  %v176 = vld [vmem:[%s0 + $0x284] sm:$0xf]
  %v177 = vld [vmem:[%s0 + $0x288] sm:$0xf]
  %v178 = vld [vmem:[%s0 + $0x28c] sm:$0xf]
  %v179 = vld [vmem:[%s0 + $0x290] sm:$0xf]
  %v180 = vld [vmem:[%s0 + $0x294] sm:$0xf]
  %v181 = vld [vmem:[%s0 + $0x298] sm:$0xf]
  %v182 = vld [vmem:[%s0 + $0x29c] sm:$0xf]
  %v183 = vld [vmem:[%s0 + $0x2a0] sm:$0xf]
  %v184 = vld [vmem:[%s1] sm:$0xf]
  %v185 = vld [vmem:[%s1 + $0x4] sm:$0xf]
  %v186 = vld [vmem:[%s1 + $0x8] sm:$0xf]
  %v187 = vld [vmem:[%s1 + $0xc] sm:$0xf]
  %v188 = vld [vmem:[%s1 + $0x10] sm:$0xf]
  %v189 = vld [vmem:[%s1 + $0x14] sm:$0xf]
  %v190 = vld [vmem:[%s1 + $0x18] sm:$0xf]
  %v191 = vld [vmem:[%s1 + $0x1c] sm:$0xf]
  %v192 = vld [vmem:[%s1 + $0x20] sm:$0xf]
  %v193 = vld [vmem:[%s1 + $0x24] sm:$0xf]
  %v194 = vld [vmem:[%s1 + $0x28] sm:$0xf]
  %v195 = vld [vmem:[%s1 + $0x2c] sm:$0xf]
  %v196 = vld [vmem:[%s1 + $0x30] sm:$0xf]
  %v197 = vld [vmem:[%s1 + $0x34] sm:$0xf]
  %v198 = vld [vmem:[%s1 + $0x38] sm:$0xf]
  %v199 = vld [vmem:[%s1 + $0x3c] sm:$0xf]
  %v200 = vld [vmem:[%s2] sm:$0x1]
  %v202 = vlaneseq
  %v203 = vshrl.u32 %v202, 7
  %v204 = vsub.s32 0, %v203
  %v205 = vrot.slane %v200, %v204
  %v376 = vunpack.c.l.b16 %v15
  %v377 = vunpack.c.l.b16 %v16
  %v378 = vunpack.c.l.b16 %v17
  %v379 = vunpack.c.l.b16 %v18
  %v380 = vunpack.c.l.b16 %v19
  %v381 = vunpack.c.l.b16 %v20
  %v382 = vunpack.c.l.b16 %v21
  %v383 = vunpack.c.l.b16 %v22
  %v384 = vunpack.c.l.b16 %v23
  %v385 = vunpack.c.l.b16 %v24
  %v386 = vunpack.c.l.b16 %v25
  %v387 = vunpack.c.l.b16 %v26
  %v388 = vunpack.c.l.b16 %v27
  %v389 = vunpack.c.l.b16 %v28
  %v390 = vunpack.c.l.b16 %v29
  %v391 = vunpack.c.l.b16 %v30
  %v392 = vunpack.c.l.b16 %v31
  %v393 = vunpack.c.l.b16 %v32
  %v394 = vunpack.c.l.b16 %v33
  %v395 = vunpack.c.l.b16 %v34
  %v396 = vunpack.c.l.b16 %v35
  %v397 = vunpack.c.l.b16 %v36
  %v398 = vunpack.c.l.b16 %v37
  %v399 = vunpack.c.l.b16 %v38
  %v400 = vunpack.c.l.b16 %v39
  %v401 = vunpack.c.l.b16 %v40
  %v402 = vunpack.c.l.b16 %v41
  %v403 = vunpack.c.l.b16 %v42
  %v404 = vunpack.c.l.b16 %v43
  %v405 = vunpack.c.l.b16 %v44
  %v406 = vunpack.c.l.b16 %v45
  %v407 = vunpack.c.l.b16 %v46
  %v408 = vunpack.c.l.b16 %v47
  %v409 = vunpack.c.l.b16 %v48
  %v410 = vunpack.c.l.b16 %v49
  %v411 = vunpack.c.l.b16 %v50
  %v412 = vunpack.c.l.b16 %v51
  %v413 = vunpack.c.l.b16 %v52
  %v414 = vunpack.c.l.b16 %v53
  %v415 = vunpack.c.l.b16 %v54
  %v416 = vunpack.c.l.b16 %v55
  %v417 = vunpack.c.l.b16 %v56
  %v418 = vunpack.c.l.b16 %v57
  %v419 = vunpack.c.l.b16 %v58
  %v420 = vunpack.c.l.b16 %v59
  %v421 = vunpack.c.l.b16 %v60
  %v422 = vunpack.c.l.b16 %v61
  %v423 = vunpack.c.l.b16 %v62
  %v424 = vunpack.c.l.b16 %v63
  %v425 = vunpack.c.l.b16 %v64
  %v426 = vunpack.c.l.b16 %v65
  %v427 = vunpack.c.l.b16 %v66
  %v428 = vunpack.c.l.b16 %v67
  %v429 = vunpack.c.l.b16 %v68
  %v430 = vunpack.c.l.b16 %v69
  %v431 = vunpack.c.l.b16 %v70
  %v432 = vunpack.c.l.b16 %v71
  %v433 = vunpack.c.l.b16 %v72
  %v434 = vunpack.c.l.b16 %v73
  %v435 = vunpack.c.l.b16 %v74
  %v436 = vunpack.c.l.b16 %v75
  %v437 = vunpack.c.l.b16 %v76
  %v438 = vunpack.c.l.b16 %v77
  %v439 = vunpack.c.l.b16 %v78
  %v440 = vunpack.c.l.b16 %v79
  %v441 = vunpack.c.l.b16 %v80
  %v442 = vunpack.c.l.b16 %v81
  %v443 = vunpack.c.l.b16 %v82
  %v444 = vunpack.c.l.b16 %v83
  %v445 = vunpack.c.l.b16 %v84
  %v446 = vunpack.c.l.b16 %v85
  %v447 = vunpack.c.l.b16 %v86
  %v448 = vunpack.c.l.b16 %v87
  %v449 = vunpack.c.l.b16 %v88
  %v450 = vunpack.c.l.b16 %v89
  %v451 = vunpack.c.l.b16 %v90
  %v452 = vunpack.c.l.b16 %v91
  %v453 = vunpack.c.l.b16 %v92
  %v454 = vunpack.c.l.b16 %v93
  %v455 = vunpack.c.l.b16 %v94
  %v456 = vunpack.c.l.b16 %v95
  %v457 = vunpack.c.l.b16 %v96
  %v458 = vunpack.c.l.b16 %v97
  %v459 = vunpack.c.l.b16 %v98
  %v460 = vunpack.c.l.b16 %v99
  %v461 = vunpack.c.l.b16 %v100
  %v462 = vunpack.c.l.b16 %v101
  %v463 = vunpack.c.l.b16 %v102
  %v464 = vunpack.c.l.b16 %v103
  %v465 = vunpack.c.l.b16 %v104
  %v466 = vunpack.c.l.b16 %v105
  %v467 = vunpack.c.l.b16 %v106
  %v468 = vunpack.c.l.b16 %v107
  %v469 = vunpack.c.l.b16 %v108
  %v470 = vunpack.c.l.b16 %v109
  %v471 = vunpack.c.l.b16 %v110
  %v472 = vunpack.c.l.b16 %v111
  %v473 = vunpack.c.l.b16 %v112
  %v474 = vunpack.c.l.b16 %v113
  %v475 = vunpack.c.l.b16 %v114
  %v476 = vunpack.c.l.b16 %v115
  %v477 = vunpack.c.l.b16 %v116
  %v478 = vunpack.c.l.b16 %v117
  %v479 = vunpack.c.l.b16 %v118
  %v480 = vunpack.c.l.b16 %v119
  %v481 = vunpack.c.l.b16 %v120
  %v482 = vunpack.c.l.b16 %v121
  %v483 = vunpack.c.l.b16 %v122
  %v484 = vunpack.c.l.b16 %v123
  %v485 = vunpack.c.l.b16 %v124
  %v486 = vunpack.c.l.b16 %v125
  %v487 = vunpack.c.l.b16 %v126
  %v488 = vunpack.c.l.b16 %v127
  %v489 = vunpack.c.l.b16 %v128
  %v490 = vunpack.c.l.b16 %v129
  %v491 = vunpack.c.l.b16 %v130
  %v492 = vunpack.c.l.b16 %v131
  %v493 = vunpack.c.l.b16 %v132
  %v494 = vunpack.c.l.b16 %v133
  %v495 = vunpack.c.l.b16 %v134
  %v496 = vunpack.c.l.b16 %v135
  %v497 = vunpack.c.l.b16 %v136
  %v498 = vunpack.c.l.b16 %v137
  %v499 = vunpack.c.l.b16 %v138
  %v500 = vunpack.c.l.b16 %v139
  %v501 = vunpack.c.l.b16 %v140
  %v502 = vunpack.c.l.b16 %v141
  %v503 = vunpack.c.l.b16 %v142
  %v504 = vunpack.c.l.b16 %v143
  %v505 = vunpack.c.l.b16 %v144
  %v506 = vunpack.c.l.b16 %v145
  %v507 = vunpack.c.l.b16 %v146
  %v508 = vunpack.c.l.b16 %v147
  %v509 = vunpack.c.l.b16 %v148
  %v510 = vunpack.c.l.b16 %v149
  %v511 = vunpack.c.l.b16 %v150
  %v512 = vunpack.c.l.b16 %v151
  %v513 = vunpack.c.l.b16 %v152
  %v514 = vunpack.c.l.b16 %v153
  %v515 = vunpack.c.l.b16 %v154
  %v516 = vunpack.c.l.b16 %v155
  %v517 = vunpack.c.l.b16 %v156
  %v518 = vunpack.c.l.b16 %v157
  %v519 = vunpack.c.l.b16 %v158
  %v520 = vunpack.c.l.b16 %v159
  %v521 = vunpack.c.l.b16 %v160
  %v522 = vunpack.c.l.b16 %v161
  %v523 = vunpack.c.l.b16 %v162
  %v524 = vunpack.c.l.b16 %v163
  %v525 = vunpack.c.l.b16 %v164
  %v526 = vunpack.c.l.b16 %v165
  %v527 = vunpack.c.l.b16 %v166
  %v528 = vunpack.c.l.b16 %v167
  %v529 = vunpack.c.l.b16 %v168
  %v530 = vunpack.c.l.b16 %v169
  %v531 = vunpack.c.l.b16 %v170
  %v532 = vunpack.c.l.b16 %v171
  %v533 = vunpack.c.l.b16 %v172
  %v534 = vunpack.c.l.b16 %v173
  %v535 = vunpack.c.l.b16 %v174
  %v536 = vunpack.c.l.b16 %v175
  %v537 = vunpack.c.l.b16 %v176
  %v538 = vunpack.c.l.b16 %v177
  %v539 = vunpack.c.l.b16 %v178
  %v540 = vunpack.c.l.b16 %v179
  %v541 = vunpack.c.l.b16 %v180
  %v542 = vunpack.c.l.b16 %v181
  %v543 = vunpack.c.l.b16 %v182
  %v544 = vunpack.c.l.b16 %v183
  %v545 = vpack.c.b16 %v377, %v376
  %v546 = vpack.c.b16 %v379, %v378
  %v547 = vpack.c.b16 %v381, %v380
  %v548 = vpack.c.b16 %v383, %v382
  %v549 = vpack.c.b16 %v385, %v384
  %v550 = vpack.c.b16 %v387, %v386
  %v551 = vpack.c.b16 %v389, %v388
  %v552 = vpack.c.b16 %v391, %v390
  %v553 = vpack.c.b16 %v393, %v392
  %v554 = vpack.c.b16 %v395, %v394
  %v555 = vpack.c.b16 %v397, %v396
  %v556 = vpack.c.b16 %v399, %v398
  %v557 = vpack.c.b16 %v401, %v400
  %v558 = vpack.c.b16 %v403, %v402
  %v559 = vpack.c.b16 %v405, %v404
  %v560 = vpack.c.b16 %v407, %v406
  %v561 = vpack.c.b16 %v409, %v408
  %v562 = vpack.c.b16 %v411, %v410
  %v563 = vpack.c.b16 %v413, %v412
  %v564 = vpack.c.b16 %v415, %v414
  %v565 = vpack.c.b16 %v417, %v416
  %v566 = vpack.c.b16 %v419, %v418
  %v567 = vpack.c.b16 %v421, %v420
  %v568 = vpack.c.b16 %v423, %v422
  %v569 = vpack.c.b16 %v425, %v424
  %v570 = vpack.c.b16 %v427, %v426
  %v571 = vpack.c.b16 %v429, %v428
  %v572 = vpack.c.b16 %v431, %v430
  %v573 = vpack.c.b16 %v433, %v432
  %v574 = vpack.c.b16 %v435, %v434
  %v575 = vpack.c.b16 %v437, %v436
  %v576 = vpack.c.b16 %v439, %v438
  %v577 = vpack.c.b16 %v441, %v440
  %v578 = vpack.c.b16 %v443, %v442
  %v579 = vpack.c.b16 %v445, %v444
  %v580 = vpack.c.b16 %v447, %v446
  %v581 = vpack.c.b16 %v449, %v448
  %v582 = vpack.c.b16 %v451, %v450
  %v583 = vpack.c.b16 %v453, %v452
  %v584 = vpack.c.b16 %v455, %v454
  %v585 = vpack.c.b16 %v457, %v456
  %v586 = vpack.c.b16 %v459, %v458
  %v587 = vpack.c.b16 %v461, %v460
  %v588 = vpack.c.b16 %v463, %v462
  %v589 = vpack.c.b16 %v465, %v464
  %v590 = vpack.c.b16 %v467, %v466
  %v591 = vpack.c.b16 %v469, %v468
  %v592 = vpack.c.b16 %v471, %v470
  %v593 = vpack.c.b16 %v473, %v472
  %v594 = vpack.c.b16 %v475, %v474
  %v595 = vpack.c.b16 %v477, %v476
  %v596 = vpack.c.b16 %v479, %v478
  %v597 = vpack.c.b16 %v481, %v480
  %v598 = vpack.c.b16 %v483, %v482
  %v599 = vpack.c.b16 %v485, %v484
  %v600 = vpack.c.b16 %v487, %v486
  %v601 = vpack.c.b16 %v489, %v488
  %v602 = vpack.c.b16 %v491, %v490
  %v603 = vpack.c.b16 %v493, %v492
  %v604 = vpack.c.b16 %v495, %v494
  %v605 = vpack.c.b16 %v497, %v496
  %v606 = vpack.c.b16 %v499, %v498
  %v607 = vpack.c.b16 %v501, %v500
  %v608 = vpack.c.b16 %v503, %v502
  %v609 = vpack.c.b16 %v505, %v504
  %v610 = vpack.c.b16 %v507, %v506
  %v611 = vpack.c.b16 %v509, %v508
  %v612 = vpack.c.b16 %v511, %v510
  %v613 = vpack.c.b16 %v513, %v512
  %v614 = vpack.c.b16 %v515, %v514
  %v615 = vpack.c.b16 %v517, %v516
  %v616 = vpack.c.b16 %v519, %v518
  %v617 = vpack.c.b16 %v521, %v520
  %v618 = vpack.c.b16 %v523, %v522
  %v619 = vpack.c.b16 %v525, %v524
  %v620 = vpack.c.b16 %v527, %v526
  %v621 = vpack.c.b16 %v529, %v528
  %v622 = vpack.c.b16 %v531, %v530
  %v623 = vpack.c.b16 %v533, %v532
  %v624 = vpack.c.b16 %v535, %v534
  %v625 = vpack.c.b16 %v537, %v536
  %v626 = vpack.c.b16 %v539, %v538
  %v627 = vpack.c.b16 %v541, %v540
  %v628 = vpack.c.b16 %v543, %v542
  %v629 = vpack.c.b16 %v544, %v544
  %v731 = vunpack.c.l.b16 %v184
  %v732 = vunpack.c.l.b16 %v185
  %v733 = vunpack.c.l.b16 %v186
  %v734 = vunpack.c.l.b16 %v187
  %v735 = vunpack.c.l.b16 %v188
  %v736 = vunpack.c.l.b16 %v189
  %v737 = vunpack.c.l.b16 %v190
  %v738 = vunpack.c.l.b16 %v191
  %v739 = vunpack.c.l.b16 %v192
  %v740 = vunpack.c.l.b16 %v193
  %v741 = vunpack.c.l.b16 %v194
  %v742 = vunpack.c.l.b16 %v195
  %v743 = vunpack.c.l.b16 %v196
  %v744 = vunpack.c.l.b16 %v197
  %v745 = vunpack.c.l.b16 %v198
  %v746 = vunpack.c.l.b16 %v199
  %v747 = vpack.c.b16 %v732, %v731
  %v748 = vpack.c.b16 %v734, %v733
  %v749 = vpack.c.b16 %v736, %v735
  %v750 = vpack.c.b16 %v738, %v737
  %v751 = vpack.c.b16 %v740, %v739
  %v752 = vpack.c.b16 %v742, %v741
  %v753 = vpack.c.b16 %v744, %v743
  %v754 = vpack.c.b16 %v746, %v745
  %763 = vmatprep.subr.bf16.mxu0 0
  %764 = vmatpush1.bf16.msra.mxu0 %v754
  %765 = vmatprep.subr.bf16.mxu0 0
  %766 = vmatpush1.bf16.msra.mxu0 %v753
  %767 = vmatprep.subr.bf16.mxu0 0
  %768 = vmatpush1.bf16.msra.mxu0 %v752
  %769 = vmatprep.subr.bf16.mxu0 0
  %770 = vmatpush1.bf16.msra.mxu0 %v751
  %771 = vmatprep.subr.bf16.mxu0 0
  %772 = vmatpush1.bf16.msra.mxu0 %v750
  %773 = vmatprep.subr.bf16.mxu0 0
  %774 = vmatpush1.bf16.msra.mxu0 %v749
  %775 = vmatprep.subr.bf16.mxu0 0
  %776 = vmatpush1.bf16.msra.mxu0 %v748
  %777 = vmatprep.subr.bf16.mxu0 0
  %778 = vmatpush1.bf16.msra.mxu0 %v747
  %779 = vmatprep.subr.bf16.mxu0 0
  %780 = vmatpush2.bf16.msra.mxu0 0
  %781 = vmatprep.subr.bf16.mxu0 0
  %782 = vmatpush2.bf16.msra.mxu0 0
  %783 = vmatprep.subr.bf16.mxu0 0
  %784 = vmatpush2.bf16.msra.mxu0 0
  %785 = vmatprep.subr.bf16.mxu0 0
  %786 = vmatpush2.bf16.msra.mxu0 0
  %787 = vmatprep.subr.bf16.mxu0 0
  %788 = vmatpush2.bf16.msra.mxu0 0
  %789 = vmatprep.subr.bf16.mxu0 0
  %790 = vmatpush2.bf16.msra.mxu0 0
  %791 = vmatprep.subr.bf16.mxu0 0
  %792 = vmatpush2.bf16.msra.mxu0 0
  %793 = vmatprep.subr.bf16.mxu0 0
  %794 = vmatpush2.bf16.msra.mxu0 0
  %795 = vmatprep.mubr.bf16.mxu0 0
  %796 = vmatmul.mubr.bf16.gmra.mxu0 %v545
  %v797 = vpop.f32.mrf.mxu0
  %v798 = vadd.f32 %v205, %v797
  %v799 = vpop.f32.mrf.mxu0
  %v800 = vpop.f32.mrf.mxu0
  %v801 = vadd.f32 %v205, %v800
  %v802 = vpop.f32.mrf.mxu0
  %803 = vmatprep.mubr.bf16.mxu0 0
  %804 = vmatmul.mubr.bf16.gmra.mxu0 %v546
  %v805 = vpop.f32.mrf.mxu0
  %v806 = vadd.f32 %v205, %v805
  %v807 = vpop.f32.mrf.mxu0
  %v808 = vpop.f32.mrf.mxu0
  %v809 = vadd.f32 %v205, %v808
  %v810 = vpop.f32.mrf.mxu0
  %811 = vmatprep.mubr.bf16.mxu0 0
  %812 = vmatmul.mubr.bf16.gmra.mxu0 %v547
  %v813 = vpop.f32.mrf.mxu0
  %v814 = vadd.f32 %v205, %v813
  %v815 = vpop.f32.mrf.mxu0
  %v816 = vpop.f32.mrf.mxu0
  %v817 = vadd.f32 %v205, %v816
  %v818 = vpop.f32.mrf.mxu0
  %819 = vmatprep.mubr.bf16.mxu0 0
  %820 = vmatmul.mubr.bf16.gmra.mxu0 %v548
  %v821 = vpop.f32.mrf.mxu0
  %v822 = vadd.f32 %v205, %v821
  %v823 = vpop.f32.mrf.mxu0
  %v824 = vpop.f32.mrf.mxu0
  %v825 = vadd.f32 %v205, %v824
  %v826 = vpop.f32.mrf.mxu0
  %827 = vmatprep.mubr.bf16.mxu0 0
  %828 = vmatmul.mubr.bf16.gmra.mxu0 %v549
  %v829 = vpop.f32.mrf.mxu0
  %v830 = vadd.f32 %v205, %v829
  %v831 = vpop.f32.mrf.mxu0
  %v832 = vpop.f32.mrf.mxu0
  %v833 = vadd.f32 %v205, %v832
  %v834 = vpop.f32.mrf.mxu0
  %835 = vmatprep.mubr.bf16.mxu0 0
  %836 = vmatmul.mubr.bf16.gmra.mxu0 %v550
  %v837 = vpop.f32.mrf.mxu0
  %v838 = vadd.f32 %v205, %v837
  %v839 = vpop.f32.mrf.mxu0
  %v840 = vpop.f32.mrf.mxu0
  %v841 = vadd.f32 %v205, %v840
  %v842 = vpop.f32.mrf.mxu0
  %843 = vmatprep.mubr.bf16.mxu0 0
  %844 = vmatmul.mubr.bf16.gmra.mxu0 %v551
  %v845 = vpop.f32.mrf.mxu0
  %v846 = vadd.f32 %v205, %v845
  %v847 = vpop.f32.mrf.mxu0
  %v848 = vpop.f32.mrf.mxu0
  %v849 = vadd.f32 %v205, %v848
  %v850 = vpop.f32.mrf.mxu0
  %851 = vmatprep.mubr.bf16.mxu0 0
  %852 = vmatmul.mubr.bf16.gmra.mxu0 %v552
  %v853 = vpop.f32.mrf.mxu0
  %v854 = vadd.f32 %v205, %v853
  %v855 = vpop.f32.mrf.mxu0
  %v856 = vpop.f32.mrf.mxu0
  %v857 = vadd.f32 %v205, %v856
  %v858 = vpop.f32.mrf.mxu0
  %859 = vmatprep.mubr.bf16.mxu0 0
  %860 = vmatmul.mubr.bf16.gmra.mxu0 %v553
  %v861 = vpop.f32.mrf.mxu0
  %v862 = vadd.f32 %v205, %v861
  %v863 = vpop.f32.mrf.mxu0
  %v864 = vpop.f32.mrf.mxu0
  %v865 = vadd.f32 %v205, %v864
  %v866 = vpop.f32.mrf.mxu0
  %867 = vmatprep.mubr.bf16.mxu0 0
  %868 = vmatmul.mubr.bf16.gmra.mxu0 %v554
  %v869 = vpop.f32.mrf.mxu0
  %v870 = vadd.f32 %v205, %v869
  %v871 = vpop.f32.mrf.mxu0
  %v872 = vpop.f32.mrf.mxu0
  %v873 = vadd.f32 %v205, %v872
  %v874 = vpop.f32.mrf.mxu0
  %875 = vmatprep.mubr.bf16.mxu0 0
  %876 = vmatmul.mubr.bf16.gmra.mxu0 %v555
  %v877 = vpop.f32.mrf.mxu0
  %v878 = vadd.f32 %v205, %v877
  %v879 = vpop.f32.mrf.mxu0
  %v880 = vpop.f32.mrf.mxu0
  %v881 = vadd.f32 %v205, %v880
  %v882 = vpop.f32.mrf.mxu0
  %883 = vmatprep.mubr.bf16.mxu0 0
  %884 = vmatmul.mubr.bf16.gmra.mxu0 %v556
  %v885 = vpop.f32.mrf.mxu0
  %v886 = vadd.f32 %v205, %v885
  %v887 = vpop.f32.mrf.mxu0
  %v888 = vpop.f32.mrf.mxu0
  %v889 = vadd.f32 %v205, %v888
  %v890 = vpop.f32.mrf.mxu0
  %891 = vmatprep.mubr.bf16.mxu0 0
  %892 = vmatmul.mubr.bf16.gmra.mxu0 %v557
  %v893 = vpop.f32.mrf.mxu0
  %v894 = vadd.f32 %v205, %v893
  %v895 = vpop.f32.mrf.mxu0
  %v896 = vpop.f32.mrf.mxu0
  %v897 = vadd.f32 %v205, %v896
  %v898 = vpop.f32.mrf.mxu0
  %899 = vmatprep.mubr.bf16.mxu0 0
  %900 = vmatmul.mubr.bf16.gmra.mxu0 %v558
  %v901 = vpop.f32.mrf.mxu0
  %v902 = vadd.f32 %v205, %v901
  %v903 = vpop.f32.mrf.mxu0
  %v904 = vpop.f32.mrf.mxu0
  %v905 = vadd.f32 %v205, %v904
  %v906 = vpop.f32.mrf.mxu0
  %907 = vmatprep.mubr.bf16.mxu0 0
  %908 = vmatmul.mubr.bf16.gmra.mxu0 %v559
  %v909 = vpop.f32.mrf.mxu0
  %v910 = vadd.f32 %v205, %v909
  %v911 = vpop.f32.mrf.mxu0
  %v912 = vpop.f32.mrf.mxu0
  %v913 = vadd.f32 %v205, %v912
  %v914 = vpop.f32.mrf.mxu0
  %915 = vmatprep.mubr.bf16.mxu0 0
  %916 = vmatmul.mubr.bf16.gmra.mxu0 %v560
  %v917 = vpop.f32.mrf.mxu0
  %v918 = vadd.f32 %v205, %v917
  %v919 = vpop.f32.mrf.mxu0
  %v920 = vpop.f32.mrf.mxu0
  %v921 = vadd.f32 %v205, %v920
  %v922 = vpop.f32.mrf.mxu0
  %923 = vmatprep.mubr.bf16.mxu0 0
  %924 = vmatmul.mubr.bf16.gmra.mxu0 %v561
  %v925 = vpop.f32.mrf.mxu0
  %v926 = vadd.f32 %v205, %v925
  %v927 = vpop.f32.mrf.mxu0
  %v928 = vpop.f32.mrf.mxu0
  %v929 = vadd.f32 %v205, %v928
  %v930 = vpop.f32.mrf.mxu0
  %931 = vmatprep.mubr.bf16.mxu0 0
  %932 = vmatmul.mubr.bf16.gmra.mxu0 %v562
  %v933 = vpop.f32.mrf.mxu0
  %v934 = vadd.f32 %v205, %v933
  %v935 = vpop.f32.mrf.mxu0
  %v936 = vpop.f32.mrf.mxu0
  %v937 = vadd.f32 %v205, %v936
  %v938 = vpop.f32.mrf.mxu0
  %939 = vmatprep.mubr.bf16.mxu0 0
  %940 = vmatmul.mubr.bf16.gmra.mxu0 %v563
  %v941 = vpop.f32.mrf.mxu0
  %v942 = vadd.f32 %v205, %v941
  %v943 = vpop.f32.mrf.mxu0
  %v944 = vpop.f32.mrf.mxu0
  %v945 = vadd.f32 %v205, %v944
  %v946 = vpop.f32.mrf.mxu0
  %947 = vmatprep.mubr.bf16.mxu0 0
  %948 = vmatmul.mubr.bf16.gmra.mxu0 %v564
  %v949 = vpop.f32.mrf.mxu0
  %v950 = vadd.f32 %v205, %v949
  %v951 = vpop.f32.mrf.mxu0
  %v952 = vpop.f32.mrf.mxu0
  %v953 = vadd.f32 %v205, %v952
  %v954 = vpop.f32.mrf.mxu0
  %955 = vmatprep.mubr.bf16.mxu0 0
  %956 = vmatmul.mubr.bf16.gmra.mxu0 %v565
  %v957 = vpop.f32.mrf.mxu0
  %v958 = vadd.f32 %v205, %v957
  %v959 = vpop.f32.mrf.mxu0
  %v960 = vpop.f32.mrf.mxu0
  %v961 = vadd.f32 %v205, %v960
  %v962 = vpop.f32.mrf.mxu0
  %963 = vmatprep.mubr.bf16.mxu0 0
  %964 = vmatmul.mubr.bf16.gmra.mxu0 %v566
  %v965 = vpop.f32.mrf.mxu0
  %v966 = vadd.f32 %v205, %v965
  %v967 = vpop.f32.mrf.mxu0
  %v968 = vpop.f32.mrf.mxu0
  %v969 = vadd.f32 %v205, %v968
  %v970 = vpop.f32.mrf.mxu0
  %971 = vmatprep.mubr.bf16.mxu0 0
  %972 = vmatmul.mubr.bf16.gmra.mxu0 %v567
  %v973 = vpop.f32.mrf.mxu0
  %v974 = vadd.f32 %v205, %v973
  %v975 = vpop.f32.mrf.mxu0
  %v976 = vpop.f32.mrf.mxu0
  %v977 = vadd.f32 %v205, %v976
  %v978 = vpop.f32.mrf.mxu0
  %979 = vmatprep.mubr.bf16.mxu0 0
  %980 = vmatmul.mubr.bf16.gmra.mxu0 %v568
  %v981 = vpop.f32.mrf.mxu0
  %v982 = vadd.f32 %v205, %v981
  %v983 = vpop.f32.mrf.mxu0
  %v984 = vpop.f32.mrf.mxu0
  %v985 = vadd.f32 %v205, %v984
  %v986 = vpop.f32.mrf.mxu0
  %987 = vmatprep.mubr.bf16.mxu0 0
  %988 = vmatmul.mubr.bf16.gmra.mxu0 %v569
  %v989 = vpop.f32.mrf.mxu0
  %v990 = vadd.f32 %v205, %v989
  %v991 = vpop.f32.mrf.mxu0
  %v992 = vpop.f32.mrf.mxu0
  %v993 = vadd.f32 %v205, %v992
  %v994 = vpop.f32.mrf.mxu0
  %995 = vmatprep.mubr.bf16.mxu0 0
  %996 = vmatmul.mubr.bf16.gmra.mxu0 %v570
  %v997 = vpop.f32.mrf.mxu0
  %v998 = vadd.f32 %v205, %v997
  %v999 = vpop.f32.mrf.mxu0
  %v1000 = vpop.f32.mrf.mxu0
  %v1001 = vadd.f32 %v205, %v1000
  %v1002 = vpop.f32.mrf.mxu0
  %1003 = vmatprep.mubr.bf16.mxu0 0
  %1004 = vmatmul.mubr.bf16.gmra.mxu0 %v571
  %v1005 = vpop.f32.mrf.mxu0
  %v1006 = vadd.f32 %v205, %v1005
  %v1007 = vpop.f32.mrf.mxu0
  %v1008 = vpop.f32.mrf.mxu0
  %v1009 = vadd.f32 %v205, %v1008
  %v1010 = vpop.f32.mrf.mxu0
  %1011 = vmatprep.mubr.bf16.mxu0 0
  %1012 = vmatmul.mubr.bf16.gmra.mxu0 %v572
  %v1013 = vpop.f32.mrf.mxu0
  %v1014 = vadd.f32 %v205, %v1013
  %v1015 = vpop.f32.mrf.mxu0
  %v1016 = vpop.f32.mrf.mxu0
  %v1017 = vadd.f32 %v205, %v1016
  %v1018 = vpop.f32.mrf.mxu0
  %1019 = vmatprep.mubr.bf16.mxu0 0
  %1020 = vmatmul.mubr.bf16.gmra.mxu0 %v573
  %v1021 = vpop.f32.mrf.mxu0
  %v1022 = vadd.f32 %v205, %v1021
  %v1023 = vpop.f32.mrf.mxu0
  %v1024 = vpop.f32.mrf.mxu0
  %v1025 = vadd.f32 %v205, %v1024
  %v1026 = vpop.f32.mrf.mxu0
  %1027 = vmatprep.mubr.bf16.mxu0 0
  %1028 = vmatmul.mubr.bf16.gmra.mxu0 %v574
  %v1029 = vpop.f32.mrf.mxu0
  %v1030 = vadd.f32 %v205, %v1029
  %v1031 = vpop.f32.mrf.mxu0
  %v1032 = vpop.f32.mrf.mxu0
  %v1033 = vadd.f32 %v205, %v1032
  %v1034 = vpop.f32.mrf.mxu0
  %1035 = vmatprep.mubr.bf16.mxu0 0
  %1036 = vmatmul.mubr.bf16.gmra.mxu0 %v575
  %v1037 = vpop.f32.mrf.mxu0
  %v1038 = vadd.f32 %v205, %v1037
  %v1039 = vpop.f32.mrf.mxu0
  %v1040 = vpop.f32.mrf.mxu0
  %v1041 = vadd.f32 %v205, %v1040
  %v1042 = vpop.f32.mrf.mxu0
  %1043 = vmatprep.mubr.bf16.mxu0 0
  %1044 = vmatmul.mubr.bf16.gmra.mxu0 %v576
  %v1045 = vpop.f32.mrf.mxu0
  %v1046 = vadd.f32 %v205, %v1045
  %v1047 = vpop.f32.mrf.mxu0
  %v1048 = vpop.f32.mrf.mxu0
  %v1049 = vadd.f32 %v205, %v1048
  %v1050 = vpop.f32.mrf.mxu0
  %1051 = vmatprep.mubr.bf16.mxu0 0
  %1052 = vmatmul.mubr.bf16.gmra.mxu0 %v577
  %v1053 = vpop.f32.mrf.mxu0
  %v1054 = vadd.f32 %v205, %v1053
  %v1055 = vpop.f32.mrf.mxu0
  %v1056 = vpop.f32.mrf.mxu0
  %v1057 = vadd.f32 %v205, %v1056
  %v1058 = vpop.f32.mrf.mxu0
  %1059 = vmatprep.mubr.bf16.mxu0 0
  %1060 = vmatmul.mubr.bf16.gmra.mxu0 %v578
  %v1061 = vpop.f32.mrf.mxu0
  %v1062 = vadd.f32 %v205, %v1061
  %v1063 = vpop.f32.mrf.mxu0
  %v1064 = vpop.f32.mrf.mxu0
  %v1065 = vadd.f32 %v205, %v1064
  %v1066 = vpop.f32.mrf.mxu0
  %1067 = vmatprep.mubr.bf16.mxu0 0
  %1068 = vmatmul.mubr.bf16.gmra.mxu0 %v579
  %v1069 = vpop.f32.mrf.mxu0
  %v1070 = vadd.f32 %v205, %v1069
  %v1071 = vpop.f32.mrf.mxu0
  %v1072 = vpop.f32.mrf.mxu0
  %v1073 = vadd.f32 %v205, %v1072
  %v1074 = vpop.f32.mrf.mxu0
  %1075 = vmatprep.mubr.bf16.mxu0 0
  %1076 = vmatmul.mubr.bf16.gmra.mxu0 %v580
  %v1077 = vpop.f32.mrf.mxu0
  %v1078 = vadd.f32 %v205, %v1077
  %v1079 = vpop.f32.mrf.mxu0
  %v1080 = vpop.f32.mrf.mxu0
  %v1081 = vadd.f32 %v205, %v1080
  %v1082 = vpop.f32.mrf.mxu0
  %1083 = vmatprep.mubr.bf16.mxu0 0
  %1084 = vmatmul.mubr.bf16.gmra.mxu0 %v581
  %v1085 = vpop.f32.mrf.mxu0
  %v1086 = vadd.f32 %v205, %v1085
  %v1087 = vpop.f32.mrf.mxu0
  %v1088 = vpop.f32.mrf.mxu0
  %v1089 = vadd.f32 %v205, %v1088
  %v1090 = vpop.f32.mrf.mxu0
  %1091 = vmatprep.mubr.bf16.mxu0 0
  %1092 = vmatmul.mubr.bf16.gmra.mxu0 %v582
  %v1093 = vpop.f32.mrf.mxu0
  %v1094 = vadd.f32 %v205, %v1093
  %v1095 = vpop.f32.mrf.mxu0
  %v1096 = vpop.f32.mrf.mxu0
  %v1097 = vadd.f32 %v205, %v1096
  %v1098 = vpop.f32.mrf.mxu0
  %1099 = vmatprep.mubr.bf16.mxu0 0
  %1100 = vmatmul.mubr.bf16.gmra.mxu0 %v583
  %v1101 = vpop.f32.mrf.mxu0
  %v1102 = vadd.f32 %v205, %v1101
  %v1103 = vpop.f32.mrf.mxu0
  %v1104 = vpop.f32.mrf.mxu0
  %v1105 = vadd.f32 %v205, %v1104
  %v1106 = vpop.f32.mrf.mxu0
  %1107 = vmatprep.mubr.bf16.mxu0 0
  %1108 = vmatmul.mubr.bf16.gmra.mxu0 %v584
  %v1109 = vpop.f32.mrf.mxu0
  %v1110 = vadd.f32 %v205, %v1109
  %v1111 = vpop.f32.mrf.mxu0
  %v1112 = vpop.f32.mrf.mxu0
  %v1113 = vadd.f32 %v205, %v1112
  %v1114 = vpop.f32.mrf.mxu0
  %1115 = vmatprep.mubr.bf16.mxu0 0
  %1116 = vmatmul.mubr.bf16.gmra.mxu0 %v585
  %v1117 = vpop.f32.mrf.mxu0
  %v1118 = vadd.f32 %v205, %v1117
  %v1119 = vpop.f32.mrf.mxu0
  %v1120 = vpop.f32.mrf.mxu0
  %v1121 = vadd.f32 %v205, %v1120
  %v1122 = vpop.f32.mrf.mxu0
  %1123 = vmatprep.mubr.bf16.mxu0 0
  %1124 = vmatmul.mubr.bf16.gmra.mxu0 %v586
  %v1125 = vpop.f32.mrf.mxu0
  %v1126 = vadd.f32 %v205, %v1125
  %v1127 = vpop.f32.mrf.mxu0
  %v1128 = vpop.f32.mrf.mxu0
  %v1129 = vadd.f32 %v205, %v1128
  %v1130 = vpop.f32.mrf.mxu0
  %1131 = vmatprep.mubr.bf16.mxu0 0
  %1132 = vmatmul.mubr.bf16.gmra.mxu0 %v587
  %v1133 = vpop.f32.mrf.mxu0
  %v1134 = vadd.f32 %v205, %v1133
  %v1135 = vpop.f32.mrf.mxu0
  %v1136 = vpop.f32.mrf.mxu0
  %v1137 = vadd.f32 %v205, %v1136
  %v1138 = vpop.f32.mrf.mxu0
  %1139 = vmatprep.mubr.bf16.mxu0 0
  %1140 = vmatmul.mubr.bf16.gmra.mxu0 %v588
  %v1141 = vpop.f32.mrf.mxu0
  %v1142 = vadd.f32 %v205, %v1141
  %v1143 = vpop.f32.mrf.mxu0
  %v1144 = vpop.f32.mrf.mxu0
  %v1145 = vadd.f32 %v205, %v1144
  %v1146 = vpop.f32.mrf.mxu0
  %1147 = vmatprep.mubr.bf16.mxu0 0
  %1148 = vmatmul.mubr.bf16.gmra.mxu0 %v589
  %v1149 = vpop.f32.mrf.mxu0
  %v1150 = vadd.f32 %v205, %v1149
  %v1151 = vpop.f32.mrf.mxu0
  %v1152 = vpop.f32.mrf.mxu0
  %v1153 = vadd.f32 %v205, %v1152
  %v1154 = vpop.f32.mrf.mxu0
  %1155 = vmatprep.mubr.bf16.mxu0 0
  %1156 = vmatmul.mubr.bf16.gmra.mxu0 %v590
  %v1157 = vpop.f32.mrf.mxu0
  %v1158 = vadd.f32 %v205, %v1157
  %v1159 = vpop.f32.mrf.mxu0
  %v1160 = vpop.f32.mrf.mxu0
  %v1161 = vadd.f32 %v205, %v1160
  %v1162 = vpop.f32.mrf.mxu0
  %1163 = vmatprep.mubr.bf16.mxu0 0
  %1164 = vmatmul.mubr.bf16.gmra.mxu0 %v591
  %v1165 = vpop.f32.mrf.mxu0
  %v1166 = vadd.f32 %v205, %v1165
  %v1167 = vpop.f32.mrf.mxu0
  %v1168 = vpop.f32.mrf.mxu0
  %v1169 = vadd.f32 %v205, %v1168
  %v1170 = vpop.f32.mrf.mxu0
  %1171 = vmatprep.mubr.bf16.mxu0 0
  %1172 = vmatmul.mubr.bf16.gmra.mxu0 %v592
  %v1173 = vpop.f32.mrf.mxu0
  %v1174 = vadd.f32 %v205, %v1173
  %v1175 = vpop.f32.mrf.mxu0
  %v1176 = vpop.f32.mrf.mxu0
  %v1177 = vadd.f32 %v205, %v1176
  %v1178 = vpop.f32.mrf.mxu0
  %1179 = vmatprep.mubr.bf16.mxu0 0
  %1180 = vmatmul.mubr.bf16.gmra.mxu0 %v593
  %v1181 = vpop.f32.mrf.mxu0
  %v1182 = vadd.f32 %v205, %v1181
  %v1183 = vpop.f32.mrf.mxu0
  %v1184 = vpop.f32.mrf.mxu0
  %v1185 = vadd.f32 %v205, %v1184
  %v1186 = vpop.f32.mrf.mxu0
  %1187 = vmatprep.mubr.bf16.mxu0 0
  %1188 = vmatmul.mubr.bf16.gmra.mxu0 %v594
  %v1189 = vpop.f32.mrf.mxu0
  %v1190 = vadd.f32 %v205, %v1189
  %v1191 = vpop.f32.mrf.mxu0
  %v1192 = vpop.f32.mrf.mxu0
  %v1193 = vadd.f32 %v205, %v1192
  %v1194 = vpop.f32.mrf.mxu0
  %1195 = vmatprep.mubr.bf16.mxu0 0
  %1196 = vmatmul.mubr.bf16.gmra.mxu0 %v595
  %v1197 = vpop.f32.mrf.mxu0
  %v1198 = vadd.f32 %v205, %v1197
  %v1199 = vpop.f32.mrf.mxu0
  %v1200 = vpop.f32.mrf.mxu0
  %v1201 = vadd.f32 %v205, %v1200
  %v1202 = vpop.f32.mrf.mxu0
  %1203 = vmatprep.mubr.bf16.mxu0 0
  %1204 = vmatmul.mubr.bf16.gmra.mxu0 %v596
  %v1205 = vpop.f32.mrf.mxu0
  %v1206 = vadd.f32 %v205, %v1205
  %v1207 = vpop.f32.mrf.mxu0
  %v1208 = vpop.f32.mrf.mxu0
  %v1209 = vadd.f32 %v205, %v1208
  %v1210 = vpop.f32.mrf.mxu0
  %1211 = vmatprep.mubr.bf16.mxu0 0
  %1212 = vmatmul.mubr.bf16.gmra.mxu0 %v597
  %v1213 = vpop.f32.mrf.mxu0
  %v1214 = vadd.f32 %v205, %v1213
  %v1215 = vpop.f32.mrf.mxu0
  %v1216 = vpop.f32.mrf.mxu0
  %v1217 = vadd.f32 %v205, %v1216
  %v1218 = vpop.f32.mrf.mxu0
  %1219 = vmatprep.mubr.bf16.mxu0 0
  %1220 = vmatmul.mubr.bf16.gmra.mxu0 %v598
  %v1221 = vpop.f32.mrf.mxu0
  %v1222 = vadd.f32 %v205, %v1221
  %v1223 = vpop.f32.mrf.mxu0
  %v1224 = vpop.f32.mrf.mxu0
  %v1225 = vadd.f32 %v205, %v1224
  %v1226 = vpop.f32.mrf.mxu0
  %1227 = vmatprep.mubr.bf16.mxu0 0
  %1228 = vmatmul.mubr.bf16.gmra.mxu0 %v599
  %v1229 = vpop.f32.mrf.mxu0
  %v1230 = vadd.f32 %v205, %v1229
  %v1231 = vpop.f32.mrf.mxu0
  %v1232 = vpop.f32.mrf.mxu0
  %v1233 = vadd.f32 %v205, %v1232
  %v1234 = vpop.f32.mrf.mxu0
  %1235 = vmatprep.mubr.bf16.mxu0 0
  %1236 = vmatmul.mubr.bf16.gmra.mxu0 %v600
  %v1237 = vpop.f32.mrf.mxu0
  %v1238 = vadd.f32 %v205, %v1237
  %v1239 = vpop.f32.mrf.mxu0
  %v1240 = vpop.f32.mrf.mxu0
  %v1241 = vadd.f32 %v205, %v1240
  %v1242 = vpop.f32.mrf.mxu0
  %1243 = vmatprep.mubr.bf16.mxu0 0
  %1244 = vmatmul.mubr.bf16.gmra.mxu0 %v601
  %v1245 = vpop.f32.mrf.mxu0
  %v1246 = vadd.f32 %v205, %v1245
  %v1247 = vpop.f32.mrf.mxu0
  %v1248 = vpop.f32.mrf.mxu0
  %v1249 = vadd.f32 %v205, %v1248
  %v1250 = vpop.f32.mrf.mxu0
  %1251 = vmatprep.mubr.bf16.mxu0 0
  %1252 = vmatmul.mubr.bf16.gmra.mxu0 %v602
  %v1253 = vpop.f32.mrf.mxu0
  %v1254 = vadd.f32 %v205, %v1253
  %v1255 = vpop.f32.mrf.mxu0
  %v1256 = vpop.f32.mrf.mxu0
  %v1257 = vadd.f32 %v205, %v1256
  %v1258 = vpop.f32.mrf.mxu0
  %1259 = vmatprep.mubr.bf16.mxu0 0
  %1260 = vmatmul.mubr.bf16.gmra.mxu0 %v603
  %v1261 = vpop.f32.mrf.mxu0
  %v1262 = vadd.f32 %v205, %v1261
  %v1263 = vpop.f32.mrf.mxu0
  %v1264 = vpop.f32.mrf.mxu0
  %v1265 = vadd.f32 %v205, %v1264
  %v1266 = vpop.f32.mrf.mxu0
  %1267 = vmatprep.mubr.bf16.mxu0 0
  %1268 = vmatmul.mubr.bf16.gmra.mxu0 %v604
  %v1269 = vpop.f32.mrf.mxu0
  %v1270 = vadd.f32 %v205, %v1269
  %v1271 = vpop.f32.mrf.mxu0
  %v1272 = vpop.f32.mrf.mxu0
  %v1273 = vadd.f32 %v205, %v1272
  %v1274 = vpop.f32.mrf.mxu0
  %1275 = vmatprep.mubr.bf16.mxu0 0
  %1276 = vmatmul.mubr.bf16.gmra.mxu0 %v605
  %v1277 = vpop.f32.mrf.mxu0
  %v1278 = vadd.f32 %v205, %v1277
  %v1279 = vpop.f32.mrf.mxu0
  %v1280 = vpop.f32.mrf.mxu0
  %v1281 = vadd.f32 %v205, %v1280
  %v1282 = vpop.f32.mrf.mxu0
  %1283 = vmatprep.mubr.bf16.mxu0 0
  %1284 = vmatmul.mubr.bf16.gmra.mxu0 %v606
  %v1285 = vpop.f32.mrf.mxu0
  %v1286 = vadd.f32 %v205, %v1285
  %v1287 = vpop.f32.mrf.mxu0
  %v1288 = vpop.f32.mrf.mxu0
  %v1289 = vadd.f32 %v205, %v1288
  %v1290 = vpop.f32.mrf.mxu0
  %1291 = vmatprep.mubr.bf16.mxu0 0
  %1292 = vmatmul.mubr.bf16.gmra.mxu0 %v607
  %v1293 = vpop.f32.mrf.mxu0
  %v1294 = vadd.f32 %v205, %v1293
  %v1295 = vpop.f32.mrf.mxu0
  %v1296 = vpop.f32.mrf.mxu0
  %v1297 = vadd.f32 %v205, %v1296
  %v1298 = vpop.f32.mrf.mxu0
  %1299 = vmatprep.mubr.bf16.mxu0 0
  %1300 = vmatmul.mubr.bf16.gmra.mxu0 %v608
  %v1301 = vpop.f32.mrf.mxu0
  %v1302 = vadd.f32 %v205, %v1301
  %v1303 = vpop.f32.mrf.mxu0
  %v1304 = vpop.f32.mrf.mxu0
  %v1305 = vadd.f32 %v205, %v1304
  %v1306 = vpop.f32.mrf.mxu0
  %1307 = vmatprep.mubr.bf16.mxu0 0
  %1308 = vmatmul.mubr.bf16.gmra.mxu0 %v609
  %v1309 = vpop.f32.mrf.mxu0
  %v1310 = vadd.f32 %v205, %v1309
  %v1311 = vpop.f32.mrf.mxu0
  %v1312 = vpop.f32.mrf.mxu0
  %v1313 = vadd.f32 %v205, %v1312
  %v1314 = vpop.f32.mrf.mxu0
  %1315 = vmatprep.mubr.bf16.mxu0 0
  %1316 = vmatmul.mubr.bf16.gmra.mxu0 %v610
  %v1317 = vpop.f32.mrf.mxu0
  %v1318 = vadd.f32 %v205, %v1317
  %v1319 = vpop.f32.mrf.mxu0
  %v1320 = vpop.f32.mrf.mxu0
  %v1321 = vadd.f32 %v205, %v1320
  %v1322 = vpop.f32.mrf.mxu0
  %1323 = vmatprep.mubr.bf16.mxu0 0
  %1324 = vmatmul.mubr.bf16.gmra.mxu0 %v611
  %v1325 = vpop.f32.mrf.mxu0
  %v1326 = vadd.f32 %v205, %v1325
  %v1327 = vpop.f32.mrf.mxu0
  %v1328 = vpop.f32.mrf.mxu0
  %v1329 = vadd.f32 %v205, %v1328
  %v1330 = vpop.f32.mrf.mxu0
  %1331 = vmatprep.mubr.bf16.mxu0 0
  %1332 = vmatmul.mubr.bf16.gmra.mxu0 %v612
  %v1333 = vpop.f32.mrf.mxu0
  %v1334 = vadd.f32 %v205, %v1333
  %v1335 = vpop.f32.mrf.mxu0
  %v1336 = vpop.f32.mrf.mxu0
  %v1337 = vadd.f32 %v205, %v1336
  %v1338 = vpop.f32.mrf.mxu0
  %1339 = vmatprep.mubr.bf16.mxu0 0
  %1340 = vmatmul.mubr.bf16.gmra.mxu0 %v613
  %v1341 = vpop.f32.mrf.mxu0
  %v1342 = vadd.f32 %v205, %v1341
  %v1343 = vpop.f32.mrf.mxu0
  %v1344 = vpop.f32.mrf.mxu0
  %v1345 = vadd.f32 %v205, %v1344
  %v1346 = vpop.f32.mrf.mxu0
  %1347 = vmatprep.mubr.bf16.mxu0 0
  %1348 = vmatmul.mubr.bf16.gmra.mxu0 %v614
  %v1349 = vpop.f32.mrf.mxu0
  %v1350 = vadd.f32 %v205, %v1349
  %v1351 = vpop.f32.mrf.mxu0
  %v1352 = vpop.f32.mrf.mxu0
  %v1353 = vadd.f32 %v205, %v1352
  %v1354 = vpop.f32.mrf.mxu0
  %1355 = vmatprep.mubr.bf16.mxu0 0
  %1356 = vmatmul.mubr.bf16.gmra.mxu0 %v615
  %v1357 = vpop.f32.mrf.mxu0
  %v1358 = vadd.f32 %v205, %v1357
  %v1359 = vpop.f32.mrf.mxu0
  %v1360 = vpop.f32.mrf.mxu0
  %v1361 = vadd.f32 %v205, %v1360
  %v1362 = vpop.f32.mrf.mxu0
  %1363 = vmatprep.mubr.bf16.mxu0 0
  %1364 = vmatmul.mubr.bf16.gmra.mxu0 %v616
  %v1365 = vpop.f32.mrf.mxu0
  %v1366 = vadd.f32 %v205, %v1365
  %v1367 = vpop.f32.mrf.mxu0
  %v1368 = vpop.f32.mrf.mxu0
  %v1369 = vadd.f32 %v205, %v1368
  %v1370 = vpop.f32.mrf.mxu0
  %1371 = vmatprep.mubr.bf16.mxu0 0
  %1372 = vmatmul.mubr.bf16.gmra.mxu0 %v617
  %v1373 = vpop.f32.mrf.mxu0
  %v1374 = vadd.f32 %v205, %v1373
  %v1375 = vpop.f32.mrf.mxu0
  %v1376 = vpop.f32.mrf.mxu0
  %v1377 = vadd.f32 %v205, %v1376
  %v1378 = vpop.f32.mrf.mxu0
  %1379 = vmatprep.mubr.bf16.mxu0 0
  %1380 = vmatmul.mubr.bf16.gmra.mxu0 %v618
  %v1381 = vpop.f32.mrf.mxu0
  %v1382 = vadd.f32 %v205, %v1381
  %v1383 = vpop.f32.mrf.mxu0
  %v1384 = vpop.f32.mrf.mxu0
  %v1385 = vadd.f32 %v205, %v1384
  %v1386 = vpop.f32.mrf.mxu0
  %1387 = vmatprep.mubr.bf16.mxu0 0
  %1388 = vmatmul.mubr.bf16.gmra.mxu0 %v619
  %v1389 = vpop.f32.mrf.mxu0
  %v1390 = vadd.f32 %v205, %v1389
  %v1391 = vpop.f32.mrf.mxu0
  %v1392 = vpop.f32.mrf.mxu0
  %v1393 = vadd.f32 %v205, %v1392
  %v1394 = vpop.f32.mrf.mxu0
  %1395 = vmatprep.mubr.bf16.mxu0 0
  %1396 = vmatmul.mubr.bf16.gmra.mxu0 %v620
  %v1397 = vpop.f32.mrf.mxu0
  %v1398 = vadd.f32 %v205, %v1397
  %v1399 = vpop.f32.mrf.mxu0
  %v1400 = vpop.f32.mrf.mxu0
  %v1401 = vadd.f32 %v205, %v1400
  %v1402 = vpop.f32.mrf.mxu0
  %1403 = vmatprep.mubr.bf16.mxu0 0
  %1404 = vmatmul.mubr.bf16.gmra.mxu0 %v621
  %v1405 = vpop.f32.mrf.mxu0
  %v1406 = vadd.f32 %v205, %v1405
  %v1407 = vpop.f32.mrf.mxu0
  %v1408 = vpop.f32.mrf.mxu0
  %v1409 = vadd.f32 %v205, %v1408
  %v1410 = vpop.f32.mrf.mxu0
  %1411 = vmatprep.mubr.bf16.mxu0 0
  %1412 = vmatmul.mubr.bf16.gmra.mxu0 %v622
  %v1413 = vpop.f32.mrf.mxu0
  %v1414 = vadd.f32 %v205, %v1413
  %v1415 = vpop.f32.mrf.mxu0
  %v1416 = vpop.f32.mrf.mxu0
  %v1417 = vadd.f32 %v205, %v1416
  %v1418 = vpop.f32.mrf.mxu0
  %1419 = vmatprep.mubr.bf16.mxu0 0
  %1420 = vmatmul.mubr.bf16.gmra.mxu0 %v623
  %v1421 = vpop.f32.mrf.mxu0
  %v1422 = vadd.f32 %v205, %v1421
  %v1423 = vpop.f32.mrf.mxu0
  %v1424 = vpop.f32.mrf.mxu0
  %v1425 = vadd.f32 %v205, %v1424
  %v1426 = vpop.f32.mrf.mxu0
  %1427 = vmatprep.mubr.bf16.mxu0 0
  %1428 = vmatmul.mubr.bf16.gmra.mxu0 %v624
  %v1429 = vpop.f32.mrf.mxu0
  %v1430 = vadd.f32 %v205, %v1429
  %v1431 = vpop.f32.mrf.mxu0
  %v1432 = vpop.f32.mrf.mxu0
  %v1433 = vadd.f32 %v205, %v1432
  %v1434 = vpop.f32.mrf.mxu0
  %1435 = vmatprep.mubr.bf16.mxu0 0
  %1436 = vmatmul.mubr.bf16.gmra.mxu0 %v625
  %v1437 = vpop.f32.mrf.mxu0
  %v1438 = vadd.f32 %v205, %v1437
  %v1439 = vpop.f32.mrf.mxu0
  %v1440 = vpop.f32.mrf.mxu0
  %v1441 = vadd.f32 %v205, %v1440
  %v1442 = vpop.f32.mrf.mxu0
  %1443 = vmatprep.mubr.bf16.mxu0 0
  %1444 = vmatmul.mubr.bf16.gmra.mxu0 %v626
  %v1445 = vpop.f32.mrf.mxu0
  %v1446 = vadd.f32 %v205, %v1445
  %v1447 = vpop.f32.mrf.mxu0
  %v1448 = vpop.f32.mrf.mxu0
  %v1449 = vadd.f32 %v205, %v1448
  %v1450 = vpop.f32.mrf.mxu0
  %1451 = vmatprep.mubr.bf16.mxu0 0
  %1452 = vmatmul.mubr.bf16.gmra.mxu0 %v627
  %v1453 = vpop.f32.mrf.mxu0
  %v1454 = vadd.f32 %v205, %v1453
  %v1455 = vpop.f32.mrf.mxu0
  %v1456 = vpop.f32.mrf.mxu0
  %v1457 = vadd.f32 %v205, %v1456
  %v1458 = vpop.f32.mrf.mxu0
  %1459 = vmatprep.mubr.bf16.mxu0 0
  %1460 = vmatmul.mubr.bf16.gmra.mxu0 %v628
  %v1461 = vpop.f32.mrf.mxu0
  %v1462 = vadd.f32 %v205, %v1461
  %v1463 = vpop.f32.mrf.mxu0
  %v1464 = vpop.f32.mrf.mxu0
  %v1465 = vadd.f32 %v205, %v1464
  %v1466 = vpop.f32.mrf.mxu0
  %1467 = vmatprep.mubr.bf16.mxu0 0
  %1468 = vmatmul.mubr.bf16.gmra.mxu0 %v629
  %v1469 = vpop.f32.mrf.mxu0
  %v1470 = vadd.f32 %v205, %v1469
  %v1471 = vpop.f32.mrf.mxu0
  %v1472 = vpop.f32.mrf.mxu0
  %v1473 = vpop.f32.mrf.mxu0
  %1474 = vdwg.mxu0
  %v1475 = vmax.f32 %v798, 0.0
  %v1476 = vmax.f32 %v801, 0.0
  %v1477 = vmax.f32 %v806, 0.0
  %v1478 = vmax.f32 %v809, 0.0
  %v1479 = vmax.f32 %v814, 0.0
  %v1480 = vmax.f32 %v817, 0.0
  %v1481 = vmax.f32 %v822, 0.0
  %v1482 = vmax.f32 %v825, 0.0
  %v1483 = vmax.f32 %v830, 0.0
  %v1484 = vmax.f32 %v833, 0.0
  %v1485 = vmax.f32 %v838, 0.0
  %v1486 = vmax.f32 %v841, 0.0
  %v1487 = vmax.f32 %v846, 0.0
  %v1488 = vmax.f32 %v849, 0.0
  %v1489 = vmax.f32 %v854, 0.0
  %v1490 = vmax.f32 %v857, 0.0
  %v1491 = vmax.f32 %v862, 0.0
  %v1492 = vmax.f32 %v865, 0.0
  %v1493 = vmax.f32 %v870, 0.0
  %v1494 = vmax.f32 %v873, 0.0
  %v1495 = vmax.f32 %v878, 0.0
  %v1496 = vmax.f32 %v881, 0.0
  %v1497 = vmax.f32 %v886, 0.0
  %v1498 = vmax.f32 %v889, 0.0
  %v1499 = vmax.f32 %v894, 0.0
  %v1500 = vmax.f32 %v897, 0.0
  %v1501 = vmax.f32 %v902, 0.0
  %v1502 = vmax.f32 %v905, 0.0
  %v1503 = vmax.f32 %v910, 0.0
  %v1504 = vmax.f32 %v913, 0.0
  %v1505 = vmax.f32 %v918, 0.0
  %v1506 = vmax.f32 %v921, 0.0
  %v1507 = vmax.f32 %v926, 0.0
  %v1508 = vmax.f32 %v929, 0.0
  %v1509 = vmax.f32 %v934, 0.0
  %v1510 = vmax.f32 %v937, 0.0
  %v1511 = vmax.f32 %v942, 0.0
  %v1512 = vmax.f32 %v945, 0.0
  %v1513 = vmax.f32 %v950, 0.0
  %v1514 = vmax.f32 %v953, 0.0
  %v1515 = vmax.f32 %v958, 0.0
  %v1516 = vmax.f32 %v961, 0.0
  %v1517 = vmax.f32 %v966, 0.0
  %v1518 = vmax.f32 %v969, 0.0
  %v1519 = vmax.f32 %v974, 0.0
  %v1520 = vmax.f32 %v977, 0.0
  %v1521 = vmax.f32 %v982, 0.0
  %v1522 = vmax.f32 %v985, 0.0
  %v1523 = vmax.f32 %v990, 0.0
  %v1524 = vmax.f32 %v993, 0.0
  %v1525 = vmax.f32 %v998, 0.0
  %v1526 = vmax.f32 %v1001, 0.0
  %v1527 = vmax.f32 %v1006, 0.0
  %v1528 = vmax.f32 %v1009, 0.0
  %v1529 = vmax.f32 %v1014, 0.0
  %v1530 = vmax.f32 %v1017, 0.0
  %v1531 = vmax.f32 %v1022, 0.0
  %v1532 = vmax.f32 %v1025, 0.0
  %v1533 = vmax.f32 %v1030, 0.0
  %v1534 = vmax.f32 %v1033, 0.0
  %v1535 = vmax.f32 %v1038, 0.0
  %v1536 = vmax.f32 %v1041, 0.0
  %v1537 = vmax.f32 %v1046, 0.0
  %v1538 = vmax.f32 %v1049, 0.0
  %v1539 = vmax.f32 %v1054, 0.0
  %v1540 = vmax.f32 %v1057, 0.0
  %v1541 = vmax.f32 %v1062, 0.0
  %v1542 = vmax.f32 %v1065, 0.0
  %v1543 = vmax.f32 %v1070, 0.0
  %v1544 = vmax.f32 %v1073, 0.0
  %v1545 = vmax.f32 %v1078, 0.0
  %v1546 = vmax.f32 %v1081, 0.0
  %v1547 = vmax.f32 %v1086, 0.0
  %v1548 = vmax.f32 %v1089, 0.0
  %v1549 = vmax.f32 %v1094, 0.0
  %v1550 = vmax.f32 %v1097, 0.0
  %v1551 = vmax.f32 %v1102, 0.0
  %v1552 = vmax.f32 %v1105, 0.0
  %v1553 = vmax.f32 %v1110, 0.0
  %v1554 = vmax.f32 %v1113, 0.0
  %v1555 = vmax.f32 %v1118, 0.0
  %v1556 = vmax.f32 %v1121, 0.0
  %v1557 = vmax.f32 %v1126, 0.0
  %v1558 = vmax.f32 %v1129, 0.0
  %v1559 = vmax.f32 %v1134, 0.0
  %v1560 = vmax.f32 %v1137, 0.0
  %v1561 = vmax.f32 %v1142, 0.0
  %v1562 = vmax.f32 %v1145, 0.0
  %v1563 = vmax.f32 %v1150, 0.0
  %v1564 = vmax.f32 %v1153, 0.0
  %v1565 = vmax.f32 %v1158, 0.0
  %v1566 = vmax.f32 %v1161, 0.0
  %v1567 = vmax.f32 %v1166, 0.0
  %v1568 = vmax.f32 %v1169, 0.0
  %v1569 = vmax.f32 %v1174, 0.0
  %v1570 = vmax.f32 %v1177, 0.0
  %v1571 = vmax.f32 %v1182, 0.0
  %v1572 = vmax.f32 %v1185, 0.0
  %v1573 = vmax.f32 %v1190, 0.0
  %v1574 = vmax.f32 %v1193, 0.0
  %v1575 = vmax.f32 %v1198, 0.0
  %v1576 = vmax.f32 %v1201, 0.0
  %v1577 = vmax.f32 %v1206, 0.0
  %v1578 = vmax.f32 %v1209, 0.0
  %v1579 = vmax.f32 %v1214, 0.0
  %v1580 = vmax.f32 %v1217, 0.0
  %v1581 = vmax.f32 %v1222, 0.0
  %v1582 = vmax.f32 %v1225, 0.0
  %v1583 = vmax.f32 %v1230, 0.0
  %v1584 = vmax.f32 %v1233, 0.0
  %v1585 = vmax.f32 %v1238, 0.0
  %v1586 = vmax.f32 %v1241, 0.0
  %v1587 = vmax.f32 %v1246, 0.0
  %v1588 = vmax.f32 %v1249, 0.0
  %v1589 = vmax.f32 %v1254, 0.0
  %v1590 = vmax.f32 %v1257, 0.0
  %v1591 = vmax.f32 %v1262, 0.0
  %v1592 = vmax.f32 %v1265, 0.0
  %v1593 = vmax.f32 %v1270, 0.0
  %v1594 = vmax.f32 %v1273, 0.0
  %v1595 = vmax.f32 %v1278, 0.0
  %v1596 = vmax.f32 %v1281, 0.0
  %v1597 = vmax.f32 %v1286, 0.0
  %v1598 = vmax.f32 %v1289, 0.0
  %v1599 = vmax.f32 %v1294, 0.0
  %v1600 = vmax.f32 %v1297, 0.0
  %v1601 = vmax.f32 %v1302, 0.0
  %v1602 = vmax.f32 %v1305, 0.0
  %v1603 = vmax.f32 %v1310, 0.0
  %v1604 = vmax.f32 %v1313, 0.0
  %v1605 = vmax.f32 %v1318, 0.0
  %v1606 = vmax.f32 %v1321, 0.0
  %v1607 = vmax.f32 %v1326, 0.0
  %v1608 = vmax.f32 %v1329, 0.0
  %v1609 = vmax.f32 %v1334, 0.0
  %v1610 = vmax.f32 %v1337, 0.0
  %v1611 = vmax.f32 %v1342, 0.0
  %v1612 = vmax.f32 %v1345, 0.0
  %v1613 = vmax.f32 %v1350, 0.0
  %v1614 = vmax.f32 %v1353, 0.0
  %v1615 = vmax.f32 %v1358, 0.0
  %v1616 = vmax.f32 %v1361, 0.0
  %v1617 = vmax.f32 %v1366, 0.0
  %v1618 = vmax.f32 %v1369, 0.0
  %v1619 = vmax.f32 %v1374, 0.0
  %v1620 = vmax.f32 %v1377, 0.0
  %v1621 = vmax.f32 %v1382, 0.0
  %v1622 = vmax.f32 %v1385, 0.0
  %v1623 = vmax.f32 %v1390, 0.0
  %v1624 = vmax.f32 %v1393, 0.0
  %v1625 = vmax.f32 %v1398, 0.0
  %v1626 = vmax.f32 %v1401, 0.0
  %v1627 = vmax.f32 %v1406, 0.0
  %v1628 = vmax.f32 %v1409, 0.0
  %v1629 = vmax.f32 %v1414, 0.0
  %v1630 = vmax.f32 %v1417, 0.0
  %v1631 = vmax.f32 %v1422, 0.0
  %v1632 = vmax.f32 %v1425, 0.0
  %v1633 = vmax.f32 %v1430, 0.0
  %v1634 = vmax.f32 %v1433, 0.0
  %v1635 = vmax.f32 %v1438, 0.0
  %v1636 = vmax.f32 %v1441, 0.0
  %v1637 = vmax.f32 %v1446, 0.0
  %v1638 = vmax.f32 %v1449, 0.0
  %v1639 = vmax.f32 %v1454, 0.0
  %v1640 = vmax.f32 %v1457, 0.0
  %v1641 = vmax.f32 %v1462, 0.0
  %v1642 = vmax.f32 %v1465, 0.0
  %v1643 = vmax.f32 %v1470, 0.0
  %1644 = vst [vmem:[%s3] sm:$0xff] %v1475
  %1645 = vst [vmem:[%s3 + $0x8] sm:$0xff] %v1476
  %1646 = vst [vmem:[%s3 + $0x10] sm:$0xff] %v1477
  %1647 = vst [vmem:[%s3 + $0x18] sm:$0xff] %v1478
  %1648 = vst [vmem:[%s3 + $0x20] sm:$0xff] %v1479
  %1649 = vst [vmem:[%s3 + $0x28] sm:$0xff] %v1480
  %1650 = vst [vmem:[%s3 + $0x30] sm:$0xff] %v1481
  %1651 = vst [vmem:[%s3 + $0x38] sm:$0xff] %v1482
  %1652 = vst [vmem:[%s3 + $0x40] sm:$0xff] %v1483
  %1653 = vst [vmem:[%s3 + $0x48] sm:$0xff] %v1484
  %1654 = vst [vmem:[%s3 + $0x50] sm:$0xff] %v1485
  %1655 = vst [vmem:[%s3 + $0x58] sm:$0xff] %v1486
  %1656 = vst [vmem:[%s3 + $0x60] sm:$0xff] %v1487
  %1657 = vst [vmem:[%s3 + $0x68] sm:$0xff] %v1488
  %1658 = vst [vmem:[%s3 + $0x70] sm:$0xff] %v1489
  %1659 = vst [vmem:[%s3 + $0x78] sm:$0xff] %v1490
  %1660 = vst [vmem:[%s3 + $0x80] sm:$0xff] %v1491
  %1661 = vst [vmem:[%s3 + $0x88] sm:$0xff] %v1492
  %1662 = vst [vmem:[%s3 + $0x90] sm:$0xff] %v1493
  %1663 = vst [vmem:[%s3 + $0x98] sm:$0xff] %v1494
  %1664 = vst [vmem:[%s3 + $0xa0] sm:$0xff] %v1495
  %1665 = vst [vmem:[%s3 + $0xa8] sm:$0xff] %v1496
  %1666 = vst [vmem:[%s3 + $0xb0] sm:$0xff] %v1497
  %1667 = vst [vmem:[%s3 + $0xb8] sm:$0xff] %v1498
  %1668 = vst [vmem:[%s3 + $0xc0] sm:$0xff] %v1499
  %1669 = vst [vmem:[%s3 + $0xc8] sm:$0xff] %v1500
  %1670 = vst [vmem:[%s3 + $0xd0] sm:$0xff] %v1501
  %1671 = vst [vmem:[%s3 + $0xd8] sm:$0xff] %v1502
  %1672 = vst [vmem:[%s3 + $0xe0] sm:$0xff] %v1503
  %1673 = vst [vmem:[%s3 + $0xe8] sm:$0xff] %v1504
  %1674 = vst [vmem:[%s3 + $0xf0] sm:$0xff] %v1505
  %1675 = vst [vmem:[%s3 + $0xf8] sm:$0xff] %v1506
  %1676 = vst [vmem:[%s3 + $0x100] sm:$0xff] %v1507
  %1677 = vst [vmem:[%s3 + $0x108] sm:$0xff] %v1508
  %1678 = vst [vmem:[%s3 + $0x110] sm:$0xff] %v1509
  %1679 = vst [vmem:[%s3 + $0x118] sm:$0xff] %v1510
  %1680 = vst [vmem:[%s3 + $0x120] sm:$0xff] %v1511
  %1681 = vst [vmem:[%s3 + $0x128] sm:$0xff] %v1512
  %1682 = vst [vmem:[%s3 + $0x130] sm:$0xff] %v1513
  %1683 = vst [vmem:[%s3 + $0x138] sm:$0xff] %v1514
  %1684 = vst [vmem:[%s3 + $0x140] sm:$0xff] %v1515
  %1685 = vst [vmem:[%s3 + $0x148] sm:$0xff] %v1516
  %1686 = vst [vmem:[%s3 + $0x150] sm:$0xff] %v1517
  %1687 = vst [vmem:[%s3 + $0x158] sm:$0xff] %v1518
  %1688 = vst [vmem:[%s3 + $0x160] sm:$0xff] %v1519
  %1689 = vst [vmem:[%s3 + $0x168] sm:$0xff] %v1520
  %1690 = vst [vmem:[%s3 + $0x170] sm:$0xff] %v1521
  %1691 = vst [vmem:[%s3 + $0x178] sm:$0xff] %v1522
  %1692 = vst [vmem:[%s3 + $0x180] sm:$0xff] %v1523
  %1693 = vst [vmem:[%s3 + $0x188] sm:$0xff] %v1524
  %1694 = vst [vmem:[%s3 + $0x190] sm:$0xff] %v1525
  %1695 = vst [vmem:[%s3 + $0x198] sm:$0xff] %v1526
  %1696 = vst [vmem:[%s3 + $0x1a0] sm:$0xff] %v1527
  %1697 = vst [vmem:[%s3 + $0x1a8] sm:$0xff] %v1528
  %1698 = vst [vmem:[%s3 + $0x1b0] sm:$0xff] %v1529
  %1699 = vst [vmem:[%s3 + $0x1b8] sm:$0xff] %v1530
  %1700 = vst [vmem:[%s3 + $0x1c0] sm:$0xff] %v1531
  %1701 = vst [vmem:[%s3 + $0x1c8] sm:$0xff] %v1532
  %1702 = vst [vmem:[%s3 + $0x1d0] sm:$0xff] %v1533
  %1703 = vst [vmem:[%s3 + $0x1d8] sm:$0xff] %v1534
  %1704 = vst [vmem:[%s3 + $0x1e0] sm:$0xff] %v1535
  %1705 = vst [vmem:[%s3 + $0x1e8] sm:$0xff] %v1536
  %1706 = vst [vmem:[%s3 + $0x1f0] sm:$0xff] %v1537
  %1707 = vst [vmem:[%s3 + $0x1f8] sm:$0xff] %v1538
  %1708 = vst [vmem:[%s3 + $0x200] sm:$0xff] %v1539
  %1709 = vst [vmem:[%s3 + $0x208] sm:$0xff] %v1540
  %1710 = vst [vmem:[%s3 + $0x210] sm:$0xff] %v1541
  %1711 = vst [vmem:[%s3 + $0x218] sm:$0xff] %v1542
  %1712 = vst [vmem:[%s3 + $0x220] sm:$0xff] %v1543
  %1713 = vst [vmem:[%s3 + $0x228] sm:$0xff] %v1544
  %1714 = vst [vmem:[%s3 + $0x230] sm:$0xff] %v1545
  %1715 = vst [vmem:[%s3 + $0x238] sm:$0xff] %v1546
  %1716 = vst [vmem:[%s3 + $0x240] sm:$0xff] %v1547
  %1717 = vst [vmem:[%s3 + $0x248] sm:$0xff] %v1548
  %1718 = vst [vmem:[%s3 + $0x250] sm:$0xff] %v1549
  %1719 = vst [vmem:[%s3 + $0x258] sm:$0xff] %v1550
  %1720 = vst [vmem:[%s3 + $0x260] sm:$0xff] %v1551
  %1721 = vst [vmem:[%s3 + $0x268] sm:$0xff] %v1552
  %1722 = vst [vmem:[%s3 + $0x270] sm:$0xff] %v1553
  %1723 = vst [vmem:[%s3 + $0x278] sm:$0xff] %v1554
  %1724 = vst [vmem:[%s3 + $0x280] sm:$0xff] %v1555
  %1725 = vst [vmem:[%s3 + $0x288] sm:$0xff] %v1556
  %1726 = vst [vmem:[%s3 + $0x290] sm:$0xff] %v1557
  %1727 = vst [vmem:[%s3 + $0x298] sm:$0xff] %v1558
  %1728 = vst [vmem:[%s3 + $0x2a0] sm:$0xff] %v1559
  %1729 = vst [vmem:[%s3 + $0x2a8] sm:$0xff] %v1560
  %1730 = vst [vmem:[%s3 + $0x2b0] sm:$0xff] %v1561
  %1731 = vst [vmem:[%s3 + $0x2b8] sm:$0xff] %v1562
  %1732 = vst [vmem:[%s3 + $0x2c0] sm:$0xff] %v1563
  %1733 = vst [vmem:[%s3 + $0x2c8] sm:$0xff] %v1564
  %1734 = vst [vmem:[%s3 + $0x2d0] sm:$0xff] %v1565
  %1735 = vst [vmem:[%s3 + $0x2d8] sm:$0xff] %v1566
  %1736 = vst [vmem:[%s3 + $0x2e0] sm:$0xff] %v1567
  %1737 = vst [vmem:[%s3 + $0x2e8] sm:$0xff] %v1568
  %1738 = vst [vmem:[%s3 + $0x2f0] sm:$0xff] %v1569
  %1739 = vst [vmem:[%s3 + $0x2f8] sm:$0xff] %v1570
  %1740 = vst [vmem:[%s3 + $0x300] sm:$0xff] %v1571
  %1741 = vst [vmem:[%s3 + $0x308] sm:$0xff] %v1572
  %1742 = vst [vmem:[%s3 + $0x310] sm:$0xff] %v1573
  %1743 = vst [vmem:[%s3 + $0x318] sm:$0xff] %v1574
  %1744 = vst [vmem:[%s3 + $0x320] sm:$0xff] %v1575
  %1745 = vst [vmem:[%s3 + $0x328] sm:$0xff] %v1576
  %1746 = vst [vmem:[%s3 + $0x330] sm:$0xff] %v1577
  %1747 = vst [vmem:[%s3 + $0x338] sm:$0xff] %v1578
  %1748 = vst [vmem:[%s3 + $0x340] sm:$0xff] %v1579
  %1749 = vst [vmem:[%s3 + $0x348] sm:$0xff] %v1580
  %1750 = vst [vmem:[%s3 + $0x350] sm:$0xff] %v1581
  %1751 = vst [vmem:[%s3 + $0x358] sm:$0xff] %v1582
  %1752 = vst [vmem:[%s3 + $0x360] sm:$0xff] %v1583
  %1753 = vst [vmem:[%s3 + $0x368] sm:$0xff] %v1584
  %1754 = vst [vmem:[%s3 + $0x370] sm:$0xff] %v1585
  %1755 = vst [vmem:[%s3 + $0x378] sm:$0xff] %v1586
  %1756 = vst [vmem:[%s3 + $0x380] sm:$0xff] %v1587
  %1757 = vst [vmem:[%s3 + $0x388] sm:$0xff] %v1588
  %1758 = vst [vmem:[%s3 + $0x390] sm:$0xff] %v1589
  %1759 = vst [vmem:[%s3 + $0x398] sm:$0xff] %v1590
  %1760 = vst [vmem:[%s3 + $0x3a0] sm:$0xff] %v1591
  %1761 = vst [vmem:[%s3 + $0x3a8] sm:$0xff] %v1592
  %1762 = vst [vmem:[%s3 + $0x3b0] sm:$0xff] %v1593
  %1763 = vst [vmem:[%s3 + $0x3b8] sm:$0xff] %v1594
  %1764 = vst [vmem:[%s3 + $0x3c0] sm:$0xff] %v1595
  %1765 = vst [vmem:[%s3 + $0x3c8] sm:$0xff] %v1596
  %1766 = vst [vmem:[%s3 + $0x3d0] sm:$0xff] %v1597
  %1767 = vst [vmem:[%s3 + $0x3d8] sm:$0xff] %v1598
  %1768 = vst [vmem:[%s3 + $0x3e0] sm:$0xff] %v1599
  %1769 = vst [vmem:[%s3 + $0x3e8] sm:$0xff] %v1600
  %1770 = vst [vmem:[%s3 + $0x3f0] sm:$0xff] %v1601
  %1771 = vst [vmem:[%s3 + $0x3f8] sm:$0xff] %v1602
  %1772 = vst [vmem:[%s3 + $0x400] sm:$0xff] %v1603
  %1773 = vst [vmem:[%s3 + $0x408] sm:$0xff] %v1604
  %1774 = vst [vmem:[%s3 + $0x410] sm:$0xff] %v1605
  %1775 = vst [vmem:[%s3 + $0x418] sm:$0xff] %v1606
  %1776 = vst [vmem:[%s3 + $0x420] sm:$0xff] %v1607
  %1777 = vst [vmem:[%s3 + $0x428] sm:$0xff] %v1608
  %1778 = vst [vmem:[%s3 + $0x430] sm:$0xff] %v1609
  %1779 = vst [vmem:[%s3 + $0x438] sm:$0xff] %v1610
  %1780 = vst [vmem:[%s3 + $0x440] sm:$0xff] %v1611
  %1781 = vst [vmem:[%s3 + $0x448] sm:$0xff] %v1612
  %1782 = vst [vmem:[%s3 + $0x450] sm:$0xff] %v1613
  %1783 = vst [vmem:[%s3 + $0x458] sm:$0xff] %v1614
  %1784 = vst [vmem:[%s3 + $0x460] sm:$0xff] %v1615
  %1785 = vst [vmem:[%s3 + $0x468] sm:$0xff] %v1616
  %1786 = vst [vmem:[%s3 + $0x470] sm:$0xff] %v1617
  %1787 = vst [vmem:[%s3 + $0x478] sm:$0xff] %v1618
  %1788 = vst [vmem:[%s3 + $0x480] sm:$0xff] %v1619
  %1789 = vst [vmem:[%s3 + $0x488] sm:$0xff] %v1620
  %1790 = vst [vmem:[%s3 + $0x490] sm:$0xff] %v1621
  %1791 = vst [vmem:[%s3 + $0x498] sm:$0xff] %v1622
  %1792 = vst [vmem:[%s3 + $0x4a0] sm:$0xff] %v1623
  %1793 = vst [vmem:[%s3 + $0x4a8] sm:$0xff] %v1624
  %1794 = vst [vmem:[%s3 + $0x4b0] sm:$0xff] %v1625
  %1795 = vst [vmem:[%s3 + $0x4b8] sm:$0xff] %v1626
  %1796 = vst [vmem:[%s3 + $0x4c0] sm:$0xff] %v1627
  %1797 = vst [vmem:[%s3 + $0x4c8] sm:$0xff] %v1628
  %1798 = vst [vmem:[%s3 + $0x4d0] sm:$0xff] %v1629
  %1799 = vst [vmem:[%s3 + $0x4d8] sm:$0xff] %v1630
  %1800 = vst [vmem:[%s3 + $0x4e0] sm:$0xff] %v1631
  %1801 = vst [vmem:[%s3 + $0x4e8] sm:$0xff] %v1632
  %1802 = vst [vmem:[%s3 + $0x4f0] sm:$0xff] %v1633
  %1803 = vst [vmem:[%s3 + $0x4f8] sm:$0xff] %v1634
  %1804 = vst [vmem:[%s3 + $0x500] sm:$0xff] %v1635
  %1805 = vst [vmem:[%s3 + $0x508] sm:$0xff] %v1636
  %1806 = vst [vmem:[%s3 + $0x510] sm:$0xff] %v1637
  %1807 = vst [vmem:[%s3 + $0x518] sm:$0xff] %v1638
  %1808 = vst [vmem:[%s3 + $0x520] sm:$0xff] %v1639
  %1809 = vst [vmem:[%s3 + $0x528] sm:$0xff] %v1640
  %1810 = vst [vmem:[%s3 + $0x530] sm:$0xff] %v1641
  %1811 = vst [vmem:[%s3 + $0x538] sm:$0xff] %v1642
  %1812 = vst [vmem:[%s3 + $0x540] sm:$0xff] %v1643
  // Predicated region
  $region14: #{net_forward.6} parent=0 // pred_check
    _
  $region15: #{net_forward.6} parent=0 // pred_check_branch
    %1814 = sbr.rel (0) target = $region17
  $region16: #{net_forward.6} parent=0 // pred_region
    _
  $region17: #{net_forward.6} parent=0 // pred_fallthru
    _
  // Predicated region
  $region18: #{net_forward.6} parent=0 // pred_check
    _
  $region19: #{net_forward.6} parent=0 // pred_check_branch
    %1816 = sbr.rel (0) target = $region21
  $region20: #{net_forward.6} parent=0 // pred_region
    _
  $region21: #{net_forward.6} parent=0 // pred_fallthru
    _

// kernel: net_forward.7
$region0: #{net_forward.7}
  #allocation0 [shape = 'u32[]', space=smem, size = 0x4, offset = 0x4, fixed_abs, tag = 'smem constant byte address 0x4 - core index']
  #allocation1 [shape = 'u32[144,128]{1,0:T(1,128)}', space=vmem, size = 0x12000, scoped, tag = 'internal scratch']
  %s0 = inlined_call_operand.vmem [shape: bf16[288,128], index: 0, kind: input, shape index: {}]
  %s1 = inlined_call_operand.vmem [shape: bf16[288,128], index: 1, kind: input, shape index: {}]
  %s2 = inlined_call_operand.vmem [shape: bf16[288,128], index: 2, kind: input, shape index: {}]
  %s3 = inlined_call_operand.vmem [shape: bf16[288,128], index: 3, kind: input, shape index: {}]
  %s4 = inlined_call_operand.vmem [shape: bf16[128,128], index: 4, kind: input, shape index: {}]
  %s5 = inlined_call_operand.vmem [shape: f32[1,128], index: 5, kind: input, shape index: {}]
  %s6 = inlined_call_operand.vmem [shape: f32[288,128], index: 6, kind: output, shape index: {}]
  %s7 = sld [smem:[#allocation0]]
  $region34: #{net_forward.7} parent=0
    _
  %s9 = ssub.s32 1, %s7
  %s10 = scalar_select 0, %s9, %s7
  // Predicated region
  $region2: #{net_forward.7} parent=0 // pred_check
    _
  $region3: #{net_forward.7} parent=0 // pred_check_branch
    %12 = sbr.rel (0) target = $region5
  $region4: #{net_forward.7} parent=0 // pred_region
    _
  $region5: #{net_forward.7} parent=0 // pred_fallthru
    _
  // Predicated region
  $region6: #{net_forward.7} parent=0 // pred_check
    _
  $region7: #{net_forward.7} parent=0 // pred_check_branch
    %14 = sbr.rel (0) target = $region9
  $region8: #{net_forward.7} parent=0 // pred_region
    _
  $region9: #{net_forward.7} parent=0 // pred_fallthru
    _
  // Predicated region
  $region10: #{net_forward.7} parent=0 // pred_check
    _
  $region11: #{net_forward.7} parent=0 // pred_check_branch
    %16 = sbr.rel (0) target = $region13
  $region12: #{net_forward.7} parent=0 // pred_region
    _
  $region13: #{net_forward.7} parent=0 // pred_fallthru
    _
  // Predicated region
  $region14: #{net_forward.7} parent=0 // pred_check
    _
  $region15: #{net_forward.7} parent=0 // pred_check_branch
    %18 = sbr.rel (0) target = $region17
  $region16: #{net_forward.7} parent=0 // pred_region
    _
  $region17: #{net_forward.7} parent=0 // pred_fallthru
    _
  // Predicated region
  $region18: #{net_forward.7} parent=0 // pred_check
    _
  $region19: #{net_forward.7} parent=0 // pred_check_branch
    %20 = sbr.rel (0) target = $region21
  $region20: #{net_forward.7} parent=0 // pred_region
    _
  $region21: #{net_forward.7} parent=0 // pred_fallthru
    _
  // Predicated region
  $region22: #{net_forward.7} parent=0 // pred_check
    _
  $region23: #{net_forward.7} parent=0 // pred_check_branch
    %22 = sbr.rel (0) target = $region25
  $region24: #{net_forward.7} parent=0 // pred_region
    _
  $region25: #{net_forward.7} parent=0 // pred_fallthru
    _
  %v24 = vld [vmem:[%s4] sm:$0xf]
  %v25 = vld [vmem:[%s4 + $0x4] sm:$0xf]
  %v26 = vld [vmem:[%s4 + $0x8] sm:$0xf]
  %v27 = vld [vmem:[%s4 + $0xc] sm:$0xf]
  %v28 = vld [vmem:[%s4 + $0x10] sm:$0xf]
  %v29 = vld [vmem:[%s4 + $0x14] sm:$0xf]
  %v30 = vld [vmem:[%s4 + $0x18] sm:$0xf]
  %v31 = vld [vmem:[%s4 + $0x1c] sm:$0xf]
  %v32 = vld [vmem:[%s4 + $0x20] sm:$0xf]
  %v33 = vld [vmem:[%s4 + $0x24] sm:$0xf]
  %v34 = vld [vmem:[%s4 + $0x28] sm:$0xf]
  %v35 = vld [vmem:[%s4 + $0x2c] sm:$0xf]
  %v36 = vld [vmem:[%s4 + $0x30] sm:$0xf]
  %v37 = vld [vmem:[%s4 + $0x34] sm:$0xf]
  %v38 = vld [vmem:[%s4 + $0x38] sm:$0xf]
  %v39 = vld [vmem:[%s4 + $0x3c] sm:$0xf]
  %v40 = vld [vmem:[%s0] sm:$0xf]
  %v41 = vld [vmem:[%s0 + $0x4] sm:$0xf]
  %v42 = vld [vmem:[%s0 + $0x8] sm:$0xf]
  %v43 = vld [vmem:[%s0 + $0xc] sm:$0xf]
  %v44 = vld [vmem:[%s0 + $0x10] sm:$0xf]
  %v45 = vld [vmem:[%s0 + $0x14] sm:$0xf]
  %v46 = vld [vmem:[%s0 + $0x18] sm:$0xf]
  %v47 = vld [vmem:[%s0 + $0x1c] sm:$0xf]
  %v48 = vld [vmem:[%s0 + $0x20] sm:$0xf]
  %v49 = vld [vmem:[%s0 + $0x24] sm:$0xf]
  %v50 = vld [vmem:[%s0 + $0x28] sm:$0xf]
  %v51 = vld [vmem:[%s0 + $0x2c] sm:$0xf]
  %v52 = vld [vmem:[%s0 + $0x30] sm:$0xf]
  %v53 = vld [vmem:[%s0 + $0x34] sm:$0xf]
  %v54 = vld [vmem:[%s0 + $0x38] sm:$0xf]
  %v55 = vld [vmem:[%s0 + $0x3c] sm:$0xf]
  %v56 = vld [vmem:[%s0 + $0x40] sm:$0xf]
  %v57 = vld [vmem:[%s0 + $0x44] sm:$0xf]
  %v58 = vld [vmem:[%s0 + $0x48] sm:$0xf]
  %v59 = vld [vmem:[%s0 + $0x4c] sm:$0xf]
  %v60 = vld [vmem:[%s0 + $0x50] sm:$0xf]
  %v61 = vld [vmem:[%s0 + $0x54] sm:$0xf]
  %v62 = vld [vmem:[%s0 + $0x58] sm:$0xf]
  %v63 = vld [vmem:[%s0 + $0x5c] sm:$0xf]
  %v64 = vld [vmem:[%s0 + $0x60] sm:$0xf]
  %v65 = vld [vmem:[%s0 + $0x64] sm:$0xf]
  %v66 = vld [vmem:[%s0 + $0x68] sm:$0xf]
  %v67 = vld [vmem:[%s0 + $0x6c] sm:$0xf]
  %v68 = vld [vmem:[%s0 + $0x70] sm:$0xf]
  %v69 = vld [vmem:[%s0 + $0x74] sm:$0xf]
  %v70 = vld [vmem:[%s0 + $0x78] sm:$0xf]
  %v71 = vld [vmem:[%s0 + $0x7c] sm:$0xf]
  %v72 = vld [vmem:[%s0 + $0x80] sm:$0xf]
  %v73 = vld [vmem:[%s0 + $0x84] sm:$0xf]
  %v74 = vld [vmem:[%s0 + $0x88] sm:$0xf]
  %v75 = vld [vmem:[%s0 + $0x8c] sm:$0xf]
  %v112 = vunpack.c.l.b16 %v40
  %v113 = vunpack.c.l.b16 %v41
  %v114 = vunpack.c.l.b16 %v42
  %v115 = vunpack.c.l.b16 %v43
  %v116 = vunpack.c.l.b16 %v44
  %v117 = vunpack.c.l.b16 %v45
  %v118 = vunpack.c.l.b16 %v46
  %v119 = vunpack.c.l.b16 %v47
  %v120 = vunpack.c.l.b16 %v48
  %v121 = vunpack.c.l.b16 %v49
  %v122 = vunpack.c.l.b16 %v50
  %v123 = vunpack.c.l.b16 %v51
  %v124 = vunpack.c.l.b16 %v52
  %v125 = vunpack.c.l.b16 %v53
  %v126 = vunpack.c.l.b16 %v54
  %v127 = vunpack.c.l.b16 %v55
  %v128 = vunpack.c.l.b16 %v56
  %v129 = vunpack.c.l.b16 %v57
  %v130 = vunpack.c.l.b16 %v58
  %v131 = vunpack.c.l.b16 %v59
  %v132 = vunpack.c.l.b16 %v60
  %v133 = vunpack.c.l.b16 %v61
  %v134 = vunpack.c.l.b16 %v62
  %v135 = vunpack.c.l.b16 %v63
  %v136 = vunpack.c.l.b16 %v64
  %v137 = vunpack.c.l.b16 %v65
  %v138 = vunpack.c.l.b16 %v66
  %v139 = vunpack.c.l.b16 %v67
  %v140 = vunpack.c.l.b16 %v68
  %v141 = vunpack.c.l.b16 %v69
  %v142 = vunpack.c.l.b16 %v70
  %v143 = vunpack.c.l.b16 %v71
  %v144 = vunpack.c.l.b16 %v72
  %v145 = vunpack.c.l.b16 %v73
  %v146 = vunpack.c.l.b16 %v74
  %v147 = vunpack.c.l.b16 %v75
  %v148 = vpack.c.b16 %v113, %v112
  %v149 = vpack.c.b16 %v115, %v114
  %v150 = vpack.c.b16 %v117, %v116
  %v151 = vpack.c.b16 %v119, %v118
  %v152 = vpack.c.b16 %v121, %v120
  %v153 = vpack.c.b16 %v123, %v122
  %v154 = vpack.c.b16 %v125, %v124
  %v155 = vpack.c.b16 %v127, %v126
  %v156 = vpack.c.b16 %v129, %v128
  %v157 = vpack.c.b16 %v131, %v130
  %v158 = vpack.c.b16 %v133, %v132
  %v159 = vpack.c.b16 %v135, %v134
  %v160 = vpack.c.b16 %v137, %v136
  %v161 = vpack.c.b16 %v139, %v138
  %v162 = vpack.c.b16 %v141, %v140
  %v163 = vpack.c.b16 %v143, %v142
  %v164 = vpack.c.b16 %v145, %v144
  %v165 = vpack.c.b16 %v147, %v146
  %v200 = vunpack.c.l.b16 %v24
  %v201 = vunpack.c.l.b16 %v25
  %v202 = vunpack.c.l.b16 %v26
  %v203 = vunpack.c.l.b16 %v27
  %v204 = vunpack.c.l.b16 %v28
  %v205 = vunpack.c.l.b16 %v29
  %v206 = vunpack.c.l.b16 %v30
  %v207 = vunpack.c.l.b16 %v31
  %v208 = vunpack.c.l.b16 %v32
  %v209 = vunpack.c.l.b16 %v33
  %v210 = vunpack.c.l.b16 %v34
  %v211 = vunpack.c.l.b16 %v35
  %v212 = vunpack.c.l.b16 %v36
  %v213 = vunpack.c.l.b16 %v37
  %v214 = vunpack.c.l.b16 %v38
  %v215 = vunpack.c.l.b16 %v39
  %v216 = vpack.c.b16 %v201, %v200
  %v217 = vpack.c.b16 %v203, %v202
  %v218 = vpack.c.b16 %v205, %v204
  %v219 = vpack.c.b16 %v207, %v206
  %v220 = vpack.c.b16 %v209, %v208
  %v221 = vpack.c.b16 %v211, %v210
  %v222 = vpack.c.b16 %v213, %v212
  %v223 = vpack.c.b16 %v215, %v214
  %232 = vmatprep.subr.bf16.mxu0 0
  %233 = vmatpush1.bf16.msra.mxu0 %v223
  %234 = vmatprep.subr.bf16.mxu0 0
  %235 = vmatpush1.bf16.msra.mxu0 %v222
  %236 = vmatprep.subr.bf16.mxu0 0
  %237 = vmatpush1.bf16.msra.mxu0 %v221
  %238 = vmatprep.subr.bf16.mxu0 0
  %239 = vmatpush1.bf16.msra.mxu0 %v220
  %240 = vmatprep.subr.bf16.mxu0 0
  %241 = vmatpush1.bf16.msra.mxu0 %v219
  %242 = vmatprep.subr.bf16.mxu0 0
  %243 = vmatpush1.bf16.msra.mxu0 %v218
  %244 = vmatprep.subr.bf16.mxu0 0
  %245 = vmatpush1.bf16.msra.mxu0 %v217
  %246 = vmatprep.subr.bf16.mxu0 0
  %247 = vmatpush1.bf16.msra.mxu0 %v216
  %248 = vmatprep.subr.bf16.mxu0 0
  %249 = vmatpush2.bf16.msra.mxu0 0
  %250 = vmatprep.subr.bf16.mxu0 0
  %251 = vmatpush2.bf16.msra.mxu0 0
  %252 = vmatprep.subr.bf16.mxu0 0
  %253 = vmatpush2.bf16.msra.mxu0 0
  %254 = vmatprep.subr.bf16.mxu0 0
  %255 = vmatpush2.bf16.msra.mxu0 0
  %256 = vmatprep.subr.bf16.mxu0 0
  %257 = vmatpush2.bf16.msra.mxu0 0
  %258 = vmatprep.subr.bf16.mxu0 0
  %259 = vmatpush2.bf16.msra.mxu0 0
  %260 = vmatprep.subr.bf16.mxu0 0
  %261 = vmatpush2.bf16.msra.mxu0 0
  %262 = vmatprep.subr.bf16.mxu0 0
  %263 = vmatpush2.bf16.msra.mxu0 0
  %264 = vmatprep.mubr.bf16.mxu0 0
  %265 = vmatmul.mubr.bf16.gmra.mxu0 %v148
  %v266 = vpop.f32.mrf.mxu0
  %v267 = vadd.f32 0.0, %v266
  %v268 = vpop.f32.mrf.mxu0
  %v269 = vpop.f32.mrf.mxu0
  %v270 = vadd.f32 0.0, %v269
  %v271 = vpop.f32.mrf.mxu0
  %272 = vmatprep.mubr.bf16.mxu0 0
  %273 = vmatmul.mubr.bf16.gmra.mxu0 %v149
  %v274 = vpop.f32.mrf.mxu0
  %v275 = vadd.f32 0.0, %v274
  %v276 = vpop.f32.mrf.mxu0
  %v277 = vpop.f32.mrf.mxu0
  %v278 = vadd.f32 0.0, %v277
  %v279 = vpop.f32.mrf.mxu0
  %280 = vmatprep.mubr.bf16.mxu0 0
  %281 = vmatmul.mubr.bf16.gmra.mxu0 %v150
  %v282 = vpop.f32.mrf.mxu0
  %v283 = vadd.f32 0.0, %v282
  %v284 = vpop.f32.mrf.mxu0
  %v285 = vpop.f32.mrf.mxu0
  %v286 = vadd.f32 0.0, %v285
  %v287 = vpop.f32.mrf.mxu0
  %288 = vmatprep.mubr.bf16.mxu0 0
  %289 = vmatmul.mubr.bf16.gmra.mxu0 %v151
  %v290 = vpop.f32.mrf.mxu0
  %v291 = vadd.f32 0.0, %v290
  %v292 = vpop.f32.mrf.mxu0
  %v293 = vpop.f32.mrf.mxu0
  %v294 = vadd.f32 0.0, %v293
  %v295 = vpop.f32.mrf.mxu0
  %296 = vmatprep.mubr.bf16.mxu0 0
  %297 = vmatmul.mubr.bf16.gmra.mxu0 %v152
  %v298 = vpop.f32.mrf.mxu0
  %v299 = vadd.f32 0.0, %v298
  %v300 = vpop.f32.mrf.mxu0
  %v301 = vpop.f32.mrf.mxu0
  %v302 = vadd.f32 0.0, %v301
  %v303 = vpop.f32.mrf.mxu0
  %304 = vmatprep.mubr.bf16.mxu0 0
  %305 = vmatmul.mubr.bf16.gmra.mxu0 %v153
  %v306 = vpop.f32.mrf.mxu0
  %v307 = vadd.f32 0.0, %v306
  %v308 = vpop.f32.mrf.mxu0
  %v309 = vpop.f32.mrf.mxu0
  %v310 = vadd.f32 0.0, %v309
  %v311 = vpop.f32.mrf.mxu0
  %312 = vmatprep.mubr.bf16.mxu0 0
  %313 = vmatmul.mubr.bf16.gmra.mxu0 %v154
  %v314 = vpop.f32.mrf.mxu0
  %v315 = vadd.f32 0.0, %v314
  %v316 = vpop.f32.mrf.mxu0
  %v317 = vpop.f32.mrf.mxu0
  %v318 = vadd.f32 0.0, %v317
  %v319 = vpop.f32.mrf.mxu0
  %320 = vmatprep.mubr.bf16.mxu0 0
  %321 = vmatmul.mubr.bf16.gmra.mxu0 %v155
  %v322 = vpop.f32.mrf.mxu0
  %v323 = vadd.f32 0.0, %v322
  %v324 = vpop.f32.mrf.mxu0
  %v325 = vpop.f32.mrf.mxu0
  %v326 = vadd.f32 0.0, %v325
  %v327 = vpop.f32.mrf.mxu0
  %328 = vmatprep.mubr.bf16.mxu0 0
  %329 = vmatmul.mubr.bf16.gmra.mxu0 %v156
  %v330 = vpop.f32.mrf.mxu0
  %v331 = vadd.f32 0.0, %v330
  %v332 = vpop.f32.mrf.mxu0
  %v333 = vpop.f32.mrf.mxu0
  %v334 = vadd.f32 0.0, %v333
  %v335 = vpop.f32.mrf.mxu0
  %336 = vmatprep.mubr.bf16.mxu0 0
  %337 = vmatmul.mubr.bf16.gmra.mxu0 %v157
  %v338 = vpop.f32.mrf.mxu0
  %v339 = vadd.f32 0.0, %v338
  %v340 = vpop.f32.mrf.mxu0
  %v341 = vpop.f32.mrf.mxu0
  %v342 = vadd.f32 0.0, %v341
  %v343 = vpop.f32.mrf.mxu0
  %344 = vmatprep.mubr.bf16.mxu0 0
  %345 = vmatmul.mubr.bf16.gmra.mxu0 %v158
  %v346 = vpop.f32.mrf.mxu0
  %v347 = vadd.f32 0.0, %v346
  %v348 = vpop.f32.mrf.mxu0
  %v349 = vpop.f32.mrf.mxu0
  %v350 = vadd.f32 0.0, %v349
  %v351 = vpop.f32.mrf.mxu0
  %352 = vmatprep.mubr.bf16.mxu0 0
  %353 = vmatmul.mubr.bf16.gmra.mxu0 %v159
  %v354 = vpop.f32.mrf.mxu0
  %v355 = vadd.f32 0.0, %v354
  %v356 = vpop.f32.mrf.mxu0
  %v357 = vpop.f32.mrf.mxu0
  %v358 = vadd.f32 0.0, %v357
  %v359 = vpop.f32.mrf.mxu0
  %360 = vmatprep.mubr.bf16.mxu0 0
  %361 = vmatmul.mubr.bf16.gmra.mxu0 %v160
  %v362 = vpop.f32.mrf.mxu0
  %v363 = vadd.f32 0.0, %v362
  %v364 = vpop.f32.mrf.mxu0
  %v365 = vpop.f32.mrf.mxu0
  %v366 = vadd.f32 0.0, %v365
  %v367 = vpop.f32.mrf.mxu0
  %368 = vmatprep.mubr.bf16.mxu0 0
  %369 = vmatmul.mubr.bf16.gmra.mxu0 %v161
  %v370 = vpop.f32.mrf.mxu0
  %v371 = vadd.f32 0.0, %v370
  %v372 = vpop.f32.mrf.mxu0
  %v373 = vpop.f32.mrf.mxu0
  %v374 = vadd.f32 0.0, %v373
  %v375 = vpop.f32.mrf.mxu0
  %376 = vmatprep.mubr.bf16.mxu0 0
  %377 = vmatmul.mubr.bf16.gmra.mxu0 %v162
  %v378 = vpop.f32.mrf.mxu0
  %v379 = vadd.f32 0.0, %v378
  %v380 = vpop.f32.mrf.mxu0
  %v381 = vpop.f32.mrf.mxu0
  %v382 = vadd.f32 0.0, %v381
  %v383 = vpop.f32.mrf.mxu0
  %384 = vmatprep.mubr.bf16.mxu0 0
  %385 = vmatmul.mubr.bf16.gmra.mxu0 %v163
  %v386 = vpop.f32.mrf.mxu0
  %v387 = vadd.f32 0.0, %v386
  %v388 = vpop.f32.mrf.mxu0
  %v389 = vpop.f32.mrf.mxu0
  %v390 = vadd.f32 0.0, %v389
  %v391 = vpop.f32.mrf.mxu0
  %392 = vmatprep.mubr.bf16.mxu0 0
  %393 = vmatmul.mubr.bf16.gmra.mxu0 %v164
  %v394 = vpop.f32.mrf.mxu0
  %v395 = vadd.f32 0.0, %v394
  %v396 = vpop.f32.mrf.mxu0
  %v397 = vpop.f32.mrf.mxu0
  %v398 = vadd.f32 0.0, %v397
  %v399 = vpop.f32.mrf.mxu0
  %400 = vmatprep.mubr.bf16.mxu0 0
  %401 = vmatmul.mubr.bf16.gmra.mxu0 %v165
  %v402 = vpop.f32.mrf.mxu0
  %v403 = vadd.f32 0.0, %v402
  %v404 = vpop.f32.mrf.mxu0
  %v405 = vpop.f32.mrf.mxu0
  %v406 = vadd.f32 0.0, %v405
  %v407 = vpop.f32.mrf.mxu0
  %408 = vdwg.mxu0
  %v409 = vld [vmem:[%s1] sm:$0xf]
  %v410 = vld [vmem:[%s1 + $0x4] sm:$0xf]
  %v411 = vld [vmem:[%s1 + $0x8] sm:$0xf]
  %v412 = vld [vmem:[%s1 + $0xc] sm:$0xf]
  %v413 = vld [vmem:[%s1 + $0x10] sm:$0xf]
  %v414 = vld [vmem:[%s1 + $0x14] sm:$0xf]
  %v415 = vld [vmem:[%s1 + $0x18] sm:$0xf]
  %v416 = vld [vmem:[%s1 + $0x1c] sm:$0xf]
  %v417 = vld [vmem:[%s1 + $0x20] sm:$0xf]
  %v418 = vld [vmem:[%s1 + $0x24] sm:$0xf]
  %v419 = vld [vmem:[%s1 + $0x28] sm:$0xf]
  %v420 = vld [vmem:[%s1 + $0x2c] sm:$0xf]
  %v421 = vld [vmem:[%s1 + $0x30] sm:$0xf]
  %v422 = vld [vmem:[%s1 + $0x34] sm:$0xf]
  %v423 = vld [vmem:[%s1 + $0x38] sm:$0xf]
  %v424 = vld [vmem:[%s1 + $0x3c] sm:$0xf]
  %v425 = vld [vmem:[%s1 + $0x40] sm:$0xf]
  %v426 = vld [vmem:[%s1 + $0x44] sm:$0xf]
  %v427 = vld [vmem:[%s1 + $0x48] sm:$0xf]
  %v428 = vld [vmem:[%s1 + $0x4c] sm:$0xf]
  %v429 = vld [vmem:[%s1 + $0x50] sm:$0xf]
  %v430 = vld [vmem:[%s1 + $0x54] sm:$0xf]
  %v431 = vld [vmem:[%s1 + $0x58] sm:$0xf]
  %v432 = vld [vmem:[%s1 + $0x5c] sm:$0xf]
  %v433 = vld [vmem:[%s1 + $0x60] sm:$0xf]
  %v434 = vld [vmem:[%s1 + $0x64] sm:$0xf]
  %v435 = vld [vmem:[%s1 + $0x68] sm:$0xf]
  %v436 = vld [vmem:[%s1 + $0x6c] sm:$0xf]
  %v437 = vld [vmem:[%s1 + $0x70] sm:$0xf]
  %v438 = vld [vmem:[%s1 + $0x74] sm:$0xf]
  %v439 = vld [vmem:[%s1 + $0x78] sm:$0xf]
  %v440 = vld [vmem:[%s1 + $0x7c] sm:$0xf]
  %v441 = vld [vmem:[%s1 + $0x80] sm:$0xf]
  %v442 = vld [vmem:[%s1 + $0x84] sm:$0xf]
  %v443 = vld [vmem:[%s1 + $0x88] sm:$0xf]
  %v444 = vld [vmem:[%s1 + $0x8c] sm:$0xf]
  %v481 = vunpack.c.l.b16 %v409
  %v482 = vunpack.c.l.b16 %v410
  %v483 = vunpack.c.l.b16 %v411
  %v484 = vunpack.c.l.b16 %v412
  %v485 = vunpack.c.l.b16 %v413
  %v486 = vunpack.c.l.b16 %v414
  %v487 = vunpack.c.l.b16 %v415
  %v488 = vunpack.c.l.b16 %v416
  %v489 = vunpack.c.l.b16 %v417
  %v490 = vunpack.c.l.b16 %v418
  %v491 = vunpack.c.l.b16 %v419
  %v492 = vunpack.c.l.b16 %v420
  %v493 = vunpack.c.l.b16 %v421
  %v494 = vunpack.c.l.b16 %v422
  %v495 = vunpack.c.l.b16 %v423
  %v496 = vunpack.c.l.b16 %v424
  %v497 = vunpack.c.l.b16 %v425
  %v498 = vunpack.c.l.b16 %v426
  %v499 = vunpack.c.l.b16 %v427
  %v500 = vunpack.c.l.b16 %v428
  %v501 = vunpack.c.l.b16 %v429
  %v502 = vunpack.c.l.b16 %v430
  %v503 = vunpack.c.l.b16 %v431
  %v504 = vunpack.c.l.b16 %v432
  %v505 = vunpack.c.l.b16 %v433
  %v506 = vunpack.c.l.b16 %v434
  %v507 = vunpack.c.l.b16 %v435
  %v508 = vunpack.c.l.b16 %v436
  %v509 = vunpack.c.l.b16 %v437
  %v510 = vunpack.c.l.b16 %v438
  %v511 = vunpack.c.l.b16 %v439
  %v512 = vunpack.c.l.b16 %v440
  %v513 = vunpack.c.l.b16 %v441
  %v514 = vunpack.c.l.b16 %v442
  %v515 = vunpack.c.l.b16 %v443
  %v516 = vunpack.c.l.b16 %v444
  %v517 = vpack.c.b16 %v482, %v481
  %v518 = vpack.c.b16 %v484, %v483
  %v519 = vpack.c.b16 %v486, %v485
  %v520 = vpack.c.b16 %v488, %v487
  %v521 = vpack.c.b16 %v490, %v489
  %v522 = vpack.c.b16 %v492, %v491
  %v523 = vpack.c.b16 %v494, %v493
  %v524 = vpack.c.b16 %v496, %v495
  %v525 = vpack.c.b16 %v498, %v497
  %v526 = vpack.c.b16 %v500, %v499
  %v527 = vpack.c.b16 %v502, %v501
  %v528 = vpack.c.b16 %v504, %v503
  %v529 = vpack.c.b16 %v506, %v505
  %v530 = vpack.c.b16 %v508, %v507
  %v531 = vpack.c.b16 %v510, %v509
  %v532 = vpack.c.b16 %v512, %v511
  %v533 = vpack.c.b16 %v514, %v513
  %v534 = vpack.c.b16 %v516, %v515
  %553 = vmatprep.subr.bf16.mxu0 0
  %554 = vmatpush1.bf16.msra.mxu0 %v223
  %555 = vmatprep.subr.bf16.mxu0 0
  %556 = vmatpush1.bf16.msra.mxu0 %v222
  %557 = vmatprep.subr.bf16.mxu0 0
  %558 = vmatpush1.bf16.msra.mxu0 %v221
  %559 = vmatprep.subr.bf16.mxu0 0
  %560 = vmatpush1.bf16.msra.mxu0 %v220
  %561 = vmatprep.subr.bf16.mxu0 0
  %562 = vmatpush1.bf16.msra.mxu0 %v219
  %563 = vmatprep.subr.bf16.mxu0 0
  %564 = vmatpush1.bf16.msra.mxu0 %v218
  %565 = vmatprep.subr.bf16.mxu0 0
  %566 = vmatpush1.bf16.msra.mxu0 %v217
  %567 = vmatprep.subr.bf16.mxu0 0
  %568 = vmatpush1.bf16.msra.mxu0 %v216
  %569 = vmatprep.subr.bf16.mxu0 0
  %570 = vmatpush2.bf16.msra.mxu0 0
  %571 = vmatprep.subr.bf16.mxu0 0
  %572 = vmatpush2.bf16.msra.mxu0 0
  %573 = vmatprep.subr.bf16.mxu0 0
  %574 = vmatpush2.bf16.msra.mxu0 0
  %575 = vmatprep.subr.bf16.mxu0 0
  %576 = vmatpush2.bf16.msra.mxu0 0
  %577 = vmatprep.subr.bf16.mxu0 0
  %578 = vmatpush2.bf16.msra.mxu0 0
  %579 = vmatprep.subr.bf16.mxu0 0
  %580 = vmatpush2.bf16.msra.mxu0 0
  %581 = vmatprep.subr.bf16.mxu0 0
  %582 = vmatpush2.bf16.msra.mxu0 0
  %583 = vmatprep.subr.bf16.mxu0 0
  %584 = vmatpush2.bf16.msra.mxu0 0
  %585 = vmatprep.mubr.bf16.mxu0 0
  %586 = vmatmul.mubr.bf16.gmra.mxu0 %v517
  %v587 = vpop.f32.mrf.mxu0
  %v588 = vadd.f32 0.0, %v587
  %v589 = vpop.f32.mrf.mxu0
  %v590 = vpop.f32.mrf.mxu0
  %v591 = vadd.f32 0.0, %v590
  %v592 = vpop.f32.mrf.mxu0
  %593 = vmatprep.mubr.bf16.mxu0 0
  %594 = vmatmul.mubr.bf16.gmra.mxu0 %v518
  %v595 = vpop.f32.mrf.mxu0
  %v596 = vadd.f32 0.0, %v595
  %v597 = vpop.f32.mrf.mxu0
  %v598 = vpop.f32.mrf.mxu0
  %v599 = vadd.f32 0.0, %v598
  %v600 = vpop.f32.mrf.mxu0
  %601 = vmatprep.mubr.bf16.mxu0 0
  %602 = vmatmul.mubr.bf16.gmra.mxu0 %v519
  %v603 = vpop.f32.mrf.mxu0
  %v604 = vadd.f32 0.0, %v603
  %v605 = vpop.f32.mrf.mxu0
  %v606 = vpop.f32.mrf.mxu0
  %v607 = vadd.f32 0.0, %v606
  %v608 = vpop.f32.mrf.mxu0
  %609 = vmatprep.mubr.bf16.mxu0 0
  %610 = vmatmul.mubr.bf16.gmra.mxu0 %v520
  %v611 = vpop.f32.mrf.mxu0
  %v612 = vadd.f32 0.0, %v611
  %v613 = vpop.f32.mrf.mxu0
  %v614 = vpop.f32.mrf.mxu0
  %v615 = vadd.f32 0.0, %v614
  %v616 = vpop.f32.mrf.mxu0
  %617 = vmatprep.mubr.bf16.mxu0 0
  %618 = vmatmul.mubr.bf16.gmra.mxu0 %v521
  %v619 = vpop.f32.mrf.mxu0
  %v620 = vadd.f32 0.0, %v619
  %v621 = vpop.f32.mrf.mxu0
  %v622 = vpop.f32.mrf.mxu0
  %v623 = vadd.f32 0.0, %v622
  %v624 = vpop.f32.mrf.mxu0
  %625 = vmatprep.mubr.bf16.mxu0 0
  %626 = vmatmul.mubr.bf16.gmra.mxu0 %v522
  %v627 = vpop.f32.mrf.mxu0
  %v628 = vadd.f32 0.0, %v627
  %v629 = vpop.f32.mrf.mxu0
  %v630 = vpop.f32.mrf.mxu0
  %v631 = vadd.f32 0.0, %v630
  %v632 = vpop.f32.mrf.mxu0
  %633 = vmatprep.mubr.bf16.mxu0 0
  %634 = vmatmul.mubr.bf16.gmra.mxu0 %v523
  %v635 = vpop.f32.mrf.mxu0
  %v636 = vadd.f32 0.0, %v635
  %v637 = vpop.f32.mrf.mxu0
  %v638 = vpop.f32.mrf.mxu0
  %v639 = vadd.f32 0.0, %v638
  %v640 = vpop.f32.mrf.mxu0
  %641 = vmatprep.mubr.bf16.mxu0 0
  %642 = vmatmul.mubr.bf16.gmra.mxu0 %v524
  %v643 = vpop.f32.mrf.mxu0
  %v644 = vadd.f32 0.0, %v643
  %v645 = vpop.f32.mrf.mxu0
  %v646 = vpop.f32.mrf.mxu0
  %v647 = vadd.f32 0.0, %v646
  %v648 = vpop.f32.mrf.mxu0
  %649 = vmatprep.mubr.bf16.mxu0 0
  %650 = vmatmul.mubr.bf16.gmra.mxu0 %v525
  %v651 = vpop.f32.mrf.mxu0
  %v652 = vadd.f32 0.0, %v651
  %v653 = vpop.f32.mrf.mxu0
  %v654 = vpop.f32.mrf.mxu0
  %v655 = vadd.f32 0.0, %v654
  %v656 = vpop.f32.mrf.mxu0
  %657 = vmatprep.mubr.bf16.mxu0 0
  %658 = vmatmul.mubr.bf16.gmra.mxu0 %v526
  %v659 = vpop.f32.mrf.mxu0
  %v660 = vadd.f32 0.0, %v659
  %v661 = vpop.f32.mrf.mxu0
  %v662 = vpop.f32.mrf.mxu0
  %v663 = vadd.f32 0.0, %v662
  %v664 = vpop.f32.mrf.mxu0
  %665 = vmatprep.mubr.bf16.mxu0 0
  %666 = vmatmul.mubr.bf16.gmra.mxu0 %v527
  %v667 = vpop.f32.mrf.mxu0
  %v668 = vadd.f32 0.0, %v667
  %v669 = vpop.f32.mrf.mxu0
  %v670 = vpop.f32.mrf.mxu0
  %v671 = vadd.f32 0.0, %v670
  %v672 = vpop.f32.mrf.mxu0
  %673 = vmatprep.mubr.bf16.mxu0 0
  %674 = vmatmul.mubr.bf16.gmra.mxu0 %v528
  %v675 = vpop.f32.mrf.mxu0
  %v676 = vadd.f32 0.0, %v675
  %v677 = vpop.f32.mrf.mxu0
  %v678 = vpop.f32.mrf.mxu0
  %v679 = vadd.f32 0.0, %v678
  %v680 = vpop.f32.mrf.mxu0
  %681 = vmatprep.mubr.bf16.mxu0 0
  %682 = vmatmul.mubr.bf16.gmra.mxu0 %v529
  %v683 = vpop.f32.mrf.mxu0
  %v684 = vadd.f32 0.0, %v683
  %v685 = vpop.f32.mrf.mxu0
  %v686 = vpop.f32.mrf.mxu0
  %v687 = vadd.f32 0.0, %v686
  %v688 = vpop.f32.mrf.mxu0
  %689 = vmatprep.mubr.bf16.mxu0 0
  %690 = vmatmul.mubr.bf16.gmra.mxu0 %v530
  %v691 = vpop.f32.mrf.mxu0
  %v692 = vadd.f32 0.0, %v691
  %v693 = vpop.f32.mrf.mxu0
  %v694 = vpop.f32.mrf.mxu0
  %v695 = vadd.f32 0.0, %v694
  %v696 = vpop.f32.mrf.mxu0
  %697 = vmatprep.mubr.bf16.mxu0 0
  %698 = vmatmul.mubr.bf16.gmra.mxu0 %v531
  %v699 = vpop.f32.mrf.mxu0
  %v700 = vadd.f32 0.0, %v699
  %v701 = vpop.f32.mrf.mxu0
  %v702 = vpop.f32.mrf.mxu0
  %v703 = vadd.f32 0.0, %v702
  %v704 = vpop.f32.mrf.mxu0
  %705 = vmatprep.mubr.bf16.mxu0 0
  %706 = vmatmul.mubr.bf16.gmra.mxu0 %v532
  %v707 = vpop.f32.mrf.mxu0
  %v708 = vadd.f32 0.0, %v707
  %v709 = vpop.f32.mrf.mxu0
  %v710 = vpop.f32.mrf.mxu0
  %v711 = vadd.f32 0.0, %v710
  %v712 = vpop.f32.mrf.mxu0
  %713 = vmatprep.mubr.bf16.mxu0 0
  %714 = vmatmul.mubr.bf16.gmra.mxu0 %v533
  %v715 = vpop.f32.mrf.mxu0
  %v716 = vadd.f32 0.0, %v715
  %v717 = vpop.f32.mrf.mxu0
  %v718 = vpop.f32.mrf.mxu0
  %v719 = vadd.f32 0.0, %v718
  %v720 = vpop.f32.mrf.mxu0
  %721 = vmatprep.mubr.bf16.mxu0 0
  %722 = vmatmul.mubr.bf16.gmra.mxu0 %v534
  %v723 = vpop.f32.mrf.mxu0
  %v724 = vadd.f32 0.0, %v723
  %v725 = vpop.f32.mrf.mxu0
  %v726 = vpop.f32.mrf.mxu0
  %v727 = vadd.f32 0.0, %v726
  %v728 = vpop.f32.mrf.mxu0
  %729 = vdwg.mxu0
  %v730 = vld [vmem:[%s2] sm:$0xf]
  %v731 = vld [vmem:[%s2 + $0x4] sm:$0xf]
  %v732 = vld [vmem:[%s2 + $0x8] sm:$0xf]
  %v733 = vld [vmem:[%s2 + $0xc] sm:$0xf]
  %v734 = vld [vmem:[%s2 + $0x10] sm:$0xf]
  %v735 = vld [vmem:[%s2 + $0x14] sm:$0xf]
  %v736 = vld [vmem:[%s2 + $0x18] sm:$0xf]
  %v737 = vld [vmem:[%s2 + $0x1c] sm:$0xf]
  %v738 = vld [vmem:[%s2 + $0x20] sm:$0xf]
  %v739 = vld [vmem:[%s2 + $0x24] sm:$0xf]
  %v740 = vld [vmem:[%s2 + $0x28] sm:$0xf]
  %v741 = vld [vmem:[%s2 + $0x2c] sm:$0xf]
  %v742 = vld [vmem:[%s2 + $0x30] sm:$0xf]
  %v743 = vld [vmem:[%s2 + $0x34] sm:$0xf]
  %v744 = vld [vmem:[%s2 + $0x38] sm:$0xf]
  %v745 = vld [vmem:[%s2 + $0x3c] sm:$0xf]
  %v746 = vld [vmem:[%s2 + $0x40] sm:$0xf]
  %v747 = vld [vmem:[%s2 + $0x44] sm:$0xf]
  %v748 = vld [vmem:[%s2 + $0x48] sm:$0xf]
  %v749 = vld [vmem:[%s2 + $0x4c] sm:$0xf]
  %v750 = vld [vmem:[%s2 + $0x50] sm:$0xf]
  %v751 = vld [vmem:[%s2 + $0x54] sm:$0xf]
  %v752 = vld [vmem:[%s2 + $0x58] sm:$0xf]
  %v753 = vld [vmem:[%s2 + $0x5c] sm:$0xf]
  %v754 = vld [vmem:[%s2 + $0x60] sm:$0xf]
  %v755 = vld [vmem:[%s2 + $0x64] sm:$0xf]
  %v756 = vld [vmem:[%s2 + $0x68] sm:$0xf]
  %v757 = vld [vmem:[%s2 + $0x6c] sm:$0xf]
  %v758 = vld [vmem:[%s2 + $0x70] sm:$0xf]
  %v759 = vld [vmem:[%s2 + $0x74] sm:$0xf]
  %v760 = vld [vmem:[%s2 + $0x78] sm:$0xf]
  %v761 = vld [vmem:[%s2 + $0x7c] sm:$0xf]
  %v762 = vld [vmem:[%s2 + $0x80] sm:$0xf]
  %v763 = vld [vmem:[%s2 + $0x84] sm:$0xf]
  %v764 = vld [vmem:[%s2 + $0x88] sm:$0xf]
  %v765 = vld [vmem:[%s2 + $0x8c] sm:$0xf]
  %v802 = vunpack.c.l.b16 %v730
  %v803 = vunpack.c.l.b16 %v731
  %v804 = vunpack.c.l.b16 %v732
  %v805 = vunpack.c.l.b16 %v733
  %v806 = vunpack.c.l.b16 %v734
  %v807 = vunpack.c.l.b16 %v735
  %v808 = vunpack.c.l.b16 %v736
  %v809 = vunpack.c.l.b16 %v737
  %v810 = vunpack.c.l.b16 %v738
  %v811 = vunpack.c.l.b16 %v739
  %v812 = vunpack.c.l.b16 %v740
  %v813 = vunpack.c.l.b16 %v741
  %v814 = vunpack.c.l.b16 %v742
  %v815 = vunpack.c.l.b16 %v743
  %v816 = vunpack.c.l.b16 %v744
  %v817 = vunpack.c.l.b16 %v745
  %v818 = vunpack.c.l.b16 %v746
  %v819 = vunpack.c.l.b16 %v747
  %v820 = vunpack.c.l.b16 %v748
  %v821 = vunpack.c.l.b16 %v749
  %v822 = vunpack.c.l.b16 %v750
  %v823 = vunpack.c.l.b16 %v751
  %v824 = vunpack.c.l.b16 %v752
  %v825 = vunpack.c.l.b16 %v753
  %v826 = vunpack.c.l.b16 %v754
  %v827 = vunpack.c.l.b16 %v755
  %v828 = vunpack.c.l.b16 %v756
  %v829 = vunpack.c.l.b16 %v757
  %v830 = vunpack.c.l.b16 %v758
  %v831 = vunpack.c.l.b16 %v759
  %v832 = vunpack.c.l.b16 %v760
  %v833 = vunpack.c.l.b16 %v761
  %v834 = vunpack.c.l.b16 %v762
  %v835 = vunpack.c.l.b16 %v763
  %v836 = vunpack.c.l.b16 %v764
  %v837 = vunpack.c.l.b16 %v765
  %v838 = vpack.c.b16 %v803, %v802
  %v839 = vpack.c.b16 %v805, %v804
  %v840 = vpack.c.b16 %v807, %v806
  %v841 = vpack.c.b16 %v809, %v808
  %v842 = vpack.c.b16 %v811, %v810
  %v843 = vpack.c.b16 %v813, %v812
  %v844 = vpack.c.b16 %v815, %v814
  %v845 = vpack.c.b16 %v817, %v816
  %v846 = vpack.c.b16 %v819, %v818
  %v847 = vpack.c.b16 %v821, %v820
  %v848 = vpack.c.b16 %v823, %v822
  %v849 = vpack.c.b16 %v825, %v824
  %v850 = vpack.c.b16 %v827, %v826
  %v851 = vpack.c.b16 %v829, %v828
  %v852 = vpack.c.b16 %v831, %v830
  %v853 = vpack.c.b16 %v833, %v832
  %v854 = vpack.c.b16 %v835, %v834
  %v855 = vpack.c.b16 %v837, %v836
  %874 = vmatprep.subr.bf16.mxu0 0
  %875 = vmatpush1.bf16.msra.mxu0 %v223
  %876 = vmatprep.subr.bf16.mxu0 0
  %877 = vmatpush1.bf16.msra.mxu0 %v222
  %878 = vmatprep.subr.bf16.mxu0 0
  %879 = vmatpush1.bf16.msra.mxu0 %v221
  %880 = vmatprep.subr.bf16.mxu0 0
  %881 = vmatpush1.bf16.msra.mxu0 %v220
  %882 = vmatprep.subr.bf16.mxu0 0
  %883 = vmatpush1.bf16.msra.mxu0 %v219
  %884 = vmatprep.subr.bf16.mxu0 0
  %885 = vmatpush1.bf16.msra.mxu0 %v218
  %886 = vmatprep.subr.bf16.mxu0 0
  %887 = vmatpush1.bf16.msra.mxu0 %v217
  %888 = vmatprep.subr.bf16.mxu0 0
  %889 = vmatpush1.bf16.msra.mxu0 %v216
  %890 = vmatprep.subr.bf16.mxu0 0
  %891 = vmatpush2.bf16.msra.mxu0 0
  %892 = vmatprep.subr.bf16.mxu0 0
  %893 = vmatpush2.bf16.msra.mxu0 0
  %894 = vmatprep.subr.bf16.mxu0 0
  %895 = vmatpush2.bf16.msra.mxu0 0
  %896 = vmatprep.subr.bf16.mxu0 0
  %897 = vmatpush2.bf16.msra.mxu0 0
  %898 = vmatprep.subr.bf16.mxu0 0
  %899 = vmatpush2.bf16.msra.mxu0 0
  %900 = vmatprep.subr.bf16.mxu0 0
  %901 = vmatpush2.bf16.msra.mxu0 0
  %902 = vmatprep.subr.bf16.mxu0 0
  %903 = vmatpush2.bf16.msra.mxu0 0
  %904 = vmatprep.subr.bf16.mxu0 0
  %905 = vmatpush2.bf16.msra.mxu0 0
  %906 = vmatprep.mubr.bf16.mxu0 0
  %907 = vmatmul.mubr.bf16.gmra.mxu0 %v838
  %v908 = vpop.f32.mrf.mxu0
  %v909 = vadd.f32 0.0, %v908
  %v910 = vpop.f32.mrf.mxu0
  %v911 = vpop.f32.mrf.mxu0
  %v912 = vadd.f32 0.0, %v911
  %v913 = vpop.f32.mrf.mxu0
  %914 = vmatprep.mubr.bf16.mxu0 0
  %915 = vmatmul.mubr.bf16.gmra.mxu0 %v839
  %v916 = vpop.f32.mrf.mxu0
  %v917 = vadd.f32 0.0, %v916
  %v918 = vpop.f32.mrf.mxu0
  %v919 = vpop.f32.mrf.mxu0
  %v920 = vadd.f32 0.0, %v919
  %v921 = vpop.f32.mrf.mxu0
  %922 = vmatprep.mubr.bf16.mxu0 0
  %923 = vmatmul.mubr.bf16.gmra.mxu0 %v840
  %v924 = vpop.f32.mrf.mxu0
  %v925 = vadd.f32 0.0, %v924
  %v926 = vpop.f32.mrf.mxu0
  %v927 = vpop.f32.mrf.mxu0
  %v928 = vadd.f32 0.0, %v927
  %v929 = vpop.f32.mrf.mxu0
  %930 = vmatprep.mubr.bf16.mxu0 0
  %931 = vmatmul.mubr.bf16.gmra.mxu0 %v841
  %v932 = vpop.f32.mrf.mxu0
  %v933 = vadd.f32 0.0, %v932
  %v934 = vpop.f32.mrf.mxu0
  %v935 = vpop.f32.mrf.mxu0
  %v936 = vadd.f32 0.0, %v935
  %v937 = vpop.f32.mrf.mxu0
  %938 = vmatprep.mubr.bf16.mxu0 0
  %939 = vmatmul.mubr.bf16.gmra.mxu0 %v842
  %v940 = vpop.f32.mrf.mxu0
  %v941 = vadd.f32 0.0, %v940
  %v942 = vpop.f32.mrf.mxu0
  %v943 = vpop.f32.mrf.mxu0
  %v944 = vadd.f32 0.0, %v943
  %v945 = vpop.f32.mrf.mxu0
  %946 = vmatprep.mubr.bf16.mxu0 0
  %947 = vmatmul.mubr.bf16.gmra.mxu0 %v843
  %v948 = vpop.f32.mrf.mxu0
  %v949 = vadd.f32 0.0, %v948
  %v950 = vpop.f32.mrf.mxu0
  %v951 = vpop.f32.mrf.mxu0
  %v952 = vadd.f32 0.0, %v951
  %v953 = vpop.f32.mrf.mxu0
  %954 = vmatprep.mubr.bf16.mxu0 0
  %955 = vmatmul.mubr.bf16.gmra.mxu0 %v844
  %v956 = vpop.f32.mrf.mxu0
  %v957 = vadd.f32 0.0, %v956
  %v958 = vpop.f32.mrf.mxu0
  %v959 = vpop.f32.mrf.mxu0
  %v960 = vadd.f32 0.0, %v959
  %v961 = vpop.f32.mrf.mxu0
  %962 = vmatprep.mubr.bf16.mxu0 0
  %963 = vmatmul.mubr.bf16.gmra.mxu0 %v845
  %v964 = vpop.f32.mrf.mxu0
  %v965 = vadd.f32 0.0, %v964
  %v966 = vpop.f32.mrf.mxu0
  %v967 = vpop.f32.mrf.mxu0
  %v968 = vadd.f32 0.0, %v967
  %v969 = vpop.f32.mrf.mxu0
  %970 = vmatprep.mubr.bf16.mxu0 0
  %971 = vmatmul.mubr.bf16.gmra.mxu0 %v846
  %v972 = vpop.f32.mrf.mxu0
  %v973 = vadd.f32 0.0, %v972
  %v974 = vpop.f32.mrf.mxu0
  %v975 = vpop.f32.mrf.mxu0
  %v976 = vadd.f32 0.0, %v975
  %v977 = vpop.f32.mrf.mxu0
  %978 = vmatprep.mubr.bf16.mxu0 0
  %979 = vmatmul.mubr.bf16.gmra.mxu0 %v847
  %v980 = vpop.f32.mrf.mxu0
  %v981 = vadd.f32 0.0, %v980
  %v982 = vpop.f32.mrf.mxu0
  %v983 = vpop.f32.mrf.mxu0
  %v984 = vadd.f32 0.0, %v983
  %v985 = vpop.f32.mrf.mxu0
  %986 = vmatprep.mubr.bf16.mxu0 0
  %987 = vmatmul.mubr.bf16.gmra.mxu0 %v848
  %v988 = vpop.f32.mrf.mxu0
  %v989 = vadd.f32 0.0, %v988
  %v990 = vpop.f32.mrf.mxu0
  %v991 = vpop.f32.mrf.mxu0
  %v992 = vadd.f32 0.0, %v991
  %v993 = vpop.f32.mrf.mxu0
  %994 = vmatprep.mubr.bf16.mxu0 0
  %995 = vmatmul.mubr.bf16.gmra.mxu0 %v849
  %v996 = vpop.f32.mrf.mxu0
  %v997 = vadd.f32 0.0, %v996
  %v998 = vpop.f32.mrf.mxu0
  %v999 = vpop.f32.mrf.mxu0
  %v1000 = vadd.f32 0.0, %v999
  %v1001 = vpop.f32.mrf.mxu0
  %1002 = vmatprep.mubr.bf16.mxu0 0
  %1003 = vmatmul.mubr.bf16.gmra.mxu0 %v850
  %v1004 = vpop.f32.mrf.mxu0
  %v1005 = vadd.f32 0.0, %v1004
  %v1006 = vpop.f32.mrf.mxu0
  %v1007 = vpop.f32.mrf.mxu0
  %v1008 = vadd.f32 0.0, %v1007
  %v1009 = vpop.f32.mrf.mxu0
  %1010 = vmatprep.mubr.bf16.mxu0 0
  %1011 = vmatmul.mubr.bf16.gmra.mxu0 %v851
  %v1012 = vpop.f32.mrf.mxu0
  %v1013 = vadd.f32 0.0, %v1012
  %v1014 = vpop.f32.mrf.mxu0
  %v1015 = vpop.f32.mrf.mxu0
  %v1016 = vadd.f32 0.0, %v1015
  %v1017 = vpop.f32.mrf.mxu0
  %1018 = vmatprep.mubr.bf16.mxu0 0
  %1019 = vmatmul.mubr.bf16.gmra.mxu0 %v852
  %v1020 = vpop.f32.mrf.mxu0
  %v1021 = vadd.f32 0.0, %v1020
  %v1022 = vpop.f32.mrf.mxu0
  %v1023 = vpop.f32.mrf.mxu0
  %v1024 = vadd.f32 0.0, %v1023
  %v1025 = vpop.f32.mrf.mxu0
  %1026 = vmatprep.mubr.bf16.mxu0 0
  %1027 = vmatmul.mubr.bf16.gmra.mxu0 %v853
  %v1028 = vpop.f32.mrf.mxu0
  %v1029 = vadd.f32 0.0, %v1028
  %v1030 = vpop.f32.mrf.mxu0
  %v1031 = vpop.f32.mrf.mxu0
  %v1032 = vadd.f32 0.0, %v1031
  %v1033 = vpop.f32.mrf.mxu0
  %1034 = vmatprep.mubr.bf16.mxu0 0
  %1035 = vmatmul.mubr.bf16.gmra.mxu0 %v854
  %v1036 = vpop.f32.mrf.mxu0
  %v1037 = vadd.f32 0.0, %v1036
  %v1038 = vpop.f32.mrf.mxu0
  %v1039 = vpop.f32.mrf.mxu0
  %v1040 = vadd.f32 0.0, %v1039
  %v1041 = vpop.f32.mrf.mxu0
  %1042 = vmatprep.mubr.bf16.mxu0 0
  %1043 = vmatmul.mubr.bf16.gmra.mxu0 %v855
  %v1044 = vpop.f32.mrf.mxu0
  %v1045 = vadd.f32 0.0, %v1044
  %v1046 = vpop.f32.mrf.mxu0
  %v1047 = vpop.f32.mrf.mxu0
  %v1048 = vadd.f32 0.0, %v1047
  %v1049 = vpop.f32.mrf.mxu0
  %1050 = vdwg.mxu0
  %v1051 = vld [vmem:[%s3] sm:$0xf]
  %v1052 = vld [vmem:[%s3 + $0x4] sm:$0xf]
  %v1053 = vld [vmem:[%s3 + $0x8] sm:$0xf]
  %v1054 = vld [vmem:[%s3 + $0xc] sm:$0xf]
  %v1055 = vld [vmem:[%s3 + $0x10] sm:$0xf]
  %v1056 = vld [vmem:[%s3 + $0x14] sm:$0xf]
  %v1057 = vld [vmem:[%s3 + $0x18] sm:$0xf]
  %v1058 = vld [vmem:[%s3 + $0x1c] sm:$0xf]
  %v1059 = vld [vmem:[%s3 + $0x20] sm:$0xf]
  %v1060 = vld [vmem:[%s3 + $0x24] sm:$0xf]
  %v1061 = vld [vmem:[%s3 + $0x28] sm:$0xf]
  %v1062 = vld [vmem:[%s3 + $0x2c] sm:$0xf]
  %v1063 = vld [vmem:[%s3 + $0x30] sm:$0xf]
  %v1064 = vld [vmem:[%s3 + $0x34] sm:$0xf]
  %v1065 = vld [vmem:[%s3 + $0x38] sm:$0xf]
  %v1066 = vld [vmem:[%s3 + $0x3c] sm:$0xf]
  %v1067 = vld [vmem:[%s3 + $0x40] sm:$0xf]
  %v1068 = vld [vmem:[%s3 + $0x44] sm:$0xf]
  %v1069 = vld [vmem:[%s3 + $0x48] sm:$0xf]
  %v1070 = vld [vmem:[%s3 + $0x4c] sm:$0xf]
  %v1071 = vld [vmem:[%s3 + $0x50] sm:$0xf]
  %v1072 = vld [vmem:[%s3 + $0x54] sm:$0xf]
  %v1073 = vld [vmem:[%s3 + $0x58] sm:$0xf]
  %v1074 = vld [vmem:[%s3 + $0x5c] sm:$0xf]
  %v1075 = vld [vmem:[%s3 + $0x60] sm:$0xf]
  %v1076 = vld [vmem:[%s3 + $0x64] sm:$0xf]
  %v1077 = vld [vmem:[%s3 + $0x68] sm:$0xf]
  %v1078 = vld [vmem:[%s3 + $0x6c] sm:$0xf]
  %v1079 = vld [vmem:[%s3 + $0x70] sm:$0xf]
  %v1080 = vld [vmem:[%s3 + $0x74] sm:$0xf]
  %v1081 = vld [vmem:[%s3 + $0x78] sm:$0xf]
  %v1082 = vld [vmem:[%s3 + $0x7c] sm:$0xf]
  %v1083 = vld [vmem:[%s3 + $0x80] sm:$0xf]
  %v1084 = vld [vmem:[%s3 + $0x84] sm:$0xf]
  %v1085 = vld [vmem:[%s3 + $0x88] sm:$0xf]
  %v1086 = vld [vmem:[%s3 + $0x8c] sm:$0xf]
  %v1123 = vunpack.c.l.b16 %v1051
  %v1124 = vunpack.c.l.b16 %v1052
  %v1125 = vunpack.c.l.b16 %v1053
  %v1126 = vunpack.c.l.b16 %v1054
  %v1127 = vunpack.c.l.b16 %v1055
  %v1128 = vunpack.c.l.b16 %v1056
  %v1129 = vunpack.c.l.b16 %v1057
  %v1130 = vunpack.c.l.b16 %v1058
  %v1131 = vunpack.c.l.b16 %v1059
  %v1132 = vunpack.c.l.b16 %v1060
  %v1133 = vunpack.c.l.b16 %v1061
  %v1134 = vunpack.c.l.b16 %v1062
  %v1135 = vunpack.c.l.b16 %v1063
  %v1136 = vunpack.c.l.b16 %v1064
  %v1137 = vunpack.c.l.b16 %v1065
  %v1138 = vunpack.c.l.b16 %v1066
  %v1139 = vunpack.c.l.b16 %v1067
  %v1140 = vunpack.c.l.b16 %v1068
  %v1141 = vunpack.c.l.b16 %v1069
  %v1142 = vunpack.c.l.b16 %v1070
  %v1143 = vunpack.c.l.b16 %v1071
  %v1144 = vunpack.c.l.b16 %v1072
  %v1145 = vunpack.c.l.b16 %v1073
  %v1146 = vunpack.c.l.b16 %v1074
  %v1147 = vunpack.c.l.b16 %v1075
  %v1148 = vunpack.c.l.b16 %v1076
  %v1149 = vunpack.c.l.b16 %v1077
  %v1150 = vunpack.c.l.b16 %v1078
  %v1151 = vunpack.c.l.b16 %v1079
  %v1152 = vunpack.c.l.b16 %v1080
  %v1153 = vunpack.c.l.b16 %v1081
  %v1154 = vunpack.c.l.b16 %v1082
  %v1155 = vunpack.c.l.b16 %v1083
  %v1156 = vunpack.c.l.b16 %v1084
  %v1157 = vunpack.c.l.b16 %v1085
  %v1158 = vunpack.c.l.b16 %v1086
  %v1159 = vpack.c.b16 %v1124, %v1123
  %v1160 = vpack.c.b16 %v1126, %v1125
  %v1161 = vpack.c.b16 %v1128, %v1127
  %v1162 = vpack.c.b16 %v1130, %v1129
  %v1163 = vpack.c.b16 %v1132, %v1131
  %v1164 = vpack.c.b16 %v1134, %v1133
  %v1165 = vpack.c.b16 %v1136, %v1135
  %v1166 = vpack.c.b16 %v1138, %v1137
  %v1167 = vpack.c.b16 %v1140, %v1139
  %v1168 = vpack.c.b16 %v1142, %v1141
  %v1169 = vpack.c.b16 %v1144, %v1143
  %v1170 = vpack.c.b16 %v1146, %v1145
  %v1171 = vpack.c.b16 %v1148, %v1147
  %v1172 = vpack.c.b16 %v1150, %v1149
  %v1173 = vpack.c.b16 %v1152, %v1151
  %v1174 = vpack.c.b16 %v1154, %v1153
  %v1175 = vpack.c.b16 %v1156, %v1155
  %v1176 = vpack.c.b16 %v1158, %v1157
  %1195 = vmatprep.subr.bf16.mxu0 0
  %1196 = vmatpush1.bf16.msra.mxu0 %v223
  %1197 = vmatprep.subr.bf16.mxu0 0
  %1198 = vmatpush1.bf16.msra.mxu0 %v222
  %1199 = vmatprep.subr.bf16.mxu0 0
  %1200 = vmatpush1.bf16.msra.mxu0 %v221
  %1201 = vmatprep.subr.bf16.mxu0 0
  %1202 = vmatpush1.bf16.msra.mxu0 %v220
  %1203 = vmatprep.subr.bf16.mxu0 0
  %1204 = vmatpush1.bf16.msra.mxu0 %v219
  %1205 = vmatprep.subr.bf16.mxu0 0
  %1206 = vmatpush1.bf16.msra.mxu0 %v218
  %1207 = vmatprep.subr.bf16.mxu0 0
  %1208 = vmatpush1.bf16.msra.mxu0 %v217
  %1209 = vmatprep.subr.bf16.mxu0 0
  %1210 = vmatpush1.bf16.msra.mxu0 %v216
  %1211 = vmatprep.subr.bf16.mxu0 0
  %1212 = vmatpush2.bf16.msra.mxu0 0
  %1213 = vmatprep.subr.bf16.mxu0 0
  %1214 = vmatpush2.bf16.msra.mxu0 0
  %1215 = vmatprep.subr.bf16.mxu0 0
  %1216 = vmatpush2.bf16.msra.mxu0 0
  %1217 = vmatprep.subr.bf16.mxu0 0
  %1218 = vmatpush2.bf16.msra.mxu0 0
  %1219 = vmatprep.subr.bf16.mxu0 0
  %1220 = vmatpush2.bf16.msra.mxu0 0
  %1221 = vmatprep.subr.bf16.mxu0 0
  %1222 = vmatpush2.bf16.msra.mxu0 0
  %1223 = vmatprep.subr.bf16.mxu0 0
  %1224 = vmatpush2.bf16.msra.mxu0 0
  %1225 = vmatprep.subr.bf16.mxu0 0
  %1226 = vmatpush2.bf16.msra.mxu0 0
  %1227 = vmatprep.mubr.bf16.mxu0 0
  %1228 = vmatmul.mubr.bf16.gmra.mxu0 %v1159
  %v1229 = vpop.f32.mrf.mxu0
  %v1230 = vadd.f32 0.0, %v1229
  %v1231 = vpop.f32.mrf.mxu0
  %v1232 = vpop.f32.mrf.mxu0
  %v1233 = vadd.f32 0.0, %v1232
  %v1234 = vpop.f32.mrf.mxu0
  %1235 = vmatprep.mubr.bf16.mxu0 0
  %1236 = vmatmul.mubr.bf16.gmra.mxu0 %v1160
  %v1237 = vpop.f32.mrf.mxu0
  %v1238 = vadd.f32 0.0, %v1237
  %v1239 = vpop.f32.mrf.mxu0
  %v1240 = vpop.f32.mrf.mxu0
  %v1241 = vadd.f32 0.0, %v1240
  %v1242 = vpop.f32.mrf.mxu0
  %1243 = vmatprep.mubr.bf16.mxu0 0
  %1244 = vmatmul.mubr.bf16.gmra.mxu0 %v1161
  %v1245 = vpop.f32.mrf.mxu0
  %v1246 = vadd.f32 0.0, %v1245
  %v1247 = vpop.f32.mrf.mxu0
  %v1248 = vpop.f32.mrf.mxu0
  %v1249 = vadd.f32 0.0, %v1248
  %v1250 = vpop.f32.mrf.mxu0
  %1251 = vmatprep.mubr.bf16.mxu0 0
  %1252 = vmatmul.mubr.bf16.gmra.mxu0 %v1162
  %v1253 = vpop.f32.mrf.mxu0
  %v1254 = vadd.f32 0.0, %v1253
  %v1255 = vpop.f32.mrf.mxu0
  %v1256 = vpop.f32.mrf.mxu0
  %v1257 = vadd.f32 0.0, %v1256
  %v1258 = vpop.f32.mrf.mxu0
  %1259 = vmatprep.mubr.bf16.mxu0 0
  %1260 = vmatmul.mubr.bf16.gmra.mxu0 %v1163
  %v1261 = vpop.f32.mrf.mxu0
  %v1262 = vadd.f32 0.0, %v1261
  %v1263 = vpop.f32.mrf.mxu0
  %v1264 = vpop.f32.mrf.mxu0
  %v1265 = vadd.f32 0.0, %v1264
  %v1266 = vpop.f32.mrf.mxu0
  %1267 = vmatprep.mubr.bf16.mxu0 0
  %1268 = vmatmul.mubr.bf16.gmra.mxu0 %v1164
  %v1269 = vpop.f32.mrf.mxu0
  %v1270 = vadd.f32 0.0, %v1269
  %v1271 = vpop.f32.mrf.mxu0
  %v1272 = vpop.f32.mrf.mxu0
  %v1273 = vadd.f32 0.0, %v1272
  %v1274 = vpop.f32.mrf.mxu0
  %1275 = vmatprep.mubr.bf16.mxu0 0
  %1276 = vmatmul.mubr.bf16.gmra.mxu0 %v1165
  %v1277 = vpop.f32.mrf.mxu0
  %v1278 = vadd.f32 0.0, %v1277
  %v1279 = vpop.f32.mrf.mxu0
  %v1280 = vpop.f32.mrf.mxu0
  %v1281 = vadd.f32 0.0, %v1280
  %v1282 = vpop.f32.mrf.mxu0
  %1283 = vmatprep.mubr.bf16.mxu0 0
  %1284 = vmatmul.mubr.bf16.gmra.mxu0 %v1166
  %v1285 = vpop.f32.mrf.mxu0
  %v1286 = vadd.f32 0.0, %v1285
  %v1287 = vpop.f32.mrf.mxu0
  %v1288 = vpop.f32.mrf.mxu0
  %v1289 = vadd.f32 0.0, %v1288
  %v1290 = vpop.f32.mrf.mxu0
  %1291 = vmatprep.mubr.bf16.mxu0 0
  %1292 = vmatmul.mubr.bf16.gmra.mxu0 %v1167
  %v1293 = vpop.f32.mrf.mxu0
  %v1294 = vadd.f32 0.0, %v1293
  %v1295 = vpop.f32.mrf.mxu0
  %v1296 = vpop.f32.mrf.mxu0
  %v1297 = vadd.f32 0.0, %v1296
  %v1298 = vpop.f32.mrf.mxu0
  %1299 = vmatprep.mubr.bf16.mxu0 0
  %1300 = vmatmul.mubr.bf16.gmra.mxu0 %v1168
  %v1301 = vpop.f32.mrf.mxu0
  %v1302 = vadd.f32 0.0, %v1301
  %v1303 = vpop.f32.mrf.mxu0
  %v1304 = vpop.f32.mrf.mxu0
  %v1305 = vadd.f32 0.0, %v1304
  %v1306 = vpop.f32.mrf.mxu0
  %1307 = vmatprep.mubr.bf16.mxu0 0
  %1308 = vmatmul.mubr.bf16.gmra.mxu0 %v1169
  %v1309 = vpop.f32.mrf.mxu0
  %v1310 = vadd.f32 0.0, %v1309
  %v1311 = vpop.f32.mrf.mxu0
  %v1312 = vpop.f32.mrf.mxu0
  %v1313 = vadd.f32 0.0, %v1312
  %v1314 = vpop.f32.mrf.mxu0
  %1315 = vmatprep.mubr.bf16.mxu0 0
  %1316 = vmatmul.mubr.bf16.gmra.mxu0 %v1170
  %v1317 = vpop.f32.mrf.mxu0
  %v1318 = vadd.f32 0.0, %v1317
  %v1319 = vpop.f32.mrf.mxu0
  %v1320 = vpop.f32.mrf.mxu0
  %v1321 = vadd.f32 0.0, %v1320
  %v1322 = vpop.f32.mrf.mxu0
  %1323 = vmatprep.mubr.bf16.mxu0 0
  %1324 = vmatmul.mubr.bf16.gmra.mxu0 %v1171
  %v1325 = vpop.f32.mrf.mxu0
  %v1326 = vadd.f32 0.0, %v1325
  %v1327 = vpop.f32.mrf.mxu0
  %v1328 = vpop.f32.mrf.mxu0
  %v1329 = vadd.f32 0.0, %v1328
  %v1330 = vpop.f32.mrf.mxu0
  %1331 = vmatprep.mubr.bf16.mxu0 0
  %1332 = vmatmul.mubr.bf16.gmra.mxu0 %v1172
  %v1333 = vpop.f32.mrf.mxu0
  %v1334 = vadd.f32 0.0, %v1333
  %v1335 = vpop.f32.mrf.mxu0
  %v1336 = vpop.f32.mrf.mxu0
  %v1337 = vadd.f32 0.0, %v1336
  %v1338 = vpop.f32.mrf.mxu0
  %1339 = vmatprep.mubr.bf16.mxu0 0
  %1340 = vmatmul.mubr.bf16.gmra.mxu0 %v1173
  %v1341 = vpop.f32.mrf.mxu0
  %v1342 = vadd.f32 0.0, %v1341
  %v1343 = vpop.f32.mrf.mxu0
  %v1344 = vpop.f32.mrf.mxu0
  %v1345 = vadd.f32 0.0, %v1344
  %v1346 = vpop.f32.mrf.mxu0
  %1347 = vmatprep.mubr.bf16.mxu0 0
  %1348 = vmatmul.mubr.bf16.gmra.mxu0 %v1174
  %v1349 = vpop.f32.mrf.mxu0
  %v1350 = vadd.f32 0.0, %v1349
  %v1351 = vpop.f32.mrf.mxu0
  %v1352 = vpop.f32.mrf.mxu0
  %v1353 = vadd.f32 0.0, %v1352
  %v1354 = vpop.f32.mrf.mxu0
  %1355 = vmatprep.mubr.bf16.mxu0 0
  %1356 = vmatmul.mubr.bf16.gmra.mxu0 %v1175
  %v1357 = vpop.f32.mrf.mxu0
  %v1358 = vadd.f32 0.0, %v1357
  %v1359 = vpop.f32.mrf.mxu0
  %v1360 = vpop.f32.mrf.mxu0
  %v1361 = vadd.f32 0.0, %v1360
  %v1362 = vpop.f32.mrf.mxu0
  %1363 = vmatprep.mubr.bf16.mxu0 0
  %1364 = vmatmul.mubr.bf16.gmra.mxu0 %v1176
  %v1365 = vpop.f32.mrf.mxu0
  %v1366 = vadd.f32 0.0, %v1365
  %v1367 = vpop.f32.mrf.mxu0
  %v1368 = vpop.f32.mrf.mxu0
  %v1369 = vadd.f32 0.0, %v1368
  %v1370 = vpop.f32.mrf.mxu0
  %1371 = vdwg.mxu0
  %v1372 = vmax.f32 %v267, %v588
  %v1373 = vmax.f32 %v270, %v591
  %v1374 = vmax.f32 %v275, %v596
  %v1375 = vmax.f32 %v278, %v599
  %v1376 = vmax.f32 %v283, %v604
  %v1377 = vmax.f32 %v286, %v607
  %v1378 = vmax.f32 %v291, %v612
  %v1379 = vmax.f32 %v294, %v615
  %v1380 = vmax.f32 %v299, %v620
  %v1381 = vmax.f32 %v302, %v623
  %v1382 = vmax.f32 %v307, %v628
  %v1383 = vmax.f32 %v310, %v631
  %v1384 = vmax.f32 %v315, %v636
  %v1385 = vmax.f32 %v318, %v639
  %v1386 = vmax.f32 %v323, %v644
  %v1387 = vmax.f32 %v326, %v647
  %v1388 = vmax.f32 %v331, %v652
  %v1389 = vmax.f32 %v334, %v655
  %v1390 = vmax.f32 %v339, %v660
  %v1391 = vmax.f32 %v342, %v663
  %v1392 = vmax.f32 %v347, %v668
  %v1393 = vmax.f32 %v350, %v671
  %v1394 = vmax.f32 %v355, %v676
  %v1395 = vmax.f32 %v358, %v679
  %v1396 = vmax.f32 %v363, %v684
  %v1397 = vmax.f32 %v366, %v687
  %v1398 = vmax.f32 %v371, %v692
  %v1399 = vmax.f32 %v374, %v695
  %v1400 = vmax.f32 %v379, %v700
  %v1401 = vmax.f32 %v382, %v703
  %v1402 = vmax.f32 %v387, %v708
  %v1403 = vmax.f32 %v390, %v711
  %v1404 = vmax.f32 %v395, %v716
  %v1405 = vmax.f32 %v398, %v719
  %v1406 = vmax.f32 %v403, %v724
  %v1407 = vmax.f32 %v406, %v727
  %v1408 = vmax.f32 %v909, %v1230
  %v1409 = vmax.f32 %v912, %v1233
  %v1410 = vmax.f32 %v917, %v1238
  %v1411 = vmax.f32 %v920, %v1241
  %v1412 = vmax.f32 %v925, %v1246
  %v1413 = vmax.f32 %v928, %v1249
  %v1414 = vmax.f32 %v933, %v1254
  %v1415 = vmax.f32 %v936, %v1257
  %v1416 = vmax.f32 %v941, %v1262
  %v1417 = vmax.f32 %v944, %v1265
  %v1418 = vmax.f32 %v949, %v1270
  %v1419 = vmax.f32 %v952, %v1273
  %v1420 = vmax.f32 %v957, %v1278
  %v1421 = vmax.f32 %v960, %v1281
  %v1422 = vmax.f32 %v965, %v1286
  %v1423 = vmax.f32 %v968, %v1289
  %v1424 = vmax.f32 %v973, %v1294
  %v1425 = vmax.f32 %v976, %v1297
  %v1426 = vmax.f32 %v981, %v1302
  %v1427 = vmax.f32 %v984, %v1305
  %v1428 = vmax.f32 %v989, %v1310
  %v1429 = vmax.f32 %v992, %v1313
  %v1430 = vmax.f32 %v997, %v1318
  %v1431 = vmax.f32 %v1000, %v1321
  %v1432 = vmax.f32 %v1005, %v1326
  %v1433 = vmax.f32 %v1008, %v1329
  %v1434 = vmax.f32 %v1013, %v1334
  %v1435 = vmax.f32 %v1016, %v1337
  %v1436 = vmax.f32 %v1021, %v1342
  %v1437 = vmax.f32 %v1024, %v1345
  %v1438 = vmax.f32 %v1029, %v1350
  %v1439 = vmax.f32 %v1032, %v1353
  %v1440 = vmax.f32 %v1037, %v1358
  %v1441 = vmax.f32 %v1040, %v1361
  %v1442 = vmax.f32 %v1045, %v1366
  %v1443 = vmax.f32 %v1048, %v1369
  %v1444 = vmax.f32 %v1372, %v1408
  %v1445 = vmax.f32 %v1373, %v1409
  %v1446 = vmax.f32 %v1374, %v1410
  %v1447 = vmax.f32 %v1375, %v1411
  %v1448 = vmax.f32 %v1376, %v1412
  %v1449 = vmax.f32 %v1377, %v1413
  %v1450 = vmax.f32 %v1378, %v1414
  %v1451 = vmax.f32 %v1379, %v1415
  %v1452 = vmax.f32 %v1380, %v1416
  %v1453 = vmax.f32 %v1381, %v1417
  %v1454 = vmax.f32 %v1382, %v1418
  %v1455 = vmax.f32 %v1383, %v1419
  %v1456 = vmax.f32 %v1384, %v1420
  %v1457 = vmax.f32 %v1385, %v1421
  %v1458 = vmax.f32 %v1386, %v1422
  %v1459 = vmax.f32 %v1387, %v1423
  %v1460 = vmax.f32 %v1388, %v1424
  %v1461 = vmax.f32 %v1389, %v1425
  %v1462 = vmax.f32 %v1390, %v1426
  %v1463 = vmax.f32 %v1391, %v1427
  %v1464 = vmax.f32 %v1392, %v1428
  %v1465 = vmax.f32 %v1393, %v1429
  %v1466 = vmax.f32 %v1394, %v1430
  %v1467 = vmax.f32 %v1395, %v1431
  %v1468 = vmax.f32 %v1396, %v1432
  %v1469 = vmax.f32 %v1397, %v1433
  %v1470 = vmax.f32 %v1398, %v1434
  %v1471 = vmax.f32 %v1399, %v1435
  %v1472 = vmax.f32 %v1400, %v1436
  %v1473 = vmax.f32 %v1401, %v1437
  %v1474 = vmax.f32 %v1402, %v1438
  %v1475 = vmax.f32 %v1403, %v1439
  %v1476 = vmax.f32 %v1404, %v1440
  %v1477 = vmax.f32 %v1405, %v1441
  %v1478 = vmax.f32 %v1406, %v1442
  %v1479 = vmax.f32 %v1407, %v1443
  %v1480 = vld [vmem:[%s5] sm:$0x1]
  %v1482 = vlaneseq
  %v1483 = vshrl.u32 %v1482, 7
  %v1484 = vsub.s32 0, %v1483
  %v1485 = vrot.slane %v1480, %v1484
  %v1487 = vadd.f32 %v1444, %v1485
  %v1488 = vadd.f32 %v1445, %v1485
  %v1489 = vadd.f32 %v1446, %v1485
  %v1490 = vadd.f32 %v1447, %v1485
  %v1491 = vadd.f32 %v1448, %v1485
  %v1492 = vadd.f32 %v1449, %v1485
  %v1493 = vadd.f32 %v1450, %v1485
  %v1494 = vadd.f32 %v1451, %v1485
  %v1495 = vadd.f32 %v1452, %v1485
  %v1496 = vadd.f32 %v1453, %v1485
  %v1497 = vadd.f32 %v1454, %v1485
  %v1498 = vadd.f32 %v1455, %v1485
  %v1499 = vadd.f32 %v1456, %v1485
  %v1500 = vadd.f32 %v1457, %v1485
  %v1501 = vadd.f32 %v1458, %v1485
  %v1502 = vadd.f32 %v1459, %v1485
  %v1503 = vadd.f32 %v1460, %v1485
  %v1504 = vadd.f32 %v1461, %v1485
  %v1505 = vadd.f32 %v1462, %v1485
  %v1506 = vadd.f32 %v1463, %v1485
  %v1507 = vadd.f32 %v1464, %v1485
  %v1508 = vadd.f32 %v1465, %v1485
  %v1509 = vadd.f32 %v1466, %v1485
  %v1510 = vadd.f32 %v1467, %v1485
  %v1511 = vadd.f32 %v1468, %v1485
  %v1512 = vadd.f32 %v1469, %v1485
  %v1513 = vadd.f32 %v1470, %v1485
  %v1514 = vadd.f32 %v1471, %v1485
  %v1515 = vadd.f32 %v1472, %v1485
  %v1516 = vadd.f32 %v1473, %v1485
  %v1517 = vadd.f32 %v1474, %v1485
  %v1518 = vadd.f32 %v1475, %v1485
  %v1519 = vadd.f32 %v1476, %v1485
  %v1520 = vadd.f32 %v1477, %v1485
  %v1521 = vadd.f32 %v1478, %v1485
  %v1522 = vadd.f32 %v1479, %v1485
  %v1523 = vmax.f32 %v1487, 0.0
  %v1524 = vmax.f32 %v1488, 0.0
  %v1525 = vmax.f32 %v1489, 0.0
  %v1526 = vmax.f32 %v1490, 0.0
  %v1527 = vmax.f32 %v1491, 0.0
  %v1528 = vmax.f32 %v1492, 0.0
  %v1529 = vmax.f32 %v1493, 0.0
  %v1530 = vmax.f32 %v1494, 0.0
  %v1531 = vmax.f32 %v1495, 0.0
  %v1532 = vmax.f32 %v1496, 0.0
  %v1533 = vmax.f32 %v1497, 0.0
  %v1534 = vmax.f32 %v1498, 0.0
  %v1535 = vmax.f32 %v1499, 0.0
  %v1536 = vmax.f32 %v1500, 0.0
  %v1537 = vmax.f32 %v1501, 0.0
  %v1538 = vmax.f32 %v1502, 0.0
  %v1539 = vmax.f32 %v1503, 0.0
  %v1540 = vmax.f32 %v1504, 0.0
  %v1541 = vmax.f32 %v1505, 0.0
  %v1542 = vmax.f32 %v1506, 0.0
  %v1543 = vmax.f32 %v1507, 0.0
  %v1544 = vmax.f32 %v1508, 0.0
  %v1545 = vmax.f32 %v1509, 0.0
  %v1546 = vmax.f32 %v1510, 0.0
  %v1547 = vmax.f32 %v1511, 0.0
  %v1548 = vmax.f32 %v1512, 0.0
  %v1549 = vmax.f32 %v1513, 0.0
  %v1550 = vmax.f32 %v1514, 0.0
  %v1551 = vmax.f32 %v1515, 0.0
  %v1552 = vmax.f32 %v1516, 0.0
  %v1553 = vmax.f32 %v1517, 0.0
  %v1554 = vmax.f32 %v1518, 0.0
  %v1555 = vmax.f32 %v1519, 0.0
  %v1556 = vmax.f32 %v1520, 0.0
  %v1557 = vmax.f32 %v1521, 0.0
  %v1558 = vmax.f32 %v1522, 0.0
  %1559 = vst [vmem:[%s6] sm:$0xff] %v1523
  %1560 = vst [vmem:[%s6 + $0x8] sm:$0xff] %v1524
  %1561 = vst [vmem:[%s6 + $0x10] sm:$0xff] %v1525
  %1562 = vst [vmem:[%s6 + $0x18] sm:$0xff] %v1526
  %1563 = vst [vmem:[%s6 + $0x20] sm:$0xff] %v1527
  %1564 = vst [vmem:[%s6 + $0x28] sm:$0xff] %v1528
  %1565 = vst [vmem:[%s6 + $0x30] sm:$0xff] %v1529
  %1566 = vst [vmem:[%s6 + $0x38] sm:$0xff] %v1530
  %1567 = vst [vmem:[%s6 + $0x40] sm:$0xff] %v1531
  %1568 = vst [vmem:[%s6 + $0x48] sm:$0xff] %v1532
  %1569 = vst [vmem:[%s6 + $0x50] sm:$0xff] %v1533
  %1570 = vst [vmem:[%s6 + $0x58] sm:$0xff] %v1534
  %1571 = vst [vmem:[%s6 + $0x60] sm:$0xff] %v1535
  %1572 = vst [vmem:[%s6 + $0x68] sm:$0xff] %v1536
  %1573 = vst [vmem:[%s6 + $0x70] sm:$0xff] %v1537
  %1574 = vst [vmem:[%s6 + $0x78] sm:$0xff] %v1538
  %1575 = vst [vmem:[%s6 + $0x80] sm:$0xff] %v1539
  %1576 = vst [vmem:[%s6 + $0x88] sm:$0xff] %v1540
  %1577 = vst [vmem:[%s6 + $0x90] sm:$0xff] %v1541
  %1578 = vst [vmem:[%s6 + $0x98] sm:$0xff] %v1542
  %1579 = vst [vmem:[%s6 + $0xa0] sm:$0xff] %v1543
  %1580 = vst [vmem:[%s6 + $0xa8] sm:$0xff] %v1544
  %1581 = vst [vmem:[%s6 + $0xb0] sm:$0xff] %v1545
  %1582 = vst [vmem:[%s6 + $0xb8] sm:$0xff] %v1546
  %1583 = vst [vmem:[%s6 + $0xc0] sm:$0xff] %v1547
  %1584 = vst [vmem:[%s6 + $0xc8] sm:$0xff] %v1548
  %1585 = vst [vmem:[%s6 + $0xd0] sm:$0xff] %v1549
  %1586 = vst [vmem:[%s6 + $0xd8] sm:$0xff] %v1550
  %1587 = vst [vmem:[%s6 + $0xe0] sm:$0xff] %v1551
  %1588 = vst [vmem:[%s6 + $0xe8] sm:$0xff] %v1552
  %1589 = vst [vmem:[%s6 + $0xf0] sm:$0xff] %v1553
  %1590 = vst [vmem:[%s6 + $0xf8] sm:$0xff] %v1554
  %1591 = vst [vmem:[%s6 + $0x100] sm:$0xff] %v1555
  %1592 = vst [vmem:[%s6 + $0x108] sm:$0xff] %v1556
  %1593 = vst [vmem:[%s6 + $0x110] sm:$0xff] %v1557
  %1594 = vst [vmem:[%s6 + $0x118] sm:$0xff] %v1558
  // Predicated region
  $region26: #{net_forward.7} parent=0 // pred_check
    _
  $region27: #{net_forward.7} parent=0 // pred_check_branch
    %1596 = sbr.rel (0) target = $region29
  $region28: #{net_forward.7} parent=0 // pred_region
    _
  $region29: #{net_forward.7} parent=0 // pred_fallthru
    _
  // Predicated region
  $region30: #{net_forward.7} parent=0 // pred_check
    _
  $region31: #{net_forward.7} parent=0 // pred_check_branch
    %1598 = sbr.rel (0) target = $region33
  $region32: #{net_forward.7} parent=0 // pred_region
    _
  $region33: #{net_forward.7} parent=0 // pred_fallthru
    _

// kernel: net_forward.8
$region0: #{net_forward.8}
  #allocation0 [shape = 'u32[]', space=smem, size = 0x4, offset = 0x4, fixed_abs, tag = 'smem constant byte address 0x4 - core index']
  #allocation1 [shape = 'u32[144,128]{1,0:T(1,128)}', space=vmem, size = 0x12000, scoped, tag = 'internal scratch']
  %s0 = inlined_call_operand.vmem [shape: bf16[200,256], index: 0, kind: input, shape index: {}]
  %s1 = inlined_call_operand.vmem [shape: bf16[256,128], index: 1, kind: input, shape index: {}]
  %s2 = inlined_call_operand.vmem [shape: f32[1,128], index: 2, kind: input, shape index: {}]
  %s3 = inlined_call_operand.vmem [shape: f32[200,128], index: 3, kind: output, shape index: {}]
  %s4 = sld [smem:[#allocation0]]
  $region22: #{net_forward.8} parent=0
    _
  %s6 = ssub.s32 1, %s4
  %s7 = scalar_select 0, %s6, %s4
  // Predicated region
  $region2: #{net_forward.8} parent=0 // pred_check
    _
  $region3: #{net_forward.8} parent=0 // pred_check_branch
    %9 = sbr.rel (0) target = $region5
  $region4: #{net_forward.8} parent=0 // pred_region
    _
  $region5: #{net_forward.8} parent=0 // pred_fallthru
    _
  // Predicated region
  $region6: #{net_forward.8} parent=0 // pred_check
    _
  $region7: #{net_forward.8} parent=0 // pred_check_branch
    %11 = sbr.rel (0) target = $region9
  $region8: #{net_forward.8} parent=0 // pred_region
    _
  $region9: #{net_forward.8} parent=0 // pred_fallthru
    _
  // Predicated region
  $region10: #{net_forward.8} parent=0 // pred_check
    _
  $region11: #{net_forward.8} parent=0 // pred_check_branch
    %13 = sbr.rel (0) target = $region13
  $region12: #{net_forward.8} parent=0 // pred_region
    _
  $region13: #{net_forward.8} parent=0 // pred_fallthru
    _
  %v15 = vld [vmem:[%s0] sm:$0xff]
  %v16 = vld [vmem:[%s0 + $0x8] sm:$0xff]
  %v17 = vld [vmem:[%s0 + $0x10] sm:$0xff]
  %v18 = vld [vmem:[%s0 + $0x18] sm:$0xff]
  %v19 = vld [vmem:[%s0 + $0x20] sm:$0xff]
  %v20 = vld [vmem:[%s0 + $0x28] sm:$0xff]
  %v21 = vld [vmem:[%s0 + $0x30] sm:$0xff]
  %v22 = vld [vmem:[%s0 + $0x38] sm:$0xff]
  %v23 = vld [vmem:[%s0 + $0x40] sm:$0xff]
  %v24 = vld [vmem:[%s0 + $0x48] sm:$0xff]
  %v25 = vld [vmem:[%s0 + $0x50] sm:$0xff]
  %v26 = vld [vmem:[%s0 + $0x58] sm:$0xff]
  %v27 = vld [vmem:[%s0 + $0x60] sm:$0xff]
  %v28 = vld [vmem:[%s0 + $0x68] sm:$0xff]
  %v29 = vld [vmem:[%s0 + $0x70] sm:$0xff]
  %v30 = vld [vmem:[%s0 + $0x78] sm:$0xff]
  %v31 = vld [vmem:[%s0 + $0x80] sm:$0xff]
  %v32 = vld [vmem:[%s0 + $0x88] sm:$0xff]
  %v33 = vld [vmem:[%s0 + $0x90] sm:$0xff]
  %v34 = vld [vmem:[%s0 + $0x98] sm:$0xff]
  %v35 = vld [vmem:[%s0 + $0xa0] sm:$0xff]
  %v36 = vld [vmem:[%s0 + $0xa8] sm:$0xff]
  %v37 = vld [vmem:[%s0 + $0xb0] sm:$0xff]
  %v38 = vld [vmem:[%s0 + $0xb8] sm:$0xff]
  %v39 = vld [vmem:[%s0 + $0xc0] sm:$0xff]
  %v40 = vld [vmem:[%s1] sm:$0xf]
  %v41 = vld [vmem:[%s1 + $0x4] sm:$0xf]
  %v42 = vld [vmem:[%s1 + $0x8] sm:$0xf]
  %v43 = vld [vmem:[%s1 + $0xc] sm:$0xf]
  %v44 = vld [vmem:[%s1 + $0x10] sm:$0xf]
  %v45 = vld [vmem:[%s1 + $0x14] sm:$0xf]
  %v46 = vld [vmem:[%s1 + $0x18] sm:$0xf]
  %v47 = vld [vmem:[%s1 + $0x1c] sm:$0xf]
  %v48 = vld [vmem:[%s1 + $0x20] sm:$0xf]
  %v49 = vld [vmem:[%s1 + $0x24] sm:$0xf]
  %v50 = vld [vmem:[%s1 + $0x28] sm:$0xf]
  %v51 = vld [vmem:[%s1 + $0x2c] sm:$0xf]
  %v52 = vld [vmem:[%s1 + $0x30] sm:$0xf]
  %v53 = vld [vmem:[%s1 + $0x34] sm:$0xf]
  %v54 = vld [vmem:[%s1 + $0x38] sm:$0xf]
  %v55 = vld [vmem:[%s1 + $0x3c] sm:$0xf]
  %v56 = vld [vmem:[%s1 + $0x40] sm:$0xf]
  %v57 = vld [vmem:[%s1 + $0x44] sm:$0xf]
  %v58 = vld [vmem:[%s1 + $0x48] sm:$0xf]
  %v59 = vld [vmem:[%s1 + $0x4c] sm:$0xf]
  %v60 = vld [vmem:[%s1 + $0x50] sm:$0xf]
  %v61 = vld [vmem:[%s1 + $0x54] sm:$0xf]
  %v62 = vld [vmem:[%s1 + $0x58] sm:$0xf]
  %v63 = vld [vmem:[%s1 + $0x5c] sm:$0xf]
  %v64 = vld [vmem:[%s1 + $0x60] sm:$0xf]
  %v65 = vld [vmem:[%s1 + $0x64] sm:$0xf]
  %v66 = vld [vmem:[%s1 + $0x68] sm:$0xf]
  %v67 = vld [vmem:[%s1 + $0x6c] sm:$0xf]
  %v68 = vld [vmem:[%s1 + $0x70] sm:$0xf]
  %v69 = vld [vmem:[%s1 + $0x74] sm:$0xf]
  %v70 = vld [vmem:[%s1 + $0x78] sm:$0xf]
  %v71 = vld [vmem:[%s1 + $0x7c] sm:$0xf]
  %v72 = vld [vmem:[%s2] sm:$0x1]
  %v74 = vlaneseq
  %v75 = vshrl.u32 %v74, 7
  %v76 = vsub.s32 0, %v75
  %v77 = vrot.slane %v72, %v76
  %v104 = vunpack.c.l.b16 %v15
  %v105 = vunpack.c.h.b16 %v15
  %v106 = vunpack.c.l.b16 %v16
  %v107 = vunpack.c.h.b16 %v16
  %v108 = vunpack.c.l.b16 %v17
  %v109 = vunpack.c.h.b16 %v17
  %v110 = vunpack.c.l.b16 %v18
  %v111 = vunpack.c.h.b16 %v18
  %v112 = vunpack.c.l.b16 %v19
  %v113 = vunpack.c.h.b16 %v19
  %v114 = vunpack.c.l.b16 %v20
  %v115 = vunpack.c.h.b16 %v20
  %v116 = vunpack.c.l.b16 %v21
  %v117 = vunpack.c.h.b16 %v21
  %v118 = vunpack.c.l.b16 %v22
  %v119 = vunpack.c.h.b16 %v22
  %v120 = vunpack.c.l.b16 %v23
  %v121 = vunpack.c.h.b16 %v23
  %v122 = vunpack.c.l.b16 %v24
  %v123 = vunpack.c.h.b16 %v24
  %v124 = vunpack.c.l.b16 %v25
  %v125 = vunpack.c.h.b16 %v25
  %v126 = vunpack.c.l.b16 %v26
  %v127 = vunpack.c.h.b16 %v26
  %v128 = vunpack.c.l.b16 %v27
  %v129 = vunpack.c.h.b16 %v27
  %v130 = vunpack.c.l.b16 %v28
  %v131 = vunpack.c.h.b16 %v28
  %v132 = vunpack.c.l.b16 %v29
  %v133 = vunpack.c.h.b16 %v29
  %v134 = vunpack.c.l.b16 %v30
  %v135 = vunpack.c.h.b16 %v30
  %v136 = vunpack.c.l.b16 %v31
  %v137 = vunpack.c.h.b16 %v31
  %v138 = vunpack.c.l.b16 %v32
  %v139 = vunpack.c.h.b16 %v32
  %v140 = vunpack.c.l.b16 %v33
  %v141 = vunpack.c.h.b16 %v33
  %v142 = vunpack.c.l.b16 %v34
  %v143 = vunpack.c.h.b16 %v34
  %v144 = vunpack.c.l.b16 %v35
  %v145 = vunpack.c.h.b16 %v35
  %v146 = vunpack.c.l.b16 %v36
  %v147 = vunpack.c.h.b16 %v36
  %v148 = vunpack.c.l.b16 %v37
  %v149 = vunpack.c.h.b16 %v37
  %v150 = vunpack.c.l.b16 %v38
  %v151 = vunpack.c.h.b16 %v38
  %v152 = vunpack.c.l.b16 %v39
  %v153 = vunpack.c.h.b16 %v39
  %v154 = vpack.c.b16 %v106, %v104
  %v155 = vpack.c.b16 %v107, %v105
  %v156 = vpack.c.b16 %v110, %v108
  %v157 = vpack.c.b16 %v111, %v109
  %v158 = vpack.c.b16 %v114, %v112
  %v159 = vpack.c.b16 %v115, %v113
  %v160 = vpack.c.b16 %v118, %v116
  %v161 = vpack.c.b16 %v119, %v117
  %v162 = vpack.c.b16 %v122, %v120
  %v163 = vpack.c.b16 %v123, %v121
  %v164 = vpack.c.b16 %v126, %v124
  %v165 = vpack.c.b16 %v127, %v125
  %v166 = vpack.c.b16 %v130, %v128
  %v167 = vpack.c.b16 %v131, %v129
  %v168 = vpack.c.b16 %v134, %v132
  %v169 = vpack.c.b16 %v135, %v133
  %v170 = vpack.c.b16 %v138, %v136
  %v171 = vpack.c.b16 %v139, %v137
  %v172 = vpack.c.b16 %v142, %v140
  %v173 = vpack.c.b16 %v143, %v141
  %v174 = vpack.c.b16 %v146, %v144
  %v175 = vpack.c.b16 %v147, %v145
  %v176 = vpack.c.b16 %v150, %v148
  %v177 = vpack.c.b16 %v151, %v149
  %v178 = vpack.c.b16 %v152, %v152
  %v179 = vpack.c.b16 %v153, %v153
  %v238 = vunpack.c.l.b16 %v40
  %v239 = vunpack.c.l.b16 %v41
  %v240 = vunpack.c.l.b16 %v42
  %v241 = vunpack.c.l.b16 %v43
  %v242 = vunpack.c.l.b16 %v44
  %v243 = vunpack.c.l.b16 %v45
  %v244 = vunpack.c.l.b16 %v46
  %v245 = vunpack.c.l.b16 %v47
  %v246 = vunpack.c.l.b16 %v48
  %v247 = vunpack.c.l.b16 %v49
  %v248 = vunpack.c.l.b16 %v50
  %v249 = vunpack.c.l.b16 %v51
  %v250 = vunpack.c.l.b16 %v52
  %v251 = vunpack.c.l.b16 %v53
  %v252 = vunpack.c.l.b16 %v54
  %v253 = vunpack.c.l.b16 %v55
  %v254 = vunpack.c.l.b16 %v56
  %v255 = vunpack.c.l.b16 %v57
  %v256 = vunpack.c.l.b16 %v58
  %v257 = vunpack.c.l.b16 %v59
  %v258 = vunpack.c.l.b16 %v60
  %v259 = vunpack.c.l.b16 %v61
  %v260 = vunpack.c.l.b16 %v62
  %v261 = vunpack.c.l.b16 %v63
  %v262 = vunpack.c.l.b16 %v64
  %v263 = vunpack.c.l.b16 %v65
  %v264 = vunpack.c.l.b16 %v66
  %v265 = vunpack.c.l.b16 %v67
  %v266 = vunpack.c.l.b16 %v68
  %v267 = vunpack.c.l.b16 %v69
  %v268 = vunpack.c.l.b16 %v70
  %v269 = vunpack.c.l.b16 %v71
  %v270 = vpack.c.b16 %v239, %v238
  %v271 = vpack.c.b16 %v241, %v240
  %v272 = vpack.c.b16 %v243, %v242
  %v273 = vpack.c.b16 %v245, %v244
  %v274 = vpack.c.b16 %v247, %v246
  %v275 = vpack.c.b16 %v249, %v248
  %v276 = vpack.c.b16 %v251, %v250
  %v277 = vpack.c.b16 %v253, %v252
  %v278 = vpack.c.b16 %v255, %v254
  %v279 = vpack.c.b16 %v257, %v256
  %v280 = vpack.c.b16 %v259, %v258
  %v281 = vpack.c.b16 %v261, %v260
  %v282 = vpack.c.b16 %v263, %v262
  %v283 = vpack.c.b16 %v265, %v264
  %v284 = vpack.c.b16 %v267, %v266
  %v285 = vpack.c.b16 %v269, %v268
  %302 = vmatprep.subr.bf16.mxu0 0
  %303 = vmatpush1.bf16.msra.mxu0 %v277
  %304 = vmatprep.subr.bf16.mxu0 0
  %305 = vmatpush1.bf16.msra.mxu0 %v276
  %306 = vmatprep.subr.bf16.mxu0 0
  %307 = vmatpush1.bf16.msra.mxu0 %v275
  %308 = vmatprep.subr.bf16.mxu0 0
  %309 = vmatpush1.bf16.msra.mxu0 %v274
  %310 = vmatprep.subr.bf16.mxu0 0
  %311 = vmatpush1.bf16.msra.mxu0 %v273
  %312 = vmatprep.subr.bf16.mxu0 0
  %313 = vmatpush1.bf16.msra.mxu0 %v272
  %314 = vmatprep.subr.bf16.mxu0 0
  %315 = vmatpush1.bf16.msra.mxu0 %v271
  %316 = vmatprep.subr.bf16.mxu0 0
  %317 = vmatpush1.bf16.msra.mxu0 %v270
  %318 = vmatprep.subr.bf16.mxu0 0
  %319 = vmatpush2.bf16.msra.mxu0 %v285
  %320 = vmatprep.subr.bf16.mxu0 0
  %321 = vmatpush2.bf16.msra.mxu0 %v284
  %322 = vmatprep.subr.bf16.mxu0 0
  %323 = vmatpush2.bf16.msra.mxu0 %v283
  %324 = vmatprep.subr.bf16.mxu0 0
  %325 = vmatpush2.bf16.msra.mxu0 %v282
  %326 = vmatprep.subr.bf16.mxu0 0
  %327 = vmatpush2.bf16.msra.mxu0 %v281
  %328 = vmatprep.subr.bf16.mxu0 0
  %329 = vmatpush2.bf16.msra.mxu0 %v280
  %330 = vmatprep.subr.bf16.mxu0 0
  %331 = vmatpush2.bf16.msra.mxu0 %v279
  %332 = vmatprep.subr.bf16.mxu0 0
  %333 = vmatpush2.bf16.msra.mxu0 %v278
  %334 = vmatprep.mubr.bf16.mxu0 %v155
  %335 = vmatmul.mubr.bf16.gmra.mxu0 %v154
  %v336 = vpop.f32.mrf.mxu0
  %v337 = vadd.f32 %v77, %v336
  %v338 = vpop.f32.mrf.mxu0
  %v339 = vpop.f32.mrf.mxu0
  %v340 = vadd.f32 %v77, %v339
  %v341 = vpop.f32.mrf.mxu0
  %342 = vmatprep.mubr.bf16.mxu0 %v157
  %343 = vmatmul.mubr.bf16.gmra.mxu0 %v156
  %v344 = vpop.f32.mrf.mxu0
  %v345 = vadd.f32 %v77, %v344
  %v346 = vpop.f32.mrf.mxu0
  %v347 = vpop.f32.mrf.mxu0
  %v348 = vadd.f32 %v77, %v347
  %v349 = vpop.f32.mrf.mxu0
  %350 = vmatprep.mubr.bf16.mxu0 %v159
  %351 = vmatmul.mubr.bf16.gmra.mxu0 %v158
  %v352 = vpop.f32.mrf.mxu0
  %v353 = vadd.f32 %v77, %v352
  %v354 = vpop.f32.mrf.mxu0
  %v355 = vpop.f32.mrf.mxu0
  %v356 = vadd.f32 %v77, %v355
  %v357 = vpop.f32.mrf.mxu0
  %358 = vmatprep.mubr.bf16.mxu0 %v161
  %359 = vmatmul.mubr.bf16.gmra.mxu0 %v160
  %v360 = vpop.f32.mrf.mxu0
  %v361 = vadd.f32 %v77, %v360
  %v362 = vpop.f32.mrf.mxu0
  %v363 = vpop.f32.mrf.mxu0
  %v364 = vadd.f32 %v77, %v363
  %v365 = vpop.f32.mrf.mxu0
  %366 = vmatprep.mubr.bf16.mxu0 %v163
  %367 = vmatmul.mubr.bf16.gmra.mxu0 %v162
  %v368 = vpop.f32.mrf.mxu0
  %v369 = vadd.f32 %v77, %v368
  %v370 = vpop.f32.mrf.mxu0
  %v371 = vpop.f32.mrf.mxu0
  %v372 = vadd.f32 %v77, %v371
  %v373 = vpop.f32.mrf.mxu0
  %374 = vmatprep.mubr.bf16.mxu0 %v165
  %375 = vmatmul.mubr.bf16.gmra.mxu0 %v164
  %v376 = vpop.f32.mrf.mxu0
  %v377 = vadd.f32 %v77, %v376
  %v378 = vpop.f32.mrf.mxu0
  %v379 = vpop.f32.mrf.mxu0
  %v380 = vadd.f32 %v77, %v379
  %v381 = vpop.f32.mrf.mxu0
  %382 = vmatprep.mubr.bf16.mxu0 %v167
  %383 = vmatmul.mubr.bf16.gmra.mxu0 %v166
  %v384 = vpop.f32.mrf.mxu0
  %v385 = vadd.f32 %v77, %v384
  %v386 = vpop.f32.mrf.mxu0
  %v387 = vpop.f32.mrf.mxu0
  %v388 = vadd.f32 %v77, %v387
  %v389 = vpop.f32.mrf.mxu0
  %390 = vmatprep.mubr.bf16.mxu0 %v169
  %391 = vmatmul.mubr.bf16.gmra.mxu0 %v168
  %v392 = vpop.f32.mrf.mxu0
  %v393 = vadd.f32 %v77, %v392
  %v394 = vpop.f32.mrf.mxu0
  %v395 = vpop.f32.mrf.mxu0
  %v396 = vadd.f32 %v77, %v395
  %v397 = vpop.f32.mrf.mxu0
  %398 = vmatprep.mubr.bf16.mxu0 %v171
  %399 = vmatmul.mubr.bf16.gmra.mxu0 %v170
  %v400 = vpop.f32.mrf.mxu0
  %v401 = vadd.f32 %v77, %v400
  %v402 = vpop.f32.mrf.mxu0
  %v403 = vpop.f32.mrf.mxu0
  %v404 = vadd.f32 %v77, %v403
  %v405 = vpop.f32.mrf.mxu0
  %406 = vmatprep.mubr.bf16.mxu0 %v173
  %407 = vmatmul.mubr.bf16.gmra.mxu0 %v172
  %v408 = vpop.f32.mrf.mxu0
  %v409 = vadd.f32 %v77, %v408
  %v410 = vpop.f32.mrf.mxu0
  %v411 = vpop.f32.mrf.mxu0
  %v412 = vadd.f32 %v77, %v411
  %v413 = vpop.f32.mrf.mxu0
  %414 = vmatprep.mubr.bf16.mxu0 %v175
  %415 = vmatmul.mubr.bf16.gmra.mxu0 %v174
  %v416 = vpop.f32.mrf.mxu0
  %v417 = vadd.f32 %v77, %v416
  %v418 = vpop.f32.mrf.mxu0
  %v419 = vpop.f32.mrf.mxu0
  %v420 = vadd.f32 %v77, %v419
  %v421 = vpop.f32.mrf.mxu0
  %422 = vmatprep.mubr.bf16.mxu0 %v177
  %423 = vmatmul.mubr.bf16.gmra.mxu0 %v176
  %v424 = vpop.f32.mrf.mxu0
  %v425 = vadd.f32 %v77, %v424
  %v426 = vpop.f32.mrf.mxu0
  %v427 = vpop.f32.mrf.mxu0
  %v428 = vadd.f32 %v77, %v427
  %v429 = vpop.f32.mrf.mxu0
  %430 = vmatprep.mubr.bf16.mxu0 %v179
  %431 = vmatmul.mubr.bf16.gmra.mxu0 %v178
  %v432 = vpop.f32.mrf.mxu0
  %v433 = vadd.f32 %v77, %v432
  %v434 = vpop.f32.mrf.mxu0
  %v435 = vpop.f32.mrf.mxu0
  %v436 = vpop.f32.mrf.mxu0
  %437 = vdwg.mxu0
  %v438 = vmax.f32 %v337, 0.0
  %v439 = vmax.f32 %v340, 0.0
  %v440 = vmax.f32 %v345, 0.0
  %v441 = vmax.f32 %v348, 0.0
  %v442 = vmax.f32 %v353, 0.0
  %v443 = vmax.f32 %v356, 0.0
  %v444 = vmax.f32 %v361, 0.0
  %v445 = vmax.f32 %v364, 0.0
  %v446 = vmax.f32 %v369, 0.0
  %v447 = vmax.f32 %v372, 0.0
  %v448 = vmax.f32 %v377, 0.0
  %v449 = vmax.f32 %v380, 0.0
  %v450 = vmax.f32 %v385, 0.0
  %v451 = vmax.f32 %v388, 0.0
  %v452 = vmax.f32 %v393, 0.0
  %v453 = vmax.f32 %v396, 0.0
  %v454 = vmax.f32 %v401, 0.0
  %v455 = vmax.f32 %v404, 0.0
  %v456 = vmax.f32 %v409, 0.0
  %v457 = vmax.f32 %v412, 0.0
  %v458 = vmax.f32 %v417, 0.0
  %v459 = vmax.f32 %v420, 0.0
  %v460 = vmax.f32 %v425, 0.0
  %v461 = vmax.f32 %v428, 0.0
  %v462 = vmax.f32 %v433, 0.0
  %463 = vst [vmem:[%s3] sm:$0xff] %v438
  %464 = vst [vmem:[%s3 + $0x8] sm:$0xff] %v439
  %465 = vst [vmem:[%s3 + $0x10] sm:$0xff] %v440
  %466 = vst [vmem:[%s3 + $0x18] sm:$0xff] %v441
  %467 = vst [vmem:[%s3 + $0x20] sm:$0xff] %v442
  %468 = vst [vmem:[%s3 + $0x28] sm:$0xff] %v443
  %469 = vst [vmem:[%s3 + $0x30] sm:$0xff] %v444
  %470 = vst [vmem:[%s3 + $0x38] sm:$0xff] %v445
  %471 = vst [vmem:[%s3 + $0x40] sm:$0xff] %v446
  %472 = vst [vmem:[%s3 + $0x48] sm:$0xff] %v447
  %473 = vst [vmem:[%s3 + $0x50] sm:$0xff] %v448
  %474 = vst [vmem:[%s3 + $0x58] sm:$0xff] %v449
  %475 = vst [vmem:[%s3 + $0x60] sm:$0xff] %v450
  %476 = vst [vmem:[%s3 + $0x68] sm:$0xff] %v451
  %477 = vst [vmem:[%s3 + $0x70] sm:$0xff] %v452
  %478 = vst [vmem:[%s3 + $0x78] sm:$0xff] %v453
  %479 = vst [vmem:[%s3 + $0x80] sm:$0xff] %v454
  %480 = vst [vmem:[%s3 + $0x88] sm:$0xff] %v455
  %481 = vst [vmem:[%s3 + $0x90] sm:$0xff] %v456
  %482 = vst [vmem:[%s3 + $0x98] sm:$0xff] %v457
  %483 = vst [vmem:[%s3 + $0xa0] sm:$0xff] %v458
  %484 = vst [vmem:[%s3 + $0xa8] sm:$0xff] %v459
  %485 = vst [vmem:[%s3 + $0xb0] sm:$0xff] %v460
  %486 = vst [vmem:[%s3 + $0xb8] sm:$0xff] %v461
  %487 = vst [vmem:[%s3 + $0xc0] sm:$0xff] %v462
  // Predicated region
  $region14: #{net_forward.8} parent=0 // pred_check
    _
  $region15: #{net_forward.8} parent=0 // pred_check_branch
    %489 = sbr.rel (0) target = $region17
  $region16: #{net_forward.8} parent=0 // pred_region
    _
  $region17: #{net_forward.8} parent=0 // pred_fallthru
    _
  // Predicated region
  $region18: #{net_forward.8} parent=0 // pred_check
    _
  $region19: #{net_forward.8} parent=0 // pred_check_branch
    %491 = sbr.rel (0) target = $region21
  $region20: #{net_forward.8} parent=0 // pred_region
    _
  $region21: #{net_forward.8} parent=0 // pred_fallthru
    _

// kernel: net_forward.9
$region0: #{net_forward.9}
  #allocation0 [shape = 'u32[]', space=smem, size = 0x4, offset = 0x4, fixed_abs, tag = 'smem constant byte address 0x4 - core index']
  #allocation1 [shape = 'u32[144,128]{1,0:T(1,128)}', space=vmem, size = 0x12000, scoped, tag = 'internal scratch']
  %s0 = inlined_call_operand.vmem [shape: bf16[128,384], index: 0, kind: input, shape index: {}]
  %s1 = inlined_call_operand.vmem [shape: bf16[384,128], index: 1, kind: input, shape index: {}]
  %s2 = inlined_call_operand.vmem [shape: f32[1,128], index: 2, kind: input, shape index: {}]
  %s3 = inlined_call_operand.vmem [shape: f32[128,128], index: 3, kind: output, shape index: {}]
  %s4 = sld [smem:[#allocation0]]
  $region22: #{net_forward.9} parent=0
    _
  %s6 = ssub.s32 1, %s4
  %s7 = scalar_select 0, %s6, %s4
  // Predicated region
  $region2: #{net_forward.9} parent=0 // pred_check
    _
  $region3: #{net_forward.9} parent=0 // pred_check_branch
    %9 = sbr.rel (0) target = $region5
  $region4: #{net_forward.9} parent=0 // pred_region
    _
  $region5: #{net_forward.9} parent=0 // pred_fallthru
    _
  // Predicated region
  $region6: #{net_forward.9} parent=0 // pred_check
    _
  $region7: #{net_forward.9} parent=0 // pred_check_branch
    %11 = sbr.rel (0) target = $region9
  $region8: #{net_forward.9} parent=0 // pred_region
    _
  $region9: #{net_forward.9} parent=0 // pred_fallthru
    _
  // Predicated region
  $region10: #{net_forward.9} parent=0 // pred_check
    _
  $region11: #{net_forward.9} parent=0 // pred_check_branch
    %13 = sbr.rel (0) target = $region13
  $region12: #{net_forward.9} parent=0 // pred_region
    _
  $region13: #{net_forward.9} parent=0 // pred_fallthru
    _
  %v15 = vld [vmem:[%s0] sm:$0xff]
  %v16 = vld [vmem:[%s0 + $0x8] sm:$0xf]
  %v17 = vld [vmem:[%s0 + $0xc] sm:$0xff]
  %v18 = vld [vmem:[%s0 + $0x14] sm:$0xf]
  %v19 = vld [vmem:[%s0 + $0x18] sm:$0xff]
  %v20 = vld [vmem:[%s0 + $0x20] sm:$0xf]
  %v21 = vld [vmem:[%s0 + $0x24] sm:$0xff]
  %v22 = vld [vmem:[%s0 + $0x2c] sm:$0xf]
  %v23 = vld [vmem:[%s0 + $0x30] sm:$0xff]
  %v24 = vld [vmem:[%s0 + $0x38] sm:$0xf]
  %v25 = vld [vmem:[%s0 + $0x3c] sm:$0xff]
  %v26 = vld [vmem:[%s0 + $0x44] sm:$0xf]
  %v27 = vld [vmem:[%s0 + $0x48] sm:$0xff]
  %v28 = vld [vmem:[%s0 + $0x50] sm:$0xf]
  %v29 = vld [vmem:[%s0 + $0x54] sm:$0xff]
  %v30 = vld [vmem:[%s0 + $0x5c] sm:$0xf]
  %v31 = vld [vmem:[%s0 + $0x60] sm:$0xff]
  %v32 = vld [vmem:[%s0 + $0x68] sm:$0xf]
  %v33 = vld [vmem:[%s0 + $0x6c] sm:$0xff]
  %v34 = vld [vmem:[%s0 + $0x74] sm:$0xf]
  %v35 = vld [vmem:[%s0 + $0x78] sm:$0xff]
  %v36 = vld [vmem:[%s0 + $0x80] sm:$0xf]
  %v37 = vld [vmem:[%s0 + $0x84] sm:$0xff]
  %v38 = vld [vmem:[%s0 + $0x8c] sm:$0xf]
  %v39 = vld [vmem:[%s0 + $0x90] sm:$0xff]
  %v40 = vld [vmem:[%s0 + $0x98] sm:$0xf]
  %v41 = vld [vmem:[%s0 + $0x9c] sm:$0xff]
  %v42 = vld [vmem:[%s0 + $0xa4] sm:$0xf]
  %v43 = vld [vmem:[%s0 + $0xa8] sm:$0xff]
  %v44 = vld [vmem:[%s0 + $0xb0] sm:$0xf]
  %v45 = vld [vmem:[%s0 + $0xb4] sm:$0xff]
  %v46 = vld [vmem:[%s0 + $0xbc] sm:$0xf]
  %v47 = vld [vmem:[%s1] sm:$0xf]
  %v48 = vld [vmem:[%s1 + $0x4] sm:$0xf]
  %v49 = vld [vmem:[%s1 + $0x8] sm:$0xf]
  %v50 = vld [vmem:[%s1 + $0xc] sm:$0xf]
  %v51 = vld [vmem:[%s1 + $0x10] sm:$0xf]
  %v52 = vld [vmem:[%s1 + $0x14] sm:$0xf]
  %v53 = vld [vmem:[%s1 + $0x18] sm:$0xf]
  %v54 = vld [vmem:[%s1 + $0x1c] sm:$0xf]
  %v55 = vld [vmem:[%s1 + $0x20] sm:$0xf]
  %v56 = vld [vmem:[%s1 + $0x24] sm:$0xf]
  %v57 = vld [vmem:[%s1 + $0x28] sm:$0xf]
  %v58 = vld [vmem:[%s1 + $0x2c] sm:$0xf]
  %v59 = vld [vmem:[%s1 + $0x30] sm:$0xf]
  %v60 = vld [vmem:[%s1 + $0x34] sm:$0xf]
  %v61 = vld [vmem:[%s1 + $0x38] sm:$0xf]
  %v62 = vld [vmem:[%s1 + $0x3c] sm:$0xf]
  %v63 = vld [vmem:[%s1 + $0x40] sm:$0xf]
  %v64 = vld [vmem:[%s1 + $0x44] sm:$0xf]
  %v65 = vld [vmem:[%s1 + $0x48] sm:$0xf]
  %v66 = vld [vmem:[%s1 + $0x4c] sm:$0xf]
  %v67 = vld [vmem:[%s1 + $0x50] sm:$0xf]
  %v68 = vld [vmem:[%s1 + $0x54] sm:$0xf]
  %v69 = vld [vmem:[%s1 + $0x58] sm:$0xf]
  %v70 = vld [vmem:[%s1 + $0x5c] sm:$0xf]
  %v71 = vld [vmem:[%s1 + $0x60] sm:$0xf]
  %v72 = vld [vmem:[%s1 + $0x64] sm:$0xf]
  %v73 = vld [vmem:[%s1 + $0x68] sm:$0xf]
  %v74 = vld [vmem:[%s1 + $0x6c] sm:$0xf]
  %v75 = vld [vmem:[%s1 + $0x70] sm:$0xf]
  %v76 = vld [vmem:[%s1 + $0x74] sm:$0xf]
  %v77 = vld [vmem:[%s1 + $0x78] sm:$0xf]
  %v78 = vld [vmem:[%s1 + $0x7c] sm:$0xf]
  %v79 = vld [vmem:[%s1 + $0x80] sm:$0xf]
  %v80 = vld [vmem:[%s1 + $0x84] sm:$0xf]
  %v81 = vld [vmem:[%s1 + $0x88] sm:$0xf]
  %v82 = vld [vmem:[%s1 + $0x8c] sm:$0xf]
  %v83 = vld [vmem:[%s1 + $0x90] sm:$0xf]
  %v84 = vld [vmem:[%s1 + $0x94] sm:$0xf]
  %v85 = vld [vmem:[%s1 + $0x98] sm:$0xf]
  %v86 = vld [vmem:[%s1 + $0x9c] sm:$0xf]
  %v87 = vld [vmem:[%s1 + $0xa0] sm:$0xf]
  %v88 = vld [vmem:[%s1 + $0xa4] sm:$0xf]
  %v89 = vld [vmem:[%s1 + $0xa8] sm:$0xf]
  %v90 = vld [vmem:[%s1 + $0xac] sm:$0xf]
  %v91 = vld [vmem:[%s1 + $0xb0] sm:$0xf]
  %v92 = vld [vmem:[%s1 + $0xb4] sm:$0xf]
  %v93 = vld [vmem:[%s1 + $0xb8] sm:$0xf]
  %v94 = vld [vmem:[%s1 + $0xbc] sm:$0xf]
  %v95 = vld [vmem:[%s2] sm:$0x1]
  %v97 = vlaneseq
  %v98 = vshrl.u32 %v97, 7
  %v99 = vsub.s32 0, %v98
  %v100 = vrot.slane %v95, %v99
  %v134 = vunpack.c.l.b16 %v15
  %v135 = vunpack.c.h.b16 %v15
  %v136 = vunpack.c.l.b16 %v16
  %v137 = vunpack.c.l.b16 %v17
  %v138 = vunpack.c.h.b16 %v17
  %v139 = vunpack.c.l.b16 %v18
  %v140 = vunpack.c.l.b16 %v19
  %v141 = vunpack.c.h.b16 %v19
  %v142 = vunpack.c.l.b16 %v20
  %v143 = vunpack.c.l.b16 %v21
  %v144 = vunpack.c.h.b16 %v21
  %v145 = vunpack.c.l.b16 %v22
  %v146 = vunpack.c.l.b16 %v23
  %v147 = vunpack.c.h.b16 %v23
  %v148 = vunpack.c.l.b16 %v24
  %v149 = vunpack.c.l.b16 %v25
  %v150 = vunpack.c.h.b16 %v25
  %v151 = vunpack.c.l.b16 %v26
  %v152 = vunpack.c.l.b16 %v27
  %v153 = vunpack.c.h.b16 %v27
  %v154 = vunpack.c.l.b16 %v28
  %v155 = vunpack.c.l.b16 %v29
  %v156 = vunpack.c.h.b16 %v29
  %v157 = vunpack.c.l.b16 %v30
  %v158 = vunpack.c.l.b16 %v31
  %v159 = vunpack.c.h.b16 %v31
  %v160 = vunpack.c.l.b16 %v32
  %v161 = vunpack.c.l.b16 %v33
  %v162 = vunpack.c.h.b16 %v33
  %v163 = vunpack.c.l.b16 %v34
  %v164 = vunpack.c.l.b16 %v35
  %v165 = vunpack.c.h.b16 %v35
  %v166 = vunpack.c.l.b16 %v36
  %v167 = vunpack.c.l.b16 %v37
  %v168 = vunpack.c.h.b16 %v37
  %v169 = vunpack.c.l.b16 %v38
  %v170 = vunpack.c.l.b16 %v39
  %v171 = vunpack.c.h.b16 %v39
  %v172 = vunpack.c.l.b16 %v40
  %v173 = vunpack.c.l.b16 %v41
  %v174 = vunpack.c.h.b16 %v41
  %v175 = vunpack.c.l.b16 %v42
  %v176 = vunpack.c.l.b16 %v43
  %v177 = vunpack.c.h.b16 %v43
  %v178 = vunpack.c.l.b16 %v44
  %v179 = vunpack.c.l.b16 %v45
  %v180 = vunpack.c.h.b16 %v45
  %v181 = vunpack.c.l.b16 %v46
  %v182 = vpack.c.b16 %v137, %v134
  %v183 = vpack.c.b16 %v138, %v135
  %v184 = vpack.c.b16 %v139, %v136
  %v185 = vpack.c.b16 %v143, %v140
  %v186 = vpack.c.b16 %v144, %v141
  %v187 = vpack.c.b16 %v145, %v142
  %v188 = vpack.c.b16 %v149, %v146
  %v189 = vpack.c.b16 %v150, %v147
  %v190 = vpack.c.b16 %v151, %v148
  %v191 = vpack.c.b16 %v155, %v152
  %v192 = vpack.c.b16 %v156, %v153
  %v193 = vpack.c.b16 %v157, %v154
  %v194 = vpack.c.b16 %v161, %v158
  %v195 = vpack.c.b16 %v162, %v159
  %v196 = vpack.c.b16 %v163, %v160
  %v197 = vpack.c.b16 %v167, %v164
  %v198 = vpack.c.b16 %v168, %v165
  %v199 = vpack.c.b16 %v169, %v166
  %v200 = vpack.c.b16 %v173, %v170
  %v201 = vpack.c.b16 %v174, %v171
  %v202 = vpack.c.b16 %v175, %v172
  %v203 = vpack.c.b16 %v179, %v176
  %v204 = vpack.c.b16 %v180, %v177
  %v205 = vpack.c.b16 %v181, %v178
  %v278 = vunpack.c.l.b16 %v47
  %v279 = vunpack.c.l.b16 %v48
  %v280 = vunpack.c.l.b16 %v49
  %v281 = vunpack.c.l.b16 %v50
  %v282 = vunpack.c.l.b16 %v51
  %v283 = vunpack.c.l.b16 %v52
  %v284 = vunpack.c.l.b16 %v53
  %v285 = vunpack.c.l.b16 %v54
  %v286 = vunpack.c.l.b16 %v55
  %v287 = vunpack.c.l.b16 %v56
  %v288 = vunpack.c.l.b16 %v57
  %v289 = vunpack.c.l.b16 %v58
  %v290 = vunpack.c.l.b16 %v59
  %v291 = vunpack.c.l.b16 %v60
  %v292 = vunpack.c.l.b16 %v61
  %v293 = vunpack.c.l.b16 %v62
  %v294 = vunpack.c.l.b16 %v63
  %v295 = vunpack.c.l.b16 %v64
  %v296 = vunpack.c.l.b16 %v65
  %v297 = vunpack.c.l.b16 %v66
  %v298 = vunpack.c.l.b16 %v67
  %v299 = vunpack.c.l.b16 %v68
  %v300 = vunpack.c.l.b16 %v69
  %v301 = vunpack.c.l.b16 %v70
  %v302 = vunpack.c.l.b16 %v71
  %v303 = vunpack.c.l.b16 %v72
  %v304 = vunpack.c.l.b16 %v73
  %v305 = vunpack.c.l.b16 %v74
  %v306 = vunpack.c.l.b16 %v75
  %v307 = vunpack.c.l.b16 %v76
  %v308 = vunpack.c.l.b16 %v77
  %v309 = vunpack.c.l.b16 %v78
  %v310 = vunpack.c.l.b16 %v79
  %v311 = vunpack.c.l.b16 %v80
  %v312 = vunpack.c.l.b16 %v81
  %v313 = vunpack.c.l.b16 %v82
  %v314 = vunpack.c.l.b16 %v83
  %v315 = vunpack.c.l.b16 %v84
  %v316 = vunpack.c.l.b16 %v85
  %v317 = vunpack.c.l.b16 %v86
  %v318 = vunpack.c.l.b16 %v87
  %v319 = vunpack.c.l.b16 %v88
  %v320 = vunpack.c.l.b16 %v89
  %v321 = vunpack.c.l.b16 %v90
  %v322 = vunpack.c.l.b16 %v91
  %v323 = vunpack.c.l.b16 %v92
  %v324 = vunpack.c.l.b16 %v93
  %v325 = vunpack.c.l.b16 %v94
  %v326 = vpack.c.b16 %v279, %v278
  %v327 = vpack.c.b16 %v281, %v280
  %v328 = vpack.c.b16 %v283, %v282
  %v329 = vpack.c.b16 %v285, %v284
  %v330 = vpack.c.b16 %v287, %v286
  %v331 = vpack.c.b16 %v289, %v288
  %v332 = vpack.c.b16 %v291, %v290
  %v333 = vpack.c.b16 %v293, %v292
  %v334 = vpack.c.b16 %v295, %v294
  %v335 = vpack.c.b16 %v297, %v296
  %v336 = vpack.c.b16 %v299, %v298
  %v337 = vpack.c.b16 %v301, %v300
  %v338 = vpack.c.b16 %v303, %v302
  %v339 = vpack.c.b16 %v305, %v304
  %v340 = vpack.c.b16 %v307, %v306
  %v341 = vpack.c.b16 %v309, %v308
  %v342 = vpack.c.b16 %v311, %v310
  %v343 = vpack.c.b16 %v313, %v312
  %v344 = vpack.c.b16 %v315, %v314
  %v345 = vpack.c.b16 %v317, %v316
  %v346 = vpack.c.b16 %v319, %v318
  %v347 = vpack.c.b16 %v321, %v320
  %v348 = vpack.c.b16 %v323, %v322
  %v349 = vpack.c.b16 %v325, %v324
  %374 = vmatprep.subr.bf16.mxu0 0
  %375 = vmatpush1.bf16.msra.mxu0 %v333
  %376 = vmatprep.subr.bf16.mxu0 0
  %377 = vmatpush1.bf16.msra.mxu0 %v332
  %378 = vmatprep.subr.bf16.mxu0 0
  %379 = vmatpush1.bf16.msra.mxu0 %v331
  %380 = vmatprep.subr.bf16.mxu0 0
  %381 = vmatpush1.bf16.msra.mxu0 %v330
  %382 = vmatprep.subr.bf16.mxu0 0
  %383 = vmatpush1.bf16.msra.mxu0 %v329
  %384 = vmatprep.subr.bf16.mxu0 0
  %385 = vmatpush1.bf16.msra.mxu0 %v328
  %386 = vmatprep.subr.bf16.mxu0 0
  %387 = vmatpush1.bf16.msra.mxu0 %v327
  %388 = vmatprep.subr.bf16.mxu0 0
  %389 = vmatpush1.bf16.msra.mxu0 %v326
  %390 = vmatprep.subr.bf16.mxu0 0
  %391 = vmatpush2.bf16.msra.mxu0 %v341
  %392 = vmatprep.subr.bf16.mxu0 0
  %393 = vmatpush2.bf16.msra.mxu0 %v340
  %394 = vmatprep.subr.bf16.mxu0 0
  %395 = vmatpush2.bf16.msra.mxu0 %v339
  %396 = vmatprep.subr.bf16.mxu0 0
  %397 = vmatpush2.bf16.msra.mxu0 %v338
  %398 = vmatprep.subr.bf16.mxu0 0
  %399 = vmatpush2.bf16.msra.mxu0 %v337
  %400 = vmatprep.subr.bf16.mxu0 0
  %401 = vmatpush2.bf16.msra.mxu0 %v336
  %402 = vmatprep.subr.bf16.mxu0 0
  %403 = vmatpush2.bf16.msra.mxu0 %v335
  %404 = vmatprep.subr.bf16.mxu0 0
  %405 = vmatpush2.bf16.msra.mxu0 %v334
  %406 = vmatprep.mubr.bf16.mxu0 %v183
  %407 = vmatmul.mubr.bf16.gmra.mxu0 %v182
  %v408 = vpop.f32.mrf.mxu0
  %v409 = vadd.f32 %v100, %v408
  %v410 = vpop.f32.mrf.mxu0
  %v411 = vpop.f32.mrf.mxu0
  %v412 = vadd.f32 %v100, %v411
  %v413 = vpop.f32.mrf.mxu0
  %414 = vmatprep.mubr.bf16.mxu0 %v186
  %415 = vmatmul.mubr.bf16.gmra.mxu0 %v185
  %v416 = vpop.f32.mrf.mxu0
  %v417 = vadd.f32 %v100, %v416
  %v418 = vpop.f32.mrf.mxu0
  %v419 = vpop.f32.mrf.mxu0
  %v420 = vadd.f32 %v100, %v419
  %v421 = vpop.f32.mrf.mxu0
  %422 = vmatprep.mubr.bf16.mxu0 %v189
  %423 = vmatmul.mubr.bf16.gmra.mxu0 %v188
  %v424 = vpop.f32.mrf.mxu0
  %v425 = vadd.f32 %v100, %v424
  %v426 = vpop.f32.mrf.mxu0
  %v427 = vpop.f32.mrf.mxu0
  %v428 = vadd.f32 %v100, %v427
  %v429 = vpop.f32.mrf.mxu0
  %430 = vmatprep.mubr.bf16.mxu0 %v192
  %431 = vmatmul.mubr.bf16.gmra.mxu0 %v191
  %v432 = vpop.f32.mrf.mxu0
  %v433 = vadd.f32 %v100, %v432
  %v434 = vpop.f32.mrf.mxu0
  %v435 = vpop.f32.mrf.mxu0
  %v436 = vadd.f32 %v100, %v435
  %v437 = vpop.f32.mrf.mxu0
  %438 = vmatprep.mubr.bf16.mxu0 %v195
  %439 = vmatmul.mubr.bf16.gmra.mxu0 %v194
  %v440 = vpop.f32.mrf.mxu0
  %v441 = vadd.f32 %v100, %v440
  %v442 = vpop.f32.mrf.mxu0
  %v443 = vpop.f32.mrf.mxu0
  %v444 = vadd.f32 %v100, %v443
  %v445 = vpop.f32.mrf.mxu0
  %446 = vmatprep.mubr.bf16.mxu0 %v198
  %447 = vmatmul.mubr.bf16.gmra.mxu0 %v197
  %v448 = vpop.f32.mrf.mxu0
  %v449 = vadd.f32 %v100, %v448
  %v450 = vpop.f32.mrf.mxu0
  %v451 = vpop.f32.mrf.mxu0
  %v452 = vadd.f32 %v100, %v451
  %v453 = vpop.f32.mrf.mxu0
  %454 = vmatprep.mubr.bf16.mxu0 %v201
  %455 = vmatmul.mubr.bf16.gmra.mxu0 %v200
  %v456 = vpop.f32.mrf.mxu0
  %v457 = vadd.f32 %v100, %v456
  %v458 = vpop.f32.mrf.mxu0
  %v459 = vpop.f32.mrf.mxu0
  %v460 = vadd.f32 %v100, %v459
  %v461 = vpop.f32.mrf.mxu0
  %462 = vmatprep.mubr.bf16.mxu0 %v204
  %463 = vmatmul.mubr.bf16.gmra.mxu0 %v203
  %v464 = vpop.f32.mrf.mxu0
  %v465 = vadd.f32 %v100, %v464
  %v466 = vpop.f32.mrf.mxu0
  %v467 = vpop.f32.mrf.mxu0
  %v468 = vadd.f32 %v100, %v467
  %v469 = vpop.f32.mrf.mxu0
  %470 = vdwg.mxu0
  %471 = vmatprep.subr.bf16.mxu0 0
  %472 = vmatpush1.bf16.msra.mxu0 %v349
  %473 = vmatprep.subr.bf16.mxu0 0
  %474 = vmatpush1.bf16.msra.mxu0 %v348
  %475 = vmatprep.subr.bf16.mxu0 0
  %476 = vmatpush1.bf16.msra.mxu0 %v347
  %477 = vmatprep.subr.bf16.mxu0 0
  %478 = vmatpush1.bf16.msra.mxu0 %v346
  %479 = vmatprep.subr.bf16.mxu0 0
  %480 = vmatpush1.bf16.msra.mxu0 %v345
  %481 = vmatprep.subr.bf16.mxu0 0
  %482 = vmatpush1.bf16.msra.mxu0 %v344
  %483 = vmatprep.subr.bf16.mxu0 0
  %484 = vmatpush1.bf16.msra.mxu0 %v343
  %485 = vmatprep.subr.bf16.mxu0 0
  %486 = vmatpush1.bf16.msra.mxu0 %v342
  %487 = vmatprep.subr.bf16.mxu0 0
  %488 = vmatpush2.bf16.msra.mxu0 0
  %489 = vmatprep.subr.bf16.mxu0 0
  %490 = vmatpush2.bf16.msra.mxu0 0
  %491 = vmatprep.subr.bf16.mxu0 0
  %492 = vmatpush2.bf16.msra.mxu0 0
  %493 = vmatprep.subr.bf16.mxu0 0
  %494 = vmatpush2.bf16.msra.mxu0 0
  %495 = vmatprep.subr.bf16.mxu0 0
  %496 = vmatpush2.bf16.msra.mxu0 0
  %497 = vmatprep.subr.bf16.mxu0 0
  %498 = vmatpush2.bf16.msra.mxu0 0
  %499 = vmatprep.subr.bf16.mxu0 0
  %500 = vmatpush2.bf16.msra.mxu0 0
  %501 = vmatprep.subr.bf16.mxu0 0
  %502 = vmatpush2.bf16.msra.mxu0 0
  %503 = vmatprep.mubr.bf16.mxu0 0
  %504 = vmatmul.mubr.bf16.gmra.mxu0 %v184
  %v505 = vpop.f32.mrf.mxu0
  %v506 = vadd.f32 %v409, %v505
  %v507 = vpop.f32.mrf.mxu0
  %v508 = vpop.f32.mrf.mxu0
  %v509 = vadd.f32 %v412, %v508
  %v510 = vpop.f32.mrf.mxu0
  %511 = vmatprep.mubr.bf16.mxu0 0
  %512 = vmatmul.mubr.bf16.gmra.mxu0 %v187
  %v513 = vpop.f32.mrf.mxu0
  %v514 = vadd.f32 %v417, %v513
  %v515 = vpop.f32.mrf.mxu0
  %v516 = vpop.f32.mrf.mxu0
  %v517 = vadd.f32 %v420, %v516
  %v518 = vpop.f32.mrf.mxu0
  %519 = vmatprep.mubr.bf16.mxu0 0
  %520 = vmatmul.mubr.bf16.gmra.mxu0 %v190
  %v521 = vpop.f32.mrf.mxu0
  %v522 = vadd.f32 %v425, %v521
  %v523 = vpop.f32.mrf.mxu0
  %v524 = vpop.f32.mrf.mxu0
  %v525 = vadd.f32 %v428, %v524
  %v526 = vpop.f32.mrf.mxu0
  %527 = vmatprep.mubr.bf16.mxu0 0
  %528 = vmatmul.mubr.bf16.gmra.mxu0 %v193
  %v529 = vpop.f32.mrf.mxu0
  %v530 = vadd.f32 %v433, %v529
  %v531 = vpop.f32.mrf.mxu0
  %v532 = vpop.f32.mrf.mxu0
  %v533 = vadd.f32 %v436, %v532
  %v534 = vpop.f32.mrf.mxu0
  %535 = vmatprep.mubr.bf16.mxu0 0
  %536 = vmatmul.mubr.bf16.gmra.mxu0 %v196
  %v537 = vpop.f32.mrf.mxu0
  %v538 = vadd.f32 %v441, %v537
  %v539 = vpop.f32.mrf.mxu0
  %v540 = vpop.f32.mrf.mxu0
  %v541 = vadd.f32 %v444, %v540
  %v542 = vpop.f32.mrf.mxu0
  %543 = vmatprep.mubr.bf16.mxu0 0
  %544 = vmatmul.mubr.bf16.gmra.mxu0 %v199
  %v545 = vpop.f32.mrf.mxu0
  %v546 = vadd.f32 %v449, %v545
  %v547 = vpop.f32.mrf.mxu0
  %v548 = vpop.f32.mrf.mxu0
  %v549 = vadd.f32 %v452, %v548
  %v550 = vpop.f32.mrf.mxu0
  %551 = vmatprep.mubr.bf16.mxu0 0
  %552 = vmatmul.mubr.bf16.gmra.mxu0 %v202
  %v553 = vpop.f32.mrf.mxu0
  %v554 = vadd.f32 %v457, %v553
  %v555 = vpop.f32.mrf.mxu0
  %v556 = vpop.f32.mrf.mxu0
  %v557 = vadd.f32 %v460, %v556
  %v558 = vpop.f32.mrf.mxu0
  %559 = vmatprep.mubr.bf16.mxu0 0
  %560 = vmatmul.mubr.bf16.gmra.mxu0 %v205
  %v561 = vpop.f32.mrf.mxu0
  %v562 = vadd.f32 %v465, %v561
  %v563 = vpop.f32.mrf.mxu0
  %v564 = vpop.f32.mrf.mxu0
  %v565 = vadd.f32 %v468, %v564
  %v566 = vpop.f32.mrf.mxu0
  %567 = vdwg.mxu0
  %v568 = vmax.f32 %v506, 0.0
  %v569 = vmax.f32 %v509, 0.0
  %v570 = vmax.f32 %v514, 0.0
  %v571 = vmax.f32 %v517, 0.0
  %v572 = vmax.f32 %v522, 0.0
  %v573 = vmax.f32 %v525, 0.0
  %v574 = vmax.f32 %v530, 0.0
  %v575 = vmax.f32 %v533, 0.0
  %v576 = vmax.f32 %v538, 0.0
  %v577 = vmax.f32 %v541, 0.0
  %v578 = vmax.f32 %v546, 0.0
  %v579 = vmax.f32 %v549, 0.0
  %v580 = vmax.f32 %v554, 0.0
  %v581 = vmax.f32 %v557, 0.0
  %v582 = vmax.f32 %v562, 0.0
  %v583 = vmax.f32 %v565, 0.0
  %584 = vst [vmem:[%s3] sm:$0xff] %v568
  %585 = vst [vmem:[%s3 + $0x8] sm:$0xff] %v569
  %586 = vst [vmem:[%s3 + $0x10] sm:$0xff] %v570
  %587 = vst [vmem:[%s3 + $0x18] sm:$0xff] %v571
  %588 = vst [vmem:[%s3 + $0x20] sm:$0xff] %v572
  %589 = vst [vmem:[%s3 + $0x28] sm:$0xff] %v573
  %590 = vst [vmem:[%s3 + $0x30] sm:$0xff] %v574
  %591 = vst [vmem:[%s3 + $0x38] sm:$0xff] %v575
  %592 = vst [vmem:[%s3 + $0x40] sm:$0xff] %v576
  %593 = vst [vmem:[%s3 + $0x48] sm:$0xff] %v577
  %594 = vst [vmem:[%s3 + $0x50] sm:$0xff] %v578
  %595 = vst [vmem:[%s3 + $0x58] sm:$0xff] %v579
  %596 = vst [vmem:[%s3 + $0x60] sm:$0xff] %v580
  %597 = vst [vmem:[%s3 + $0x68] sm:$0xff] %v581
  %598 = vst [vmem:[%s3 + $0x70] sm:$0xff] %v582
  %599 = vst [vmem:[%s3 + $0x78] sm:$0xff] %v583
  // Predicated region
  $region14: #{net_forward.9} parent=0 // pred_check
    _
  $region15: #{net_forward.9} parent=0 // pred_check_branch
    %601 = sbr.rel (0) target = $region17
  $region16: #{net_forward.9} parent=0 // pred_region
    _
  $region17: #{net_forward.9} parent=0 // pred_fallthru
    _
  // Predicated region
  $region18: #{net_forward.9} parent=0 // pred_check
    _
  $region19: #{net_forward.9} parent=0 // pred_check_branch
    %603 = sbr.rel (0) target = $region21
  $region20: #{net_forward.9} parent=0 // pred_region
    _
  $region21: #{net_forward.9} parent=0 // pred_fallthru
    _

// kernel: net_forward.10
$region0: #{net_forward.10}
  #allocation0 [shape = 'u32[]', space=smem, size = 0x4, offset = 0x4, fixed_abs, tag = 'smem constant byte address 0x4 - core index']
  #allocation1 [shape = 'u32[144,128]{1,0:T(1,128)}', space=vmem, size = 0x12000, scoped, tag = 'internal scratch']
  %s0 = inlined_call_operand.vmem [shape: bf16[32,384], index: 0, kind: input, shape index: {}]
  %s1 = inlined_call_operand.vmem [shape: bf16[32,384], index: 1, kind: input, shape index: {}]
  %s2 = inlined_call_operand.vmem [shape: bf16[32,384], index: 2, kind: input, shape index: {}]
  %s3 = inlined_call_operand.vmem [shape: bf16[32,384], index: 3, kind: input, shape index: {}]
  %s4 = inlined_call_operand.vmem [shape: bf16[384,128], index: 4, kind: input, shape index: {}]
  %s5 = inlined_call_operand.vmem [shape: f32[1,128], index: 5, kind: input, shape index: {}]
  %s6 = inlined_call_operand.vmem [shape: f32[32,128], index: 6, kind: output, shape index: {}]
  %s7 = sld [smem:[#allocation0]]
  $region34: #{net_forward.10} parent=0
    _
  %s9 = ssub.s32 1, %s7
  %s10 = scalar_select 0, %s9, %s7
  // Predicated region
  $region2: #{net_forward.10} parent=0 // pred_check
    _
  $region3: #{net_forward.10} parent=0 // pred_check_branch
    %12 = sbr.rel (0) target = $region5
  $region4: #{net_forward.10} parent=0 // pred_region
    _
  $region5: #{net_forward.10} parent=0 // pred_fallthru
    _
  // Predicated region
  $region6: #{net_forward.10} parent=0 // pred_check
    _
  $region7: #{net_forward.10} parent=0 // pred_check_branch
    %14 = sbr.rel (0) target = $region9
  $region8: #{net_forward.10} parent=0 // pred_region
    _
  $region9: #{net_forward.10} parent=0 // pred_fallthru
    _
  // Predicated region
  $region10: #{net_forward.10} parent=0 // pred_check
    _
  $region11: #{net_forward.10} parent=0 // pred_check_branch
    %16 = sbr.rel (0) target = $region13
  $region12: #{net_forward.10} parent=0 // pred_region
    _
  $region13: #{net_forward.10} parent=0 // pred_fallthru
    _
  // Predicated region
  $region14: #{net_forward.10} parent=0 // pred_check
    _
  $region15: #{net_forward.10} parent=0 // pred_check_branch
    %18 = sbr.rel (0) target = $region17
  $region16: #{net_forward.10} parent=0 // pred_region
    _
  $region17: #{net_forward.10} parent=0 // pred_fallthru
    _
  // Predicated region
  $region18: #{net_forward.10} parent=0 // pred_check
    _
  $region19: #{net_forward.10} parent=0 // pred_check_branch
    %20 = sbr.rel (0) target = $region21
  $region20: #{net_forward.10} parent=0 // pred_region
    _
  $region21: #{net_forward.10} parent=0 // pred_fallthru
    _
  // Predicated region
  $region22: #{net_forward.10} parent=0 // pred_check
    _
  $region23: #{net_forward.10} parent=0 // pred_check_branch
    %22 = sbr.rel (0) target = $region25
  $region24: #{net_forward.10} parent=0 // pred_region
    _
  $region25: #{net_forward.10} parent=0 // pred_fallthru
    _
  %v24 = vld [vmem:[%s4] sm:$0xf]
  %v25 = vld [vmem:[%s4 + $0x4] sm:$0xf]
  %v26 = vld [vmem:[%s4 + $0x8] sm:$0xf]
  %v27 = vld [vmem:[%s4 + $0xc] sm:$0xf]
  %v28 = vld [vmem:[%s4 + $0x10] sm:$0xf]
  %v29 = vld [vmem:[%s4 + $0x14] sm:$0xf]
  %v30 = vld [vmem:[%s4 + $0x18] sm:$0xf]
  %v31 = vld [vmem:[%s4 + $0x1c] sm:$0xf]
  %v32 = vld [vmem:[%s4 + $0x20] sm:$0xf]
  %v33 = vld [vmem:[%s4 + $0x24] sm:$0xf]
  %v34 = vld [vmem:[%s4 + $0x28] sm:$0xf]
  %v35 = vld [vmem:[%s4 + $0x2c] sm:$0xf]
  %v36 = vld [vmem:[%s4 + $0x30] sm:$0xf]
  %v37 = vld [vmem:[%s4 + $0x34] sm:$0xf]
  %v38 = vld [vmem:[%s4 + $0x38] sm:$0xf]
  %v39 = vld [vmem:[%s4 + $0x3c] sm:$0xf]
  %v40 = vld [vmem:[%s4 + $0x40] sm:$0xf]
  %v41 = vld [vmem:[%s4 + $0x44] sm:$0xf]
  %v42 = vld [vmem:[%s4 + $0x48] sm:$0xf]
  %v43 = vld [vmem:[%s4 + $0x4c] sm:$0xf]
  %v44 = vld [vmem:[%s4 + $0x50] sm:$0xf]
  %v45 = vld [vmem:[%s4 + $0x54] sm:$0xf]
  %v46 = vld [vmem:[%s4 + $0x58] sm:$0xf]
  %v47 = vld [vmem:[%s4 + $0x5c] sm:$0xf]
  %v48 = vld [vmem:[%s4 + $0x60] sm:$0xf]
  %v49 = vld [vmem:[%s4 + $0x64] sm:$0xf]
  %v50 = vld [vmem:[%s4 + $0x68] sm:$0xf]
  %v51 = vld [vmem:[%s4 + $0x6c] sm:$0xf]
  %v52 = vld [vmem:[%s4 + $0x70] sm:$0xf]
  %v53 = vld [vmem:[%s4 + $0x74] sm:$0xf]
  %v54 = vld [vmem:[%s4 + $0x78] sm:$0xf]
  %v55 = vld [vmem:[%s4 + $0x7c] sm:$0xf]
  %v56 = vld [vmem:[%s4 + $0x80] sm:$0xf]
  %v57 = vld [vmem:[%s4 + $0x84] sm:$0xf]
  %v58 = vld [vmem:[%s4 + $0x88] sm:$0xf]
  %v59 = vld [vmem:[%s4 + $0x8c] sm:$0xf]
  %v60 = vld [vmem:[%s4 + $0x90] sm:$0xf]
  %v61 = vld [vmem:[%s4 + $0x94] sm:$0xf]
  %v62 = vld [vmem:[%s4 + $0x98] sm:$0xf]
  %v63 = vld [vmem:[%s4 + $0x9c] sm:$0xf]
  %v64 = vld [vmem:[%s4 + $0xa0] sm:$0xf]
  %v65 = vld [vmem:[%s4 + $0xa4] sm:$0xf]
  %v66 = vld [vmem:[%s4 + $0xa8] sm:$0xf]
  %v67 = vld [vmem:[%s4 + $0xac] sm:$0xf]
  %v68 = vld [vmem:[%s4 + $0xb0] sm:$0xf]
  %v69 = vld [vmem:[%s4 + $0xb4] sm:$0xf]
  %v70 = vld [vmem:[%s4 + $0xb8] sm:$0xf]
  %v71 = vld [vmem:[%s4 + $0xbc] sm:$0xf]
  %v72 = vld [vmem:[%s0] sm:$0xff]
  %v73 = vld [vmem:[%s0 + $0x8] sm:$0xf]
  %v74 = vld [vmem:[%s0 + $0xc] sm:$0xff]
  %v75 = vld [vmem:[%s0 + $0x14] sm:$0xf]
  %v76 = vld [vmem:[%s0 + $0x18] sm:$0xff]
  %v77 = vld [vmem:[%s0 + $0x20] sm:$0xf]
  %v78 = vld [vmem:[%s0 + $0x24] sm:$0xff]
  %v79 = vld [vmem:[%s0 + $0x2c] sm:$0xf]
  %v88 = vunpack.c.l.b16 %v72
  %v89 = vunpack.c.h.b16 %v72
  %v90 = vunpack.c.l.b16 %v73
  %v91 = vunpack.c.l.b16 %v74
  %v92 = vunpack.c.h.b16 %v74
  %v93 = vunpack.c.l.b16 %v75
  %v94 = vunpack.c.l.b16 %v76
  %v95 = vunpack.c.h.b16 %v76
  %v96 = vunpack.c.l.b16 %v77
  %v97 = vunpack.c.l.b16 %v78
  %v98 = vunpack.c.h.b16 %v78
  %v99 = vunpack.c.l.b16 %v79
  %v100 = vpack.c.b16 %v91, %v88
  %v101 = vpack.c.b16 %v92, %v89
  %v102 = vpack.c.b16 %v93, %v90
  %v103 = vpack.c.b16 %v97, %v94
  %v104 = vpack.c.b16 %v98, %v95
  %v105 = vpack.c.b16 %v99, %v96
  %v160 = vunpack.c.l.b16 %v24
  %v161 = vunpack.c.l.b16 %v25
  %v162 = vunpack.c.l.b16 %v26
  %v163 = vunpack.c.l.b16 %v27
  %v164 = vunpack.c.l.b16 %v28
  %v165 = vunpack.c.l.b16 %v29
  %v166 = vunpack.c.l.b16 %v30
  %v167 = vunpack.c.l.b16 %v31
  %v168 = vunpack.c.l.b16 %v32
  %v169 = vunpack.c.l.b16 %v33
  %v170 = vunpack.c.l.b16 %v34
  %v171 = vunpack.c.l.b16 %v35
  %v172 = vunpack.c.l.b16 %v36
  %v173 = vunpack.c.l.b16 %v37
  %v174 = vunpack.c.l.b16 %v38
  %v175 = vunpack.c.l.b16 %v39
  %v176 = vunpack.c.l.b16 %v40
  %v177 = vunpack.c.l.b16 %v41
  %v178 = vunpack.c.l.b16 %v42
  %v179 = vunpack.c.l.b16 %v43
  %v180 = vunpack.c.l.b16 %v44
  %v181 = vunpack.c.l.b16 %v45
  %v182 = vunpack.c.l.b16 %v46
  %v183 = vunpack.c.l.b16 %v47
  %v184 = vunpack.c.l.b16 %v48
  %v185 = vunpack.c.l.b16 %v49
  %v186 = vunpack.c.l.b16 %v50
  %v187 = vunpack.c.l.b16 %v51
  %v188 = vunpack.c.l.b16 %v52
  %v189 = vunpack.c.l.b16 %v53
  %v190 = vunpack.c.l.b16 %v54
  %v191 = vunpack.c.l.b16 %v55
  %v192 = vunpack.c.l.b16 %v56
  %v193 = vunpack.c.l.b16 %v57
  %v194 = vunpack.c.l.b16 %v58
  %v195 = vunpack.c.l.b16 %v59
  %v196 = vunpack.c.l.b16 %v60
  %v197 = vunpack.c.l.b16 %v61
  %v198 = vunpack.c.l.b16 %v62
  %v199 = vunpack.c.l.b16 %v63
  %v200 = vunpack.c.l.b16 %v64
  %v201 = vunpack.c.l.b16 %v65
  %v202 = vunpack.c.l.b16 %v66
  %v203 = vunpack.c.l.b16 %v67
  %v204 = vunpack.c.l.b16 %v68
  %v205 = vunpack.c.l.b16 %v69
  %v206 = vunpack.c.l.b16 %v70
  %v207 = vunpack.c.l.b16 %v71
  %v208 = vpack.c.b16 %v161, %v160
  %v209 = vpack.c.b16 %v163, %v162
  %v210 = vpack.c.b16 %v165, %v164
  %v211 = vpack.c.b16 %v167, %v166
  %v212 = vpack.c.b16 %v169, %v168
  %v213 = vpack.c.b16 %v171, %v170
  %v214 = vpack.c.b16 %v173, %v172
  %v215 = vpack.c.b16 %v175, %v174
  %v216 = vpack.c.b16 %v177, %v176
  %v217 = vpack.c.b16 %v179, %v178
  %v218 = vpack.c.b16 %v181, %v180
  %v219 = vpack.c.b16 %v183, %v182
  %v220 = vpack.c.b16 %v185, %v184
  %v221 = vpack.c.b16 %v187, %v186
  %v222 = vpack.c.b16 %v189, %v188
  %v223 = vpack.c.b16 %v191, %v190
  %v224 = vpack.c.b16 %v193, %v192
  %v225 = vpack.c.b16 %v195, %v194
  %v226 = vpack.c.b16 %v197, %v196
  %v227 = vpack.c.b16 %v199, %v198
  %v228 = vpack.c.b16 %v201, %v200
  %v229 = vpack.c.b16 %v203, %v202
  %v230 = vpack.c.b16 %v205, %v204
  %v231 = vpack.c.b16 %v207, %v206
  %256 = vmatprep.subr.bf16.mxu0 0
  %257 = vmatpush1.bf16.msra.mxu0 %v215
  %258 = vmatprep.subr.bf16.mxu0 0
  %259 = vmatpush1.bf16.msra.mxu0 %v214
  %260 = vmatprep.subr.bf16.mxu0 0
  %261 = vmatpush1.bf16.msra.mxu0 %v213
  %262 = vmatprep.subr.bf16.mxu0 0
  %263 = vmatpush1.bf16.msra.mxu0 %v212
  %264 = vmatprep.subr.bf16.mxu0 0
  %265 = vmatpush1.bf16.msra.mxu0 %v211
  %266 = vmatprep.subr.bf16.mxu0 0
  %267 = vmatpush1.bf16.msra.mxu0 %v210
  %268 = vmatprep.subr.bf16.mxu0 0
  %269 = vmatpush1.bf16.msra.mxu0 %v209
  %270 = vmatprep.subr.bf16.mxu0 0
  %271 = vmatpush1.bf16.msra.mxu0 %v208
  %272 = vmatprep.subr.bf16.mxu0 0
  %273 = vmatpush2.bf16.msra.mxu0 %v223
  %274 = vmatprep.subr.bf16.mxu0 0
  %275 = vmatpush2.bf16.msra.mxu0 %v222
  %276 = vmatprep.subr.bf16.mxu0 0
  %277 = vmatpush2.bf16.msra.mxu0 %v221
  %278 = vmatprep.subr.bf16.mxu0 0
  %279 = vmatpush2.bf16.msra.mxu0 %v220
  %280 = vmatprep.subr.bf16.mxu0 0
  %281 = vmatpush2.bf16.msra.mxu0 %v219
  %282 = vmatprep.subr.bf16.mxu0 0
  %283 = vmatpush2.bf16.msra.mxu0 %v218
  %284 = vmatprep.subr.bf16.mxu0 0
  %285 = vmatpush2.bf16.msra.mxu0 %v217
  %286 = vmatprep.subr.bf16.mxu0 0
  %287 = vmatpush2.bf16.msra.mxu0 %v216
  %288 = vmatprep.mubr.bf16.mxu0 %v101
  %289 = vmatmul.mubr.bf16.gmra.mxu0 %v100
  %v290 = vpop.f32.mrf.mxu0
  %v291 = vadd.f32 0.0, %v290
  %v292 = vpop.f32.mrf.mxu0
  %v293 = vpop.f32.mrf.mxu0
  %v294 = vadd.f32 0.0, %v293
  %v295 = vpop.f32.mrf.mxu0
  %296 = vmatprep.mubr.bf16.mxu0 %v104
  %297 = vmatmul.mubr.bf16.gmra.mxu0 %v103
  %v298 = vpop.f32.mrf.mxu0
  %v299 = vadd.f32 0.0, %v298
  %v300 = vpop.f32.mrf.mxu0
  %v301 = vpop.f32.mrf.mxu0
  %v302 = vadd.f32 0.0, %v301
  %v303 = vpop.f32.mrf.mxu0
  %304 = vdwg.mxu0
  %305 = vmatprep.subr.bf16.mxu0 0
  %306 = vmatpush1.bf16.msra.mxu0 %v231
  %307 = vmatprep.subr.bf16.mxu0 0
  %308 = vmatpush1.bf16.msra.mxu0 %v230
  %309 = vmatprep.subr.bf16.mxu0 0
  %310 = vmatpush1.bf16.msra.mxu0 %v229
  %311 = vmatprep.subr.bf16.mxu0 0
  %312 = vmatpush1.bf16.msra.mxu0 %v228
  %313 = vmatprep.subr.bf16.mxu0 0
  %314 = vmatpush1.bf16.msra.mxu0 %v227
  %315 = vmatprep.subr.bf16.mxu0 0
  %316 = vmatpush1.bf16.msra.mxu0 %v226
  %317 = vmatprep.subr.bf16.mxu0 0
  %318 = vmatpush1.bf16.msra.mxu0 %v225
  %319 = vmatprep.subr.bf16.mxu0 0
  %320 = vmatpush1.bf16.msra.mxu0 %v224
  %321 = vmatprep.subr.bf16.mxu0 0
  %322 = vmatpush2.bf16.msra.mxu0 0
  %323 = vmatprep.subr.bf16.mxu0 0
  %324 = vmatpush2.bf16.msra.mxu0 0
  %325 = vmatprep.subr.bf16.mxu0 0
  %326 = vmatpush2.bf16.msra.mxu0 0
  %327 = vmatprep.subr.bf16.mxu0 0
  %328 = vmatpush2.bf16.msra.mxu0 0
  %329 = vmatprep.subr.bf16.mxu0 0
  %330 = vmatpush2.bf16.msra.mxu0 0
  %331 = vmatprep.subr.bf16.mxu0 0
  %332 = vmatpush2.bf16.msra.mxu0 0
  %333 = vmatprep.subr.bf16.mxu0 0
  %334 = vmatpush2.bf16.msra.mxu0 0
  %335 = vmatprep.subr.bf16.mxu0 0
  %336 = vmatpush2.bf16.msra.mxu0 0
  %337 = vmatprep.mubr.bf16.mxu0 0
  %338 = vmatmul.mubr.bf16.gmra.mxu0 %v102
  %v339 = vpop.f32.mrf.mxu0
  %v340 = vadd.f32 %v291, %v339
  %v341 = vpop.f32.mrf.mxu0
  %v342 = vpop.f32.mrf.mxu0
  %v343 = vadd.f32 %v294, %v342
  %v344 = vpop.f32.mrf.mxu0
  %345 = vmatprep.mubr.bf16.mxu0 0
  %346 = vmatmul.mubr.bf16.gmra.mxu0 %v105
  %v347 = vpop.f32.mrf.mxu0
  %v348 = vadd.f32 %v299, %v347
  %v349 = vpop.f32.mrf.mxu0
  %v350 = vpop.f32.mrf.mxu0
  %v351 = vadd.f32 %v302, %v350
  %v352 = vpop.f32.mrf.mxu0
  %353 = vdwg.mxu0
  %v354 = vld [vmem:[%s1] sm:$0xff]
  %v355 = vld [vmem:[%s1 + $0x8] sm:$0xf]
  %v356 = vld [vmem:[%s1 + $0xc] sm:$0xff]
  %v357 = vld [vmem:[%s1 + $0x14] sm:$0xf]
  %v358 = vld [vmem:[%s1 + $0x18] sm:$0xff]
  %v359 = vld [vmem:[%s1 + $0x20] sm:$0xf]
  %v360 = vld [vmem:[%s1 + $0x24] sm:$0xff]
  %v361 = vld [vmem:[%s1 + $0x2c] sm:$0xf]
  %v370 = vunpack.c.l.b16 %v354
  %v371 = vunpack.c.h.b16 %v354
  %v372 = vunpack.c.l.b16 %v355
  %v373 = vunpack.c.l.b16 %v356
  %v374 = vunpack.c.h.b16 %v356
  %v375 = vunpack.c.l.b16 %v357
  %v376 = vunpack.c.l.b16 %v358
  %v377 = vunpack.c.h.b16 %v358
  %v378 = vunpack.c.l.b16 %v359
  %v379 = vunpack.c.l.b16 %v360
  %v380 = vunpack.c.h.b16 %v360
  %v381 = vunpack.c.l.b16 %v361
  %v382 = vpack.c.b16 %v373, %v370
  %v383 = vpack.c.b16 %v374, %v371
  %v384 = vpack.c.b16 %v375, %v372
  %v385 = vpack.c.b16 %v379, %v376
  %v386 = vpack.c.b16 %v380, %v377
  %v387 = vpack.c.b16 %v381, %v378
  %394 = vmatprep.subr.bf16.mxu0 0
  %395 = vmatpush1.bf16.msra.mxu0 %v215
  %396 = vmatprep.subr.bf16.mxu0 0
  %397 = vmatpush1.bf16.msra.mxu0 %v214
  %398 = vmatprep.subr.bf16.mxu0 0
  %399 = vmatpush1.bf16.msra.mxu0 %v213
  %400 = vmatprep.subr.bf16.mxu0 0
  %401 = vmatpush1.bf16.msra.mxu0 %v212
  %402 = vmatprep.subr.bf16.mxu0 0
  %403 = vmatpush1.bf16.msra.mxu0 %v211
  %404 = vmatprep.subr.bf16.mxu0 0
  %405 = vmatpush1.bf16.msra.mxu0 %v210
  %406 = vmatprep.subr.bf16.mxu0 0
  %407 = vmatpush1.bf16.msra.mxu0 %v209
  %408 = vmatprep.subr.bf16.mxu0 0
  %409 = vmatpush1.bf16.msra.mxu0 %v208
  %410 = vmatprep.subr.bf16.mxu0 0
  %411 = vmatpush2.bf16.msra.mxu0 %v223
  %412 = vmatprep.subr.bf16.mxu0 0
  %413 = vmatpush2.bf16.msra.mxu0 %v222
  %414 = vmatprep.subr.bf16.mxu0 0
  %415 = vmatpush2.bf16.msra.mxu0 %v221
  %416 = vmatprep.subr.bf16.mxu0 0
  %417 = vmatpush2.bf16.msra.mxu0 %v220
  %418 = vmatprep.subr.bf16.mxu0 0
  %419 = vmatpush2.bf16.msra.mxu0 %v219
  %420 = vmatprep.subr.bf16.mxu0 0
  %421 = vmatpush2.bf16.msra.mxu0 %v218
  %422 = vmatprep.subr.bf16.mxu0 0
  %423 = vmatpush2.bf16.msra.mxu0 %v217
  %424 = vmatprep.subr.bf16.mxu0 0
  %425 = vmatpush2.bf16.msra.mxu0 %v216
  %426 = vmatprep.mubr.bf16.mxu0 %v383
  %427 = vmatmul.mubr.bf16.gmra.mxu0 %v382
  %v428 = vpop.f32.mrf.mxu0
  %v429 = vadd.f32 0.0, %v428
  %v430 = vpop.f32.mrf.mxu0
  %v431 = vpop.f32.mrf.mxu0
  %v432 = vadd.f32 0.0, %v431
  %v433 = vpop.f32.mrf.mxu0
  %434 = vmatprep.mubr.bf16.mxu0 %v386
  %435 = vmatmul.mubr.bf16.gmra.mxu0 %v385
  %v436 = vpop.f32.mrf.mxu0
  %v437 = vadd.f32 0.0, %v436
  %v438 = vpop.f32.mrf.mxu0
  %v439 = vpop.f32.mrf.mxu0
  %v440 = vadd.f32 0.0, %v439
  %v441 = vpop.f32.mrf.mxu0
  %442 = vdwg.mxu0
  %443 = vmatprep.subr.bf16.mxu0 0
  %444 = vmatpush1.bf16.msra.mxu0 %v231
  %445 = vmatprep.subr.bf16.mxu0 0
  %446 = vmatpush1.bf16.msra.mxu0 %v230
  %447 = vmatprep.subr.bf16.mxu0 0
  %448 = vmatpush1.bf16.msra.mxu0 %v229
  %449 = vmatprep.subr.bf16.mxu0 0
  %450 = vmatpush1.bf16.msra.mxu0 %v228
  %451 = vmatprep.subr.bf16.mxu0 0
  %452 = vmatpush1.bf16.msra.mxu0 %v227
  %453 = vmatprep.subr.bf16.mxu0 0
  %454 = vmatpush1.bf16.msra.mxu0 %v226
  %455 = vmatprep.subr.bf16.mxu0 0
  %456 = vmatpush1.bf16.msra.mxu0 %v225
  %457 = vmatprep.subr.bf16.mxu0 0
  %458 = vmatpush1.bf16.msra.mxu0 %v224
  %459 = vmatprep.subr.bf16.mxu0 0
  %460 = vmatpush2.bf16.msra.mxu0 0
  %461 = vmatprep.subr.bf16.mxu0 0
  %462 = vmatpush2.bf16.msra.mxu0 0
  %463 = vmatprep.subr.bf16.mxu0 0
  %464 = vmatpush2.bf16.msra.mxu0 0
  %465 = vmatprep.subr.bf16.mxu0 0
  %466 = vmatpush2.bf16.msra.mxu0 0
  %467 = vmatprep.subr.bf16.mxu0 0
  %468 = vmatpush2.bf16.msra.mxu0 0
  %469 = vmatprep.subr.bf16.mxu0 0
  %470 = vmatpush2.bf16.msra.mxu0 0
  %471 = vmatprep.subr.bf16.mxu0 0
  %472 = vmatpush2.bf16.msra.mxu0 0
  %473 = vmatprep.subr.bf16.mxu0 0
  %474 = vmatpush2.bf16.msra.mxu0 0
  %475 = vmatprep.mubr.bf16.mxu0 0
  %476 = vmatmul.mubr.bf16.gmra.mxu0 %v384
  %v477 = vpop.f32.mrf.mxu0
  %v478 = vadd.f32 %v429, %v477
  %v479 = vpop.f32.mrf.mxu0
  %v480 = vpop.f32.mrf.mxu0
  %v481 = vadd.f32 %v432, %v480
  %v482 = vpop.f32.mrf.mxu0
  %483 = vmatprep.mubr.bf16.mxu0 0
  %484 = vmatmul.mubr.bf16.gmra.mxu0 %v387
  %v485 = vpop.f32.mrf.mxu0
  %v486 = vadd.f32 %v437, %v485
  %v487 = vpop.f32.mrf.mxu0
  %v488 = vpop.f32.mrf.mxu0
  %v489 = vadd.f32 %v440, %v488
  %v490 = vpop.f32.mrf.mxu0
  %491 = vdwg.mxu0
  %v492 = vld [vmem:[%s2] sm:$0xff]
  %v493 = vld [vmem:[%s2 + $0x8] sm:$0xf]
  %v494 = vld [vmem:[%s2 + $0xc] sm:$0xff]
  %v495 = vld [vmem:[%s2 + $0x14] sm:$0xf]
  %v496 = vld [vmem:[%s2 + $0x18] sm:$0xff]
  %v497 = vld [vmem:[%s2 + $0x20] sm:$0xf]
  %v498 = vld [vmem:[%s2 + $0x24] sm:$0xff]
  %v499 = vld [vmem:[%s2 + $0x2c] sm:$0xf]
  %v508 = vunpack.c.l.b16 %v492
  %v509 = vunpack.c.h.b16 %v492
  %v510 = vunpack.c.l.b16 %v493
  %v511 = vunpack.c.l.b16 %v494
  %v512 = vunpack.c.h.b16 %v494
  %v513 = vunpack.c.l.b16 %v495
  %v514 = vunpack.c.l.b16 %v496
  %v515 = vunpack.c.h.b16 %v496
  %v516 = vunpack.c.l.b16 %v497
  %v517 = vunpack.c.l.b16 %v498
  %v518 = vunpack.c.h.b16 %v498
  %v519 = vunpack.c.l.b16 %v499
  %v520 = vpack.c.b16 %v511, %v508
  %v521 = vpack.c.b16 %v512, %v509
  %v522 = vpack.c.b16 %v513, %v510
  %v523 = vpack.c.b16 %v517, %v514
  %v524 = vpack.c.b16 %v518, %v515
  %v525 = vpack.c.b16 %v519, %v516
  %532 = vmatprep.subr.bf16.mxu0 0
  %533 = vmatpush1.bf16.msra.mxu0 %v215
  %534 = vmatprep.subr.bf16.mxu0 0
  %535 = vmatpush1.bf16.msra.mxu0 %v214
  %536 = vmatprep.subr.bf16.mxu0 0
  %537 = vmatpush1.bf16.msra.mxu0 %v213
  %538 = vmatprep.subr.bf16.mxu0 0
  %539 = vmatpush1.bf16.msra.mxu0 %v212
  %540 = vmatprep.subr.bf16.mxu0 0
  %541 = vmatpush1.bf16.msra.mxu0 %v211
  %542 = vmatprep.subr.bf16.mxu0 0
  %543 = vmatpush1.bf16.msra.mxu0 %v210
  %544 = vmatprep.subr.bf16.mxu0 0
  %545 = vmatpush1.bf16.msra.mxu0 %v209
  %546 = vmatprep.subr.bf16.mxu0 0
  %547 = vmatpush1.bf16.msra.mxu0 %v208
  %548 = vmatprep.subr.bf16.mxu0 0
  %549 = vmatpush2.bf16.msra.mxu0 %v223
  %550 = vmatprep.subr.bf16.mxu0 0
  %551 = vmatpush2.bf16.msra.mxu0 %v222
  %552 = vmatprep.subr.bf16.mxu0 0
  %553 = vmatpush2.bf16.msra.mxu0 %v221
  %554 = vmatprep.subr.bf16.mxu0 0
  %555 = vmatpush2.bf16.msra.mxu0 %v220
  %556 = vmatprep.subr.bf16.mxu0 0
  %557 = vmatpush2.bf16.msra.mxu0 %v219
  %558 = vmatprep.subr.bf16.mxu0 0
  %559 = vmatpush2.bf16.msra.mxu0 %v218
  %560 = vmatprep.subr.bf16.mxu0 0
  %561 = vmatpush2.bf16.msra.mxu0 %v217
  %562 = vmatprep.subr.bf16.mxu0 0
  %563 = vmatpush2.bf16.msra.mxu0 %v216
  %564 = vmatprep.mubr.bf16.mxu0 %v521
  %565 = vmatmul.mubr.bf16.gmra.mxu0 %v520
  %v566 = vpop.f32.mrf.mxu0
  %v567 = vadd.f32 0.0, %v566
  %v568 = vpop.f32.mrf.mxu0
  %v569 = vpop.f32.mrf.mxu0
  %v570 = vadd.f32 0.0, %v569
  %v571 = vpop.f32.mrf.mxu0
  %572 = vmatprep.mubr.bf16.mxu0 %v524
  %573 = vmatmul.mubr.bf16.gmra.mxu0 %v523
  %v574 = vpop.f32.mrf.mxu0
  %v575 = vadd.f32 0.0, %v574
  %v576 = vpop.f32.mrf.mxu0
  %v577 = vpop.f32.mrf.mxu0
  %v578 = vadd.f32 0.0, %v577
  %v579 = vpop.f32.mrf.mxu0
  %580 = vdwg.mxu0
  %581 = vmatprep.subr.bf16.mxu0 0
  %582 = vmatpush1.bf16.msra.mxu0 %v231
  %583 = vmatprep.subr.bf16.mxu0 0
  %584 = vmatpush1.bf16.msra.mxu0 %v230
  %585 = vmatprep.subr.bf16.mxu0 0
  %586 = vmatpush1.bf16.msra.mxu0 %v229
  %587 = vmatprep.subr.bf16.mxu0 0
  %588 = vmatpush1.bf16.msra.mxu0 %v228
  %589 = vmatprep.subr.bf16.mxu0 0
  %590 = vmatpush1.bf16.msra.mxu0 %v227
  %591 = vmatprep.subr.bf16.mxu0 0
  %592 = vmatpush1.bf16.msra.mxu0 %v226
  %593 = vmatprep.subr.bf16.mxu0 0
  %594 = vmatpush1.bf16.msra.mxu0 %v225
  %595 = vmatprep.subr.bf16.mxu0 0
  %596 = vmatpush1.bf16.msra.mxu0 %v224
  %597 = vmatprep.subr.bf16.mxu0 0
  %598 = vmatpush2.bf16.msra.mxu0 0
  %599 = vmatprep.subr.bf16.mxu0 0
  %600 = vmatpush2.bf16.msra.mxu0 0
  %601 = vmatprep.subr.bf16.mxu0 0
  %602 = vmatpush2.bf16.msra.mxu0 0
  %603 = vmatprep.subr.bf16.mxu0 0
  %604 = vmatpush2.bf16.msra.mxu0 0
  %605 = vmatprep.subr.bf16.mxu0 0
  %606 = vmatpush2.bf16.msra.mxu0 0
  %607 = vmatprep.subr.bf16.mxu0 0
  %608 = vmatpush2.bf16.msra.mxu0 0
  %609 = vmatprep.subr.bf16.mxu0 0
  %610 = vmatpush2.bf16.msra.mxu0 0
  %611 = vmatprep.subr.bf16.mxu0 0
  %612 = vmatpush2.bf16.msra.mxu0 0
  %613 = vmatprep.mubr.bf16.mxu0 0
  %614 = vmatmul.mubr.bf16.gmra.mxu0 %v522
  %v615 = vpop.f32.mrf.mxu0
  %v616 = vadd.f32 %v567, %v615
  %v617 = vpop.f32.mrf.mxu0
  %v618 = vpop.f32.mrf.mxu0
  %v619 = vadd.f32 %v570, %v618
  %v620 = vpop.f32.mrf.mxu0
  %621 = vmatprep.mubr.bf16.mxu0 0
  %622 = vmatmul.mubr.bf16.gmra.mxu0 %v525
  %v623 = vpop.f32.mrf.mxu0
  %v624 = vadd.f32 %v575, %v623
  %v625 = vpop.f32.mrf.mxu0
  %v626 = vpop.f32.mrf.mxu0
  %v627 = vadd.f32 %v578, %v626
  %v628 = vpop.f32.mrf.mxu0
  %629 = vdwg.mxu0
  %v630 = vld [vmem:[%s3] sm:$0xff]
  %v631 = vld [vmem:[%s3 + $0x8] sm:$0xf]
  %v632 = vld [vmem:[%s3 + $0xc] sm:$0xff]
  %v633 = vld [vmem:[%s3 + $0x14] sm:$0xf]
  %v634 = vld [vmem:[%s3 + $0x18] sm:$0xff]
  %v635 = vld [vmem:[%s3 + $0x20] sm:$0xf]
  %v636 = vld [vmem:[%s3 + $0x24] sm:$0xff]
  %v637 = vld [vmem:[%s3 + $0x2c] sm:$0xf]
  %v646 = vunpack.c.l.b16 %v630
  %v647 = vunpack.c.h.b16 %v630
  %v648 = vunpack.c.l.b16 %v631
  %v649 = vunpack.c.l.b16 %v632
  %v650 = vunpack.c.h.b16 %v632
  %v651 = vunpack.c.l.b16 %v633
  %v652 = vunpack.c.l.b16 %v634
  %v653 = vunpack.c.h.b16 %v634
  %v654 = vunpack.c.l.b16 %v635
  %v655 = vunpack.c.l.b16 %v636
  %v656 = vunpack.c.h.b16 %v636
  %v657 = vunpack.c.l.b16 %v637
  %v658 = vpack.c.b16 %v649, %v646
  %v659 = vpack.c.b16 %v650, %v647
  %v660 = vpack.c.b16 %v651, %v648
  %v661 = vpack.c.b16 %v655, %v652
  %v662 = vpack.c.b16 %v656, %v653
  %v663 = vpack.c.b16 %v657, %v654
  %670 = vmatprep.subr.bf16.mxu0 0
  %671 = vmatpush1.bf16.msra.mxu0 %v215
  %672 = vmatprep.subr.bf16.mxu0 0
  %673 = vmatpush1.bf16.msra.mxu0 %v214
  %674 = vmatprep.subr.bf16.mxu0 0
  %675 = vmatpush1.bf16.msra.mxu0 %v213
  %676 = vmatprep.subr.bf16.mxu0 0
  %677 = vmatpush1.bf16.msra.mxu0 %v212
  %678 = vmatprep.subr.bf16.mxu0 0
  %679 = vmatpush1.bf16.msra.mxu0 %v211
  %680 = vmatprep.subr.bf16.mxu0 0
  %681 = vmatpush1.bf16.msra.mxu0 %v210
  %682 = vmatprep.subr.bf16.mxu0 0
  %683 = vmatpush1.bf16.msra.mxu0 %v209
  %684 = vmatprep.subr.bf16.mxu0 0
  %685 = vmatpush1.bf16.msra.mxu0 %v208
  %686 = vmatprep.subr.bf16.mxu0 0
  %687 = vmatpush2.bf16.msra.mxu0 %v223
  %688 = vmatprep.subr.bf16.mxu0 0
  %689 = vmatpush2.bf16.msra.mxu0 %v222
  %690 = vmatprep.subr.bf16.mxu0 0
  %691 = vmatpush2.bf16.msra.mxu0 %v221
  %692 = vmatprep.subr.bf16.mxu0 0
  %693 = vmatpush2.bf16.msra.mxu0 %v220
  %694 = vmatprep.subr.bf16.mxu0 0
  %695 = vmatpush2.bf16.msra.mxu0 %v219
  %696 = vmatprep.subr.bf16.mxu0 0
  %697 = vmatpush2.bf16.msra.mxu0 %v218
  %698 = vmatprep.subr.bf16.mxu0 0
  %699 = vmatpush2.bf16.msra.mxu0 %v217
  %700 = vmatprep.subr.bf16.mxu0 0
  %701 = vmatpush2.bf16.msra.mxu0 %v216
  %702 = vmatprep.mubr.bf16.mxu0 %v659
  %703 = vmatmul.mubr.bf16.gmra.mxu0 %v658
  %v704 = vpop.f32.mrf.mxu0
  %v705 = vadd.f32 0.0, %v704
  %v706 = vpop.f32.mrf.mxu0
  %v707 = vpop.f32.mrf.mxu0
  %v708 = vadd.f32 0.0, %v707
  %v709 = vpop.f32.mrf.mxu0
  %710 = vmatprep.mubr.bf16.mxu0 %v662
  %711 = vmatmul.mubr.bf16.gmra.mxu0 %v661
  %v712 = vpop.f32.mrf.mxu0
  %v713 = vadd.f32 0.0, %v712
  %v714 = vpop.f32.mrf.mxu0
  %v715 = vpop.f32.mrf.mxu0
  %v716 = vadd.f32 0.0, %v715
  %v717 = vpop.f32.mrf.mxu0
  %718 = vdwg.mxu0
  %719 = vmatprep.subr.bf16.mxu0 0
  %720 = vmatpush1.bf16.msra.mxu0 %v231
  %721 = vmatprep.subr.bf16.mxu0 0
  %722 = vmatpush1.bf16.msra.mxu0 %v230
  %723 = vmatprep.subr.bf16.mxu0 0
  %724 = vmatpush1.bf16.msra.mxu0 %v229
  %725 = vmatprep.subr.bf16.mxu0 0
  %726 = vmatpush1.bf16.msra.mxu0 %v228
  %727 = vmatprep.subr.bf16.mxu0 0
  %728 = vmatpush1.bf16.msra.mxu0 %v227
  %729 = vmatprep.subr.bf16.mxu0 0
  %730 = vmatpush1.bf16.msra.mxu0 %v226
  %731 = vmatprep.subr.bf16.mxu0 0
  %732 = vmatpush1.bf16.msra.mxu0 %v225
  %733 = vmatprep.subr.bf16.mxu0 0
  %734 = vmatpush1.bf16.msra.mxu0 %v224
  %735 = vmatprep.subr.bf16.mxu0 0
  %736 = vmatpush2.bf16.msra.mxu0 0
  %737 = vmatprep.subr.bf16.mxu0 0
  %738 = vmatpush2.bf16.msra.mxu0 0
  %739 = vmatprep.subr.bf16.mxu0 0
  %740 = vmatpush2.bf16.msra.mxu0 0
  %741 = vmatprep.subr.bf16.mxu0 0
  %742 = vmatpush2.bf16.msra.mxu0 0
  %743 = vmatprep.subr.bf16.mxu0 0
  %744 = vmatpush2.bf16.msra.mxu0 0
  %745 = vmatprep.subr.bf16.mxu0 0
  %746 = vmatpush2.bf16.msra.mxu0 0
  %747 = vmatprep.subr.bf16.mxu0 0
  %748 = vmatpush2.bf16.msra.mxu0 0
  %749 = vmatprep.subr.bf16.mxu0 0
  %750 = vmatpush2.bf16.msra.mxu0 0
  %751 = vmatprep.mubr.bf16.mxu0 0
  %752 = vmatmul.mubr.bf16.gmra.mxu0 %v660
  %v753 = vpop.f32.mrf.mxu0
  %v754 = vadd.f32 %v705, %v753
  %v755 = vpop.f32.mrf.mxu0
  %v756 = vpop.f32.mrf.mxu0
  %v757 = vadd.f32 %v708, %v756
  %v758 = vpop.f32.mrf.mxu0
  %759 = vmatprep.mubr.bf16.mxu0 0
  %760 = vmatmul.mubr.bf16.gmra.mxu0 %v663
  %v761 = vpop.f32.mrf.mxu0
  %v762 = vadd.f32 %v713, %v761
  %v763 = vpop.f32.mrf.mxu0
  %v764 = vpop.f32.mrf.mxu0
  %v765 = vadd.f32 %v716, %v764
  %v766 = vpop.f32.mrf.mxu0
  %767 = vdwg.mxu0
  %v768 = vmax.f32 %v340, %v478
  %v769 = vmax.f32 %v343, %v481
  %v770 = vmax.f32 %v348, %v486
  %v771 = vmax.f32 %v351, %v489
  %v772 = vmax.f32 %v616, %v754
  %v773 = vmax.f32 %v619, %v757
  %v774 = vmax.f32 %v624, %v762
  %v775 = vmax.f32 %v627, %v765
  %v776 = vmax.f32 %v768, %v772
  %v777 = vmax.f32 %v769, %v773
  %v778 = vmax.f32 %v770, %v774
  %v779 = vmax.f32 %v771, %v775
  %v780 = vld [vmem:[%s5] sm:$0x1]
  %v782 = vlaneseq
  %v783 = vshrl.u32 %v782, 7
  %v784 = vsub.s32 0, %v783
  %v785 = vrot.slane %v780, %v784
  %v787 = vadd.f32 %v776, %v785
  %v788 = vadd.f32 %v777, %v785
  %v789 = vadd.f32 %v778, %v785
  %v790 = vadd.f32 %v779, %v785
  %v791 = vmax.f32 %v787, 0.0
  %v792 = vmax.f32 %v788, 0.0
  %v793 = vmax.f32 %v789, 0.0
  %v794 = vmax.f32 %v790, 0.0
  %795 = vst [vmem:[%s6] sm:$0xff] %v791
  %796 = vst [vmem:[%s6 + $0x8] sm:$0xff] %v792
  %797 = vst [vmem:[%s6 + $0x10] sm:$0xff] %v793
  %798 = vst [vmem:[%s6 + $0x18] sm:$0xff] %v794
  // Predicated region
  $region26: #{net_forward.10} parent=0 // pred_check
    _
  $region27: #{net_forward.10} parent=0 // pred_check_branch
    %800 = sbr.rel (0) target = $region29
  $region28: #{net_forward.10} parent=0 // pred_region
    _
  $region29: #{net_forward.10} parent=0 // pred_fallthru
    _
  // Predicated region
  $region30: #{net_forward.10} parent=0 // pred_check
    _
  $region31: #{net_forward.10} parent=0 // pred_check_branch
    %802 = sbr.rel (0) target = $region33
  $region32: #{net_forward.10} parent=0 // pred_region
    _
  $region33: #{net_forward.10} parent=0 // pred_fallthru
    _

// kernel: net_forward.11
$region0: #{net_forward.11}
  #allocation0 [shape = 'u32[]', space=smem, size = 0x4, offset = 0x4, fixed_abs, tag = 'smem constant byte address 0x4 - core index']
  #allocation1 [shape = 'u32[144,128]{1,0:T(1,128)}', space=vmem, size = 0x12000, scoped, tag = 'internal scratch']
  %s0 = inlined_call_operand.vmem [shape: bf16[8,512], index: 0, kind: input, shape index: {}]
  %s1 = inlined_call_operand.vmem [shape: bf16[512,128], index: 1, kind: input, shape index: {}]
  %s2 = inlined_call_operand.vmem [shape: f32[1,128], index: 2, kind: input, shape index: {}]
  %s3 = inlined_call_operand.vmem [shape: bf16[128,128], index: 3, kind: input, shape index: {}]
  %s4 = inlined_call_operand.vmem [shape: f32[1,128], index: 4, kind: input, shape index: {}]
  %s5 = inlined_call_operand.vmem [shape: bf16[128,128], index: 5, kind: input, shape index: {}]
  %s6 = inlined_call_operand.vmem [shape: f32[1,128], index: 6, kind: input, shape index: {}]
  %s7 = inlined_call_operand.vmem [shape: f32[8,128], index: 7, kind: output, shape index: {}]
  %s8 = sld [smem:[#allocation0]]
  $region38: #{net_forward.11} parent=0
    _
  %s10 = ssub.s32 1, %s8
  %s11 = scalar_select 0, %s10, %s8
  // Predicated region
  $region2: #{net_forward.11} parent=0 // pred_check
    _
  $region3: #{net_forward.11} parent=0 // pred_check_branch
    %13 = sbr.rel (0) target = $region5
  $region4: #{net_forward.11} parent=0 // pred_region
    _
  $region5: #{net_forward.11} parent=0 // pred_fallthru
    _
  // Predicated region
  $region6: #{net_forward.11} parent=0 // pred_check
    _
  $region7: #{net_forward.11} parent=0 // pred_check_branch
    %15 = sbr.rel (0) target = $region9
  $region8: #{net_forward.11} parent=0 // pred_region
    _
  $region9: #{net_forward.11} parent=0 // pred_fallthru
    _
  // Predicated region
  $region10: #{net_forward.11} parent=0 // pred_check
    _
  $region11: #{net_forward.11} parent=0 // pred_check_branch
    %17 = sbr.rel (0) target = $region13
  $region12: #{net_forward.11} parent=0 // pred_region
    _
  $region13: #{net_forward.11} parent=0 // pred_fallthru
    _
  // Predicated region
  $region14: #{net_forward.11} parent=0 // pred_check
    _
  $region15: #{net_forward.11} parent=0 // pred_check_branch
    %19 = sbr.rel (0) target = $region17
  $region16: #{net_forward.11} parent=0 // pred_region
    _
  $region17: #{net_forward.11} parent=0 // pred_fallthru
    _
  // Predicated region
  $region18: #{net_forward.11} parent=0 // pred_check
    _
  $region19: #{net_forward.11} parent=0 // pred_check_branch
    %21 = sbr.rel (0) target = $region21
  $region20: #{net_forward.11} parent=0 // pred_region
    _
  $region21: #{net_forward.11} parent=0 // pred_fallthru
    _
  // Predicated region
  $region22: #{net_forward.11} parent=0 // pred_check
    _
  $region23: #{net_forward.11} parent=0 // pred_check_branch
    %23 = sbr.rel (0) target = $region25
  $region24: #{net_forward.11} parent=0 // pred_region
    _
  $region25: #{net_forward.11} parent=0 // pred_fallthru
    _
  // Predicated region
  $region26: #{net_forward.11} parent=0 // pred_check
    _
  $region27: #{net_forward.11} parent=0 // pred_check_branch
    %25 = sbr.rel (0) target = $region29
  $region28: #{net_forward.11} parent=0 // pred_region
    _
  $region29: #{net_forward.11} parent=0 // pred_fallthru
    _
  %v27 = vld [vmem:[%s0] sm:$0xff]
  %v28 = vld [vmem:[%s0 + $0x8] sm:$0xff]
  %v29 = vld [vmem:[%s1] sm:$0xf]
  %v30 = vld [vmem:[%s1 + $0x4] sm:$0xf]
  %v31 = vld [vmem:[%s1 + $0x8] sm:$0xf]
  %v32 = vld [vmem:[%s1 + $0xc] sm:$0xf]
  %v33 = vld [vmem:[%s1 + $0x10] sm:$0xf]
  %v34 = vld [vmem:[%s1 + $0x14] sm:$0xf]
  %v35 = vld [vmem:[%s1 + $0x18] sm:$0xf]
  %v36 = vld [vmem:[%s1 + $0x1c] sm:$0xf]
  %v37 = vld [vmem:[%s1 + $0x20] sm:$0xf]
  %v38 = vld [vmem:[%s1 + $0x24] sm:$0xf]
  %v39 = vld [vmem:[%s1 + $0x28] sm:$0xf]
  %v40 = vld [vmem:[%s1 + $0x2c] sm:$0xf]
  %v41 = vld [vmem:[%s1 + $0x30] sm:$0xf]
  %v42 = vld [vmem:[%s1 + $0x34] sm:$0xf]
  %v43 = vld [vmem:[%s1 + $0x38] sm:$0xf]
  %v44 = vld [vmem:[%s1 + $0x3c] sm:$0xf]
  %v45 = vld [vmem:[%s1 + $0x40] sm:$0xf]
  %v46 = vld [vmem:[%s1 + $0x44] sm:$0xf]
  %v47 = vld [vmem:[%s1 + $0x48] sm:$0xf]
  %v48 = vld [vmem:[%s1 + $0x4c] sm:$0xf]
  %v49 = vld [vmem:[%s1 + $0x50] sm:$0xf]
  %v50 = vld [vmem:[%s1 + $0x54] sm:$0xf]
  %v51 = vld [vmem:[%s1 + $0x58] sm:$0xf]
  %v52 = vld [vmem:[%s1 + $0x5c] sm:$0xf]
  %v53 = vld [vmem:[%s1 + $0x60] sm:$0xf]
  %v54 = vld [vmem:[%s1 + $0x64] sm:$0xf]
  %v55 = vld [vmem:[%s1 + $0x68] sm:$0xf]
  %v56 = vld [vmem:[%s1 + $0x6c] sm:$0xf]
  %v57 = vld [vmem:[%s1 + $0x70] sm:$0xf]
  %v58 = vld [vmem:[%s1 + $0x74] sm:$0xf]
  %v59 = vld [vmem:[%s1 + $0x78] sm:$0xf]
  %v60 = vld [vmem:[%s1 + $0x7c] sm:$0xf]
  %v61 = vld [vmem:[%s1 + $0x80] sm:$0xf]
  %v62 = vld [vmem:[%s1 + $0x84] sm:$0xf]
  %v63 = vld [vmem:[%s1 + $0x88] sm:$0xf]
  %v64 = vld [vmem:[%s1 + $0x8c] sm:$0xf]
  %v65 = vld [vmem:[%s1 + $0x90] sm:$0xf]
  %v66 = vld [vmem:[%s1 + $0x94] sm:$0xf]
  %v67 = vld [vmem:[%s1 + $0x98] sm:$0xf]
  %v68 = vld [vmem:[%s1 + $0x9c] sm:$0xf]
  %v69 = vld [vmem:[%s1 + $0xa0] sm:$0xf]
  %v70 = vld [vmem:[%s1 + $0xa4] sm:$0xf]
  %v71 = vld [vmem:[%s1 + $0xa8] sm:$0xf]
  %v72 = vld [vmem:[%s1 + $0xac] sm:$0xf]
  %v73 = vld [vmem:[%s1 + $0xb0] sm:$0xf]
  %v74 = vld [vmem:[%s1 + $0xb4] sm:$0xf]
  %v75 = vld [vmem:[%s1 + $0xb8] sm:$0xf]
  %v76 = vld [vmem:[%s1 + $0xbc] sm:$0xf]
  %v77 = vld [vmem:[%s1 + $0xc0] sm:$0xf]
  %v78 = vld [vmem:[%s1 + $0xc4] sm:$0xf]
  %v79 = vld [vmem:[%s1 + $0xc8] sm:$0xf]
  %v80 = vld [vmem:[%s1 + $0xcc] sm:$0xf]
  %v81 = vld [vmem:[%s1 + $0xd0] sm:$0xf]
  %v82 = vld [vmem:[%s1 + $0xd4] sm:$0xf]
  %v83 = vld [vmem:[%s1 + $0xd8] sm:$0xf]
  %v84 = vld [vmem:[%s1 + $0xdc] sm:$0xf]
  %v85 = vld [vmem:[%s1 + $0xe0] sm:$0xf]
  %v86 = vld [vmem:[%s1 + $0xe4] sm:$0xf]
  %v87 = vld [vmem:[%s1 + $0xe8] sm:$0xf]
  %v88 = vld [vmem:[%s1 + $0xec] sm:$0xf]
  %v89 = vld [vmem:[%s1 + $0xf0] sm:$0xf]
  %v90 = vld [vmem:[%s1 + $0xf4] sm:$0xf]
  %v91 = vld [vmem:[%s1 + $0xf8] sm:$0xf]
  %v92 = vld [vmem:[%s1 + $0xfc] sm:$0xf]
  %v93 = vld [vmem:[%s2] sm:$0x1]
  %v95 = vlaneseq
  %v96 = vshrl.u32 %v95, 7
  %v97 = vsub.s32 0, %v96
  %v98 = vrot.slane %v93, %v97
  %v102 = vunpack.c.l.b16 %v27
  %v103 = vunpack.c.h.b16 %v27
  %v104 = vunpack.c.l.b16 %v28
  %v105 = vunpack.c.h.b16 %v28
  %v106 = vpack.c.b16 %v102, %v102
  %v107 = vpack.c.b16 %v103, %v103
  %v108 = vpack.c.b16 %v104, %v104
  %v109 = vpack.c.b16 %v105, %v105
  %v178 = vunpack.c.l.b16 %v29
  %v179 = vunpack.c.l.b16 %v30
  %v180 = vunpack.c.l.b16 %v31
  %v181 = vunpack.c.l.b16 %v32
  %v182 = vunpack.c.l.b16 %v33
  %v183 = vunpack.c.l.b16 %v34
  %v184 = vunpack.c.l.b16 %v35
  %v185 = vunpack.c.l.b16 %v36
  %v186 = vunpack.c.l.b16 %v37
  %v187 = vunpack.c.l.b16 %v38
  %v188 = vunpack.c.l.b16 %v39
  %v189 = vunpack.c.l.b16 %v40
  %v190 = vunpack.c.l.b16 %v41
  %v191 = vunpack.c.l.b16 %v42
  %v192 = vunpack.c.l.b16 %v43
  %v193 = vunpack.c.l.b16 %v44
  %v194 = vunpack.c.l.b16 %v45
  %v195 = vunpack.c.l.b16 %v46
  %v196 = vunpack.c.l.b16 %v47
  %v197 = vunpack.c.l.b16 %v48
  %v198 = vunpack.c.l.b16 %v49
  %v199 = vunpack.c.l.b16 %v50
  %v200 = vunpack.c.l.b16 %v51
  %v201 = vunpack.c.l.b16 %v52
  %v202 = vunpack.c.l.b16 %v53
  %v203 = vunpack.c.l.b16 %v54
  %v204 = vunpack.c.l.b16 %v55
  %v205 = vunpack.c.l.b16 %v56
  %v206 = vunpack.c.l.b16 %v57
  %v207 = vunpack.c.l.b16 %v58
  %v208 = vunpack.c.l.b16 %v59
  %v209 = vunpack.c.l.b16 %v60
  %v210 = vunpack.c.l.b16 %v61
  %v211 = vunpack.c.l.b16 %v62
  %v212 = vunpack.c.l.b16 %v63
  %v213 = vunpack.c.l.b16 %v64
  %v214 = vunpack.c.l.b16 %v65
  %v215 = vunpack.c.l.b16 %v66
  %v216 = vunpack.c.l.b16 %v67
  %v217 = vunpack.c.l.b16 %v68
  %v218 = vunpack.c.l.b16 %v69
  %v219 = vunpack.c.l.b16 %v70
  %v220 = vunpack.c.l.b16 %v71
  %v221 = vunpack.c.l.b16 %v72
  %v222 = vunpack.c.l.b16 %v73
  %v223 = vunpack.c.l.b16 %v74
  %v224 = vunpack.c.l.b16 %v75
  %v225 = vunpack.c.l.b16 %v76
  %v226 = vunpack.c.l.b16 %v77
  %v227 = vunpack.c.l.b16 %v78
  %v228 = vunpack.c.l.b16 %v79
  %v229 = vunpack.c.l.b16 %v80
  %v230 = vunpack.c.l.b16 %v81
  %v231 = vunpack.c.l.b16 %v82
  %v232 = vunpack.c.l.b16 %v83
  %v233 = vunpack.c.l.b16 %v84
  %v234 = vunpack.c.l.b16 %v85
  %v235 = vunpack.c.l.b16 %v86
  %v236 = vunpack.c.l.b16 %v87
  %v237 = vunpack.c.l.b16 %v88
  %v238 = vunpack.c.l.b16 %v89
  %v239 = vunpack.c.l.b16 %v90
  %v240 = vunpack.c.l.b16 %v91
  %v241 = vunpack.c.l.b16 %v92
  %v242 = vpack.c.b16 %v179, %v178
  %v243 = vpack.c.b16 %v181, %v180
  %v244 = vpack.c.b16 %v183, %v182
  %v245 = vpack.c.b16 %v185, %v184
  %v246 = vpack.c.b16 %v187, %v186
  %v247 = vpack.c.b16 %v189, %v188
  %v248 = vpack.c.b16 %v191, %v190
  %v249 = vpack.c.b16 %v193, %v192
  %v250 = vpack.c.b16 %v195, %v194
  %v251 = vpack.c.b16 %v197, %v196
  %v252 = vpack.c.b16 %v199, %v198
  %v253 = vpack.c.b16 %v201, %v200
  %v254 = vpack.c.b16 %v203, %v202
  %v255 = vpack.c.b16 %v205, %v204
  %v256 = vpack.c.b16 %v207, %v206
  %v257 = vpack.c.b16 %v209, %v208
  %v258 = vpack.c.b16 %v211, %v210
  %v259 = vpack.c.b16 %v213, %v212
  %v260 = vpack.c.b16 %v215, %v214
  %v261 = vpack.c.b16 %v217, %v216
  %v262 = vpack.c.b16 %v219, %v218
  %v263 = vpack.c.b16 %v221, %v220
  %v264 = vpack.c.b16 %v223, %v222
  %v265 = vpack.c.b16 %v225, %v224
  %v266 = vpack.c.b16 %v227, %v226
  %v267 = vpack.c.b16 %v229, %v228
  %v268 = vpack.c.b16 %v231, %v230
  %v269 = vpack.c.b16 %v233, %v232
  %v270 = vpack.c.b16 %v235, %v234
  %v271 = vpack.c.b16 %v237, %v236
  %v272 = vpack.c.b16 %v239, %v238
  %v273 = vpack.c.b16 %v241, %v240
  %306 = vmatprep.subr.bf16.mxu0 0
  %307 = vmatpush1.bf16.msra.mxu0 %v249
  %308 = vmatprep.subr.bf16.mxu0 0
  %309 = vmatpush1.bf16.msra.mxu0 %v248
  %310 = vmatprep.subr.bf16.mxu0 0
  %311 = vmatpush1.bf16.msra.mxu0 %v247
  %312 = vmatprep.subr.bf16.mxu0 0
  %313 = vmatpush1.bf16.msra.mxu0 %v246
  %314 = vmatprep.subr.bf16.mxu0 0
  %315 = vmatpush1.bf16.msra.mxu0 %v245
  %316 = vmatprep.subr.bf16.mxu0 0
  %317 = vmatpush1.bf16.msra.mxu0 %v244
  %318 = vmatprep.subr.bf16.mxu0 0
  %319 = vmatpush1.bf16.msra.mxu0 %v243
  %320 = vmatprep.subr.bf16.mxu0 0
  %321 = vmatpush1.bf16.msra.mxu0 %v242
  %322 = vmatprep.subr.bf16.mxu0 0
  %323 = vmatpush2.bf16.msra.mxu0 %v257
  %324 = vmatprep.subr.bf16.mxu0 0
  %325 = vmatpush2.bf16.msra.mxu0 %v256
  %326 = vmatprep.subr.bf16.mxu0 0
  %327 = vmatpush2.bf16.msra.mxu0 %v255
  %328 = vmatprep.subr.bf16.mxu0 0
  %329 = vmatpush2.bf16.msra.mxu0 %v254
  %330 = vmatprep.subr.bf16.mxu0 0
  %331 = vmatpush2.bf16.msra.mxu0 %v253
  %332 = vmatprep.subr.bf16.mxu0 0
  %333 = vmatpush2.bf16.msra.mxu0 %v252
  %334 = vmatprep.subr.bf16.mxu0 0
  %335 = vmatpush2.bf16.msra.mxu0 %v251
  %336 = vmatprep.subr.bf16.mxu0 0
  %337 = vmatpush2.bf16.msra.mxu0 %v250
  %338 = vmatprep.mubr.bf16.mxu0 %v107
  %339 = vmatmul.mubr.bf16.gmra.mxu0 %v106
  %v340 = vpop.f32.mrf.mxu0
  %v341 = vadd.f32 %v98, %v340
  %v342 = vpop.f32.mrf.mxu0
  %v343 = vpop.f32.mrf.mxu0
  %v344 = vpop.f32.mrf.mxu0
  %345 = vdwg.mxu0
  %346 = vmatprep.subr.bf16.mxu0 0
  %347 = vmatpush1.bf16.msra.mxu0 %v265
  %348 = vmatprep.subr.bf16.mxu0 0
  %349 = vmatpush1.bf16.msra.mxu0 %v264
  %350 = vmatprep.subr.bf16.mxu0 0
  %351 = vmatpush1.bf16.msra.mxu0 %v263
  %352 = vmatprep.subr.bf16.mxu0 0
  %353 = vmatpush1.bf16.msra.mxu0 %v262
  %354 = vmatprep.subr.bf16.mxu0 0
  %355 = vmatpush1.bf16.msra.mxu0 %v261
  %356 = vmatprep.subr.bf16.mxu0 0
  %357 = vmatpush1.bf16.msra.mxu0 %v260
  %358 = vmatprep.subr.bf16.mxu0 0
  %359 = vmatpush1.bf16.msra.mxu0 %v259
  %360 = vmatprep.subr.bf16.mxu0 0
  %361 = vmatpush1.bf16.msra.mxu0 %v258
  %362 = vmatprep.subr.bf16.mxu0 0
  %363 = vmatpush2.bf16.msra.mxu0 %v273
  %364 = vmatprep.subr.bf16.mxu0 0
  %365 = vmatpush2.bf16.msra.mxu0 %v272
  %366 = vmatprep.subr.bf16.mxu0 0
  %367 = vmatpush2.bf16.msra.mxu0 %v271
  %368 = vmatprep.subr.bf16.mxu0 0
  %369 = vmatpush2.bf16.msra.mxu0 %v270
  %370 = vmatprep.subr.bf16.mxu0 0
  %371 = vmatpush2.bf16.msra.mxu0 %v269
  %372 = vmatprep.subr.bf16.mxu0 0
  %373 = vmatpush2.bf16.msra.mxu0 %v268
  %374 = vmatprep.subr.bf16.mxu0 0
  %375 = vmatpush2.bf16.msra.mxu0 %v267
  %376 = vmatprep.subr.bf16.mxu0 0
  %377 = vmatpush2.bf16.msra.mxu0 %v266
  %378 = vmatprep.mubr.bf16.mxu0 %v109
  %379 = vmatmul.mubr.bf16.gmra.mxu0 %v108
  %v380 = vpop.f32.mrf.mxu0
  %v381 = vadd.f32 %v341, %v380
  %v382 = vpop.f32.mrf.mxu0
  %v383 = vpop.f32.mrf.mxu0
  %v384 = vpop.f32.mrf.mxu0
  %385 = vdwg.mxu0
  %v386 = vmax.f32 %v381, 0.0
  %v387 = vpack.c.bf16 %v386, %v386
  %v388 = vld [vmem:[%s3] sm:$0xf]
  %v389 = vld [vmem:[%s3 + $0x4] sm:$0xf]
  %v390 = vld [vmem:[%s3 + $0x8] sm:$0xf]
  %v391 = vld [vmem:[%s3 + $0xc] sm:$0xf]
  %v392 = vld [vmem:[%s3 + $0x10] sm:$0xf]
  %v393 = vld [vmem:[%s3 + $0x14] sm:$0xf]
  %v394 = vld [vmem:[%s3 + $0x18] sm:$0xf]
  %v395 = vld [vmem:[%s3 + $0x1c] sm:$0xf]
  %v396 = vld [vmem:[%s3 + $0x20] sm:$0xf]
  %v397 = vld [vmem:[%s3 + $0x24] sm:$0xf]
  %v398 = vld [vmem:[%s3 + $0x28] sm:$0xf]
  %v399 = vld [vmem:[%s3 + $0x2c] sm:$0xf]
  %v400 = vld [vmem:[%s3 + $0x30] sm:$0xf]
  %v401 = vld [vmem:[%s3 + $0x34] sm:$0xf]
  %v402 = vld [vmem:[%s3 + $0x38] sm:$0xf]
  %v403 = vld [vmem:[%s3 + $0x3c] sm:$0xf]
  %v404 = vld [vmem:[%s4] sm:$0x1]
  %v406 = vlaneseq
  %v407 = vshrl.u32 %v406, 7
  %v408 = vsub.s32 0, %v407
  %v409 = vrot.slane %v404, %v408
  %v427 = vunpack.c.l.b16 %v388
  %v428 = vunpack.c.l.b16 %v389
  %v429 = vunpack.c.l.b16 %v390
  %v430 = vunpack.c.l.b16 %v391
  %v431 = vunpack.c.l.b16 %v392
  %v432 = vunpack.c.l.b16 %v393
  %v433 = vunpack.c.l.b16 %v394
  %v434 = vunpack.c.l.b16 %v395
  %v435 = vunpack.c.l.b16 %v396
  %v436 = vunpack.c.l.b16 %v397
  %v437 = vunpack.c.l.b16 %v398
  %v438 = vunpack.c.l.b16 %v399
  %v439 = vunpack.c.l.b16 %v400
  %v440 = vunpack.c.l.b16 %v401
  %v441 = vunpack.c.l.b16 %v402
  %v442 = vunpack.c.l.b16 %v403
  %v443 = vpack.c.b16 %v428, %v427
  %v444 = vpack.c.b16 %v430, %v429
  %v445 = vpack.c.b16 %v432, %v431
  %v446 = vpack.c.b16 %v434, %v433
  %v447 = vpack.c.b16 %v436, %v435
  %v448 = vpack.c.b16 %v438, %v437
  %v449 = vpack.c.b16 %v440, %v439
  %v450 = vpack.c.b16 %v442, %v441
  %459 = vmatprep.subr.bf16.mxu0 0
  %460 = vmatpush1.bf16.msra.mxu0 %v450
  %461 = vmatprep.subr.bf16.mxu0 0
  %462 = vmatpush1.bf16.msra.mxu0 %v449
  %463 = vmatprep.subr.bf16.mxu0 0
  %464 = vmatpush1.bf16.msra.mxu0 %v448
  %465 = vmatprep.subr.bf16.mxu0 0
  %466 = vmatpush1.bf16.msra.mxu0 %v447
  %467 = vmatprep.subr.bf16.mxu0 0
  %468 = vmatpush1.bf16.msra.mxu0 %v446
  %469 = vmatprep.subr.bf16.mxu0 0
  %470 = vmatpush1.bf16.msra.mxu0 %v445
  %471 = vmatprep.subr.bf16.mxu0 0
  %472 = vmatpush1.bf16.msra.mxu0 %v444
  %473 = vmatprep.subr.bf16.mxu0 0
  %474 = vmatpush1.bf16.msra.mxu0 %v443
  %475 = vmatprep.subr.bf16.mxu0 0
  %476 = vmatpush2.bf16.msra.mxu0 0
  %477 = vmatprep.subr.bf16.mxu0 0
  %478 = vmatpush2.bf16.msra.mxu0 0
  %479 = vmatprep.subr.bf16.mxu0 0
  %480 = vmatpush2.bf16.msra.mxu0 0
  %481 = vmatprep.subr.bf16.mxu0 0
  %482 = vmatpush2.bf16.msra.mxu0 0
  %483 = vmatprep.subr.bf16.mxu0 0
  %484 = vmatpush2.bf16.msra.mxu0 0
  %485 = vmatprep.subr.bf16.mxu0 0
  %486 = vmatpush2.bf16.msra.mxu0 0
  %487 = vmatprep.subr.bf16.mxu0 0
  %488 = vmatpush2.bf16.msra.mxu0 0
  %489 = vmatprep.subr.bf16.mxu0 0
  %490 = vmatpush2.bf16.msra.mxu0 0
  %491 = vmatprep.mubr.bf16.mxu0 0
  %492 = vmatmul.mubr.bf16.gmra.mxu0 %v387
  %v493 = vpop.f32.mrf.mxu0
  %v494 = vadd.f32 %v409, %v493
  %v495 = vpop.f32.mrf.mxu0
  %v496 = vpop.f32.mrf.mxu0
  %v497 = vpop.f32.mrf.mxu0
  %498 = vdwg.mxu0
  %v499 = vmax.f32 %v494, 0.0
  %v500 = vpack.c.bf16 %v499, %v499
  %v501 = vld [vmem:[%s5] sm:$0xf]
  %v502 = vld [vmem:[%s5 + $0x4] sm:$0xf]
  %v503 = vld [vmem:[%s5 + $0x8] sm:$0xf]
  %v504 = vld [vmem:[%s5 + $0xc] sm:$0xf]
  %v505 = vld [vmem:[%s5 + $0x10] sm:$0xf]
  %v506 = vld [vmem:[%s5 + $0x14] sm:$0xf]
  %v507 = vld [vmem:[%s5 + $0x18] sm:$0xf]
  %v508 = vld [vmem:[%s5 + $0x1c] sm:$0xf]
  %v509 = vld [vmem:[%s5 + $0x20] sm:$0xf]
  %v510 = vld [vmem:[%s5 + $0x24] sm:$0xf]
  %v511 = vld [vmem:[%s5 + $0x28] sm:$0xf]
  %v512 = vld [vmem:[%s5 + $0x2c] sm:$0xf]
  %v513 = vld [vmem:[%s5 + $0x30] sm:$0xf]
  %v514 = vld [vmem:[%s5 + $0x34] sm:$0xf]
  %v515 = vld [vmem:[%s5 + $0x38] sm:$0xf]
  %v516 = vld [vmem:[%s5 + $0x3c] sm:$0xf]
  %v517 = vld [vmem:[%s6] sm:$0x1]
  %v519 = vlaneseq
  %v520 = vshrl.u32 %v519, 7
  %v521 = vsub.s32 0, %v520
  %v522 = vrot.slane %v517, %v521
  %v540 = vunpack.c.l.b16 %v501
  %v541 = vunpack.c.l.b16 %v502
  %v542 = vunpack.c.l.b16 %v503
  %v543 = vunpack.c.l.b16 %v504
  %v544 = vunpack.c.l.b16 %v505
  %v545 = vunpack.c.l.b16 %v506
  %v546 = vunpack.c.l.b16 %v507
  %v547 = vunpack.c.l.b16 %v508
  %v548 = vunpack.c.l.b16 %v509
  %v549 = vunpack.c.l.b16 %v510
  %v550 = vunpack.c.l.b16 %v511
  %v551 = vunpack.c.l.b16 %v512
  %v552 = vunpack.c.l.b16 %v513
  %v553 = vunpack.c.l.b16 %v514
  %v554 = vunpack.c.l.b16 %v515
  %v555 = vunpack.c.l.b16 %v516
  %v556 = vpack.c.b16 %v541, %v540
  %v557 = vpack.c.b16 %v543, %v542
  %v558 = vpack.c.b16 %v545, %v544
  %v559 = vpack.c.b16 %v547, %v546
  %v560 = vpack.c.b16 %v549, %v548
  %v561 = vpack.c.b16 %v551, %v550
  %v562 = vpack.c.b16 %v553, %v552
  %v563 = vpack.c.b16 %v555, %v554
  %572 = vmatprep.subr.bf16.mxu0 0
  %573 = vmatpush1.bf16.msra.mxu0 %v563
  %574 = vmatprep.subr.bf16.mxu0 0
  %575 = vmatpush1.bf16.msra.mxu0 %v562
  %576 = vmatprep.subr.bf16.mxu0 0
  %577 = vmatpush1.bf16.msra.mxu0 %v561
  %578 = vmatprep.subr.bf16.mxu0 0
  %579 = vmatpush1.bf16.msra.mxu0 %v560
  %580 = vmatprep.subr.bf16.mxu0 0
  %581 = vmatpush1.bf16.msra.mxu0 %v559
  %582 = vmatprep.subr.bf16.mxu0 0
  %583 = vmatpush1.bf16.msra.mxu0 %v558
  %584 = vmatprep.subr.bf16.mxu0 0
  %585 = vmatpush1.bf16.msra.mxu0 %v557
  %586 = vmatprep.subr.bf16.mxu0 0
  %587 = vmatpush1.bf16.msra.mxu0 %v556
  %588 = vmatprep.subr.bf16.mxu0 0
  %589 = vmatpush2.bf16.msra.mxu0 0
  %590 = vmatprep.subr.bf16.mxu0 0
  %591 = vmatpush2.bf16.msra.mxu0 0
  %592 = vmatprep.subr.bf16.mxu0 0
  %593 = vmatpush2.bf16.msra.mxu0 0
  %594 = vmatprep.subr.bf16.mxu0 0
  %595 = vmatpush2.bf16.msra.mxu0 0
  %596 = vmatprep.subr.bf16.mxu0 0
  %597 = vmatpush2.bf16.msra.mxu0 0
  %598 = vmatprep.subr.bf16.mxu0 0
  %599 = vmatpush2.bf16.msra.mxu0 0
  %600 = vmatprep.subr.bf16.mxu0 0
  %601 = vmatpush2.bf16.msra.mxu0 0
  %602 = vmatprep.subr.bf16.mxu0 0
  %603 = vmatpush2.bf16.msra.mxu0 0
  %604 = vmatprep.mubr.bf16.mxu0 0
  %605 = vmatmul.mubr.bf16.gmra.mxu0 %v500
  %v606 = vpop.f32.mrf.mxu0
  %v607 = vadd.f32 %v522, %v606
  %v608 = vpop.f32.mrf.mxu0
  %v609 = vpop.f32.mrf.mxu0
  %v610 = vpop.f32.mrf.mxu0
  %611 = vdwg.mxu0
  %612 = vst [vmem:[%s7] sm:$0xff] %v607
  // Predicated region
  $region30: #{net_forward.11} parent=0 // pred_check
    _
  $region31: #{net_forward.11} parent=0 // pred_check_branch
    %614 = sbr.rel (0) target = $region33
  $region32: #{net_forward.11} parent=0 // pred_region
    _
  $region33: #{net_forward.11} parent=0 // pred_fallthru
    _
  // Predicated region
  $region34: #{net_forward.11} parent=0 // pred_check
    _
  $region35: #{net_forward.11} parent=0 // pred_check_branch
    %616 = sbr.rel (0) target = $region37
  $region36: #{net_forward.11} parent=0 // pred_region
    _
  $region37: #{net_forward.11} parent=0 // pred_fallthru
    _

</llo_original>
